<compile_context>
chip_gen: v6e
topology: v6e:2x2x1
jax: 0.10.0
libtpu: 0.0.40
codegen_flags: <defaults>
</compile_context>

<pallas_src>
import jax
import jax.numpy as jnp
from jax.experimental import pallas as pl

# ---- hyperparameters (consistent with DPGConvSeq.__init__) ----
VOCAB_SIZE = 20
MAX_LEN = 32                      # sequence length L == max_len
MAX_KERNEL = 24                   # kernel_sizes = range(8, 24, 8) = [8, 16]
NB_FILTERS = 16
HIDDEN_DIMS = [64]
BOTTLENECK_DIM = 32
NUM_CLASSES = 10
CONV1_CH = 128
KERNEL_SIZES = list(range(8, MAX_KERNEL, 8))
BATCH = 2


# ---------------------------------------------------------------------------
# Fused Pallas kernel
# ---------------------------------------------------------------------------

def make_fused_kernel(B, L, V, kernel_sizes, nb_filters, n_mlp):
    V3 = 3 * V

    def kernel(*refs):
        # ---- unpack refs (order matches the wrapper's arg list) ----
        ids_ref, w1_ref, b1_ref = refs[0], refs[1], refs[2]
        pos = 3
        bf_refs = []
        for _ in kernel_sizes:
            bf_refs.append((refs[pos], refs[pos + 1]))
            pos += 2
        mlp_refs = []
        for _ in range(n_mlp):
            mlp_refs.append((refs[pos], refs[pos + 1]))
            pos += 2
        l2w_ref, l2b_ref = refs[pos], refs[pos + 1]
        pos += 2
        clsw_ref, clsb_ref = refs[pos], refs[pos + 1]
        pos += 2
        o_ref = refs[pos]

        # ---- hoisted weight / bias loads (stay resident in VMEM/vregs) ----
        w1 = w1_ref[...]                    # (3*V, 128) bf16, flattened (tap, vocab)-major
        b1 = b1_ref[...]                    # (1, 128) f32
        bf_w = [w[...] for (w, _) in bf_refs]   # (k*128, F) bf16
        bf_b = [b[...] for (_, b) in bf_refs]   # (1, F) f32

        # Lane-index helpers for the (L, 3V) conv1 im2col one-hot (built once).
        lane = jax.lax.broadcasted_iota(jnp.int32, (L, V3), 1)
        in_tap1 = lane >= V
        in_tap2 = lane >= 2 * V
        voc = lane - jnp.where(in_tap2, 2 * V, jnp.where(in_tap1, V, 0))

        feats = {k: [] for k in kernel_sizes}
        for bidx in range(B):                           # B=2 -> unrolled at trace time
            ids_b = ids_ref[bidx]                       # (L+2, 1) int32, boundary = -1
            id0 = ids_b[0:L]                            # tap 0 -> position l-1
            id1 = ids_b[1:L + 1]                        # tap 1 -> position l
            id2 = ids_b[2:L + 2]                        # tap 2 -> position l+1
            id_tap = jnp.where(in_tap2, id2, jnp.where(in_tap1, id1, id0))   # (L, 3V)
            # one-hot im2col slab; sentinel -1 never matches voc -> zero padding rows
            cols1 = jnp.where(id_tap == voc, 1.0, 0.0).astype(jnp.bfloat16)  # (L, 3V)
            # Conv1d(V, 128, 3, padding='same') as a single matmul
            h_b = jnp.dot(cols1, w1, preferred_element_type=jnp.float32) + b1  # (L,128) f32

            for k, wk, bk in zip(kernel_sizes, bf_w, bf_b):
                lout = L - k + 1
                # im2col: lane-concat of 128-aligned shifted windows -> one K=k*128 matmul
                cols = jnp.concatenate(
                    [h_b[t:t + lout, :] for t in range(k)], axis=1
                ).astype(jnp.bfloat16)                                    # (lout, k*128)
                acc = jnp.dot(cols, wk, preferred_element_type=jnp.float32) + bk
                # MaxPool1d over the full valid length, then ReLU
                feat = jnp.maximum(jnp.max(acc, axis=0, keepdims=True), 0.0)  # (1, F)
                feats[k].append(feat)

        # Stack batch rows (sublane concat) -> one (B, F) block per kernel size.
        fks = [jnp.concatenate(feats[k], axis=0) for k in kernel_sizes]

        # Dropout(p=0.5) on the concatenated features: identity at inference.
        # Bottleneck MLP layer 0: split weight rows per kernel-size block, so the
        # concatenated (B, nK*F) feature vector never has to be materialized.
        w0_ref, b0_ref = mlp_refs[0]
        z = b0_ref[...]
        for j, fk in enumerate(fks):
            z = z + jnp.dot(fk.astype(jnp.bfloat16),
                            w0_ref[j * nb_filters:(j + 1) * nb_filters, :],
                            preferred_element_type=jnp.float32)
        # Remaining bottleneck layers: Dropout(p=0) + ReLU between layers.
        for i in range(1, n_mlp):
            z = jnp.maximum(z, 0.0)
            wi_ref, bi_ref = mlp_refs[i]
            z = jnp.dot(z.astype(jnp.bfloat16), wi_ref[...],
                        preferred_element_type=jnp.float32) + bi_ref[...]

        # forward(): relu -> l2 -> relu -> classifier
        z = jnp.maximum(z, 0.0)
        z = jnp.dot(z.astype(jnp.bfloat16), l2w_ref[...],
                    preferred_element_type=jnp.float32) + l2b_ref[...]
        z = jnp.maximum(z, 0.0)
        logits = jnp.dot(z.astype(jnp.bfloat16), clsw_ref[...],
                         preferred_element_type=jnp.float32) + clsb_ref[...]
        o_ref[...] = logits

    return kernel


# ---------------------------------------------------------------------------
# Parameters (deterministic, synthetic init — shapes match the PyTorch module).
# Weights stored bf16 (f32 accumulation in-kernel), biases f32.
# ---------------------------------------------------------------------------

def init_params(key):
    params = {}
    keys = iter(jax.random.split(key, 32))
    # conv1 = Conv1d(V, 128, 3): PyTorch (128, V, 3) stored as (3, V, 128) -> flat (3V, 128)
    w1 = 0.1 * jax.random.normal(next(keys), (3, VOCAB_SIZE, CONV1_CH), jnp.float32)
    params["conv1_w"] = w1.reshape(3 * VOCAB_SIZE, CONV1_CH).astype(jnp.bfloat16)
    params["conv1_b"] = 0.01 * jax.random.normal(next(keys), (1, CONV1_CH), jnp.float32)
    # BaseFilter convs: xavier_normal weight, zero bias (conv1d_xiaver_init)
    for ks in KERNEL_SIZES:
        fan_in, fan_out = CONV1_CH * ks, NB_FILTERS * ks
        std = (2.0 / (fan_in + fan_out)) ** 0.5
        w = std * jax.random.normal(next(keys), (ks, CONV1_CH, NB_FILTERS), jnp.float32)
        params[f"bf{ks}_w"] = w.reshape(ks * CONV1_CH, NB_FILTERS).astype(jnp.bfloat16)
        params[f"bf{ks}_b"] = jnp.zeros((1, NB_FILTERS), jnp.float32)
    # bottleneck MLP: [F*len(kernel_sizes)] + hidden_dims + [bottleneck_dim]
    dims = [NB_FILTERS * len(KERNEL_SIZES)] + HIDDEN_DIMS + [BOTTLENECK_DIM]
    for i in range(len(dims) - 1):
        std = (2.0 / (dims[i] + dims[i + 1])) ** 0.5
        w = std * jax.random.normal(next(keys), (dims[i], dims[i + 1]), jnp.float32)
        params[f"mlp{i}_w"] = w.astype(jnp.bfloat16)
        params[f"mlp{i}_b"] = jnp.zeros((1, dims[i + 1]), jnp.float32)
    # l2 = Linear(bottleneck_dim, 1024); classifier_layer = Linear(1024, num_classes)
    params["l2_w"] = (0.05 * jax.random.normal(
        next(keys), (BOTTLENECK_DIM, 1024), jnp.float32)).astype(jnp.bfloat16)
    params["l2_b"] = jnp.zeros((1, 1024), jnp.float32)
    params["cls_w"] = (0.05 * jax.random.normal(
        next(keys), (1024, NUM_CLASSES), jnp.float32)).astype(jnp.bfloat16)
    params["cls_b"] = jnp.zeros((1, NUM_CLASSES), jnp.float32)
    return params


# ---------------------------------------------------------------------------
# Forward pass (matches DPGConvSeq.forward with return_embedding=False, eval mode)
# ---------------------------------------------------------------------------

def dpg_conv_seq_forward(params, x_tokens):
    B, L = x_tokens.shape
    n_mlp = len(HIDDEN_DIMS) + 1
    # Pad token ids with a -1 sentinel for the conv1 'same' boundary (8 extra ints;
    # the one-hot / conv padding itself is handled entirely in-kernel).
    ids_pad = jnp.pad(x_tokens.astype(jnp.int32), ((0, 0), (1, 1)), constant_values=-1)
    ids_pad = ids_pad[:, :, None]                       # (B, L+2, 1)

    args = [ids_pad, params["conv1_w"], params["conv1_b"]]
    for ks in KERNEL_SIZES:
        args += [params[f"bf{ks}_w"], params[f"bf{ks}_b"]]
    for i in range(n_mlp):
        args += [params[f"mlp{i}_w"], params[f"mlp{i}_b"]]
    args += [params["l2_w"], params["l2_b"], params["cls_w"], params["cls_b"]]

    kernel = make_fused_kernel(B, L, VOCAB_SIZE, tuple(KERNEL_SIZES), NB_FILTERS, n_mlp)
    # Single pallas_call, no grid: every array is one whole VMEM block (<1 MiB total);
    # only the (B, num_classes) logits are written back to HBM.
    return pl.pallas_call(
        kernel,
        out_shape=jax.ShapeDtypeStruct((B, NUM_CLASSES), jnp.float32),
    )(*args)


if __name__ == "__main__":
    key = jax.random.PRNGKey(0)
    pkey, xkey = jax.random.split(key)
    params = init_params(pkey)
    x = jax.random.randint(xkey, (BATCH, MAX_LEN), 0, VOCAB_SIZE, dtype=jnp.int32)

    fwd = jax.jit(dpg_conv_seq_forward)
    logits = fwd(params, x)
    jax.block_until_ready(logits)
    assert logits.shape == (BATCH, NUM_CLASSES)
    assert bool(jnp.all(jnp.isfinite(logits)))
    print("KERNEL_OK")
</pallas_src>

<mosaic_0001>
module attributes {stable_mosaic.version = 11 : i64} {
  func.func @kernel(%arg0: memref<2x34x1xi32, #tpu.memory_space<vmem>>, %arg1: memref<60x128xbf16, #tpu.memory_space<vmem>>, %arg2: memref<1x128xf32, #tpu.memory_space<vmem>>, %arg3: memref<1024x16xbf16, #tpu.memory_space<vmem>>, %arg4: memref<1x16xf32, #tpu.memory_space<vmem>>, %arg5: memref<2048x16xbf16, #tpu.memory_space<vmem>>, %arg6: memref<1x16xf32, #tpu.memory_space<vmem>>, %arg7: memref<32x64xbf16, #tpu.memory_space<vmem>>, %arg8: memref<1x64xf32, #tpu.memory_space<vmem>>, %arg9: memref<64x32xbf16, #tpu.memory_space<vmem>>, %arg10: memref<1x32xf32, #tpu.memory_space<vmem>>, %arg11: memref<32x1024xbf16, #tpu.memory_space<vmem>>, %arg12: memref<1x1024xf32, #tpu.memory_space<vmem>>, %arg13: memref<1024x10xbf16, #tpu.memory_space<vmem>>, %arg14: memref<1x10xf32, #tpu.memory_space<vmem>>, %arg15: memref<2x10xf32, #tpu.memory_space<vmem>>) attributes {dimension_semantics = [], scalar_prefetch = 0 : i64, scratch_operands = 0 : i64, tpu.core_type = #tpu.core_type<tc>} {
    %c0 = arith.constant 0 : index
    %c0_0 = arith.constant 0 : index
    %0 = vector.load %arg1[%c0, %c0_0] : memref<60x128xbf16, #tpu.memory_space<vmem>>, vector<60x128xbf16>
    %c0_1 = arith.constant 0 : index
    %c0_2 = arith.constant 0 : index
    %1 = vector.load %arg2[%c0_1, %c0_2] : memref<1x128xf32, #tpu.memory_space<vmem>>, vector<1x128xf32>
    %c0_3 = arith.constant 0 : index
    %c0_4 = arith.constant 0 : index
    %2 = vector.load %arg3[%c0_3, %c0_4] : memref<1024x16xbf16, #tpu.memory_space<vmem>>, vector<1024x16xbf16>
    %c0_5 = arith.constant 0 : index
    %c0_6 = arith.constant 0 : index
    %3 = vector.load %arg5[%c0_5, %c0_6] : memref<2048x16xbf16, #tpu.memory_space<vmem>>, vector<2048x16xbf16>
    %c0_7 = arith.constant 0 : index
    %c0_8 = arith.constant 0 : index
    %4 = vector.load %arg4[%c0_7, %c0_8] : memref<1x16xf32, #tpu.memory_space<vmem>>, vector<1x16xf32>
    %c0_9 = arith.constant 0 : index
    %c0_10 = arith.constant 0 : index
    %5 = vector.load %arg6[%c0_9, %c0_10] : memref<1x16xf32, #tpu.memory_space<vmem>>, vector<1x16xf32>
    %6 = tpu.iota {dimensions = array<i32: 1>} : vector<32x60xi32>
    %c20_i32 = arith.constant 20 : i32
    %7 = vector.broadcast %c20_i32 : i32 to vector<32x60xi32>
    %8 = arith.cmpi sge, %6, %7 : vector<32x60xi32>
    %c40_i32 = arith.constant 40 : i32
    %9 = vector.broadcast %c40_i32 : i32 to vector<32x60xi32>
    %10 = arith.cmpi sge, %6, %9 : vector<32x60xi32>
    %c20_i32_11 = arith.constant 20 : i32
    %c0_i32 = arith.constant 0 : i32
    %11 = vector.broadcast %c20_i32_11 : i32 to vector<32x60xi32>
    %12 = vector.broadcast %c0_i32 : i32 to vector<32x60xi32>
    %13 = arith.select %8, %11, %12 : vector<32x60xi1>, vector<32x60xi32>
    %c40_i32_12 = arith.constant 40 : i32
    %14 = vector.broadcast %c40_i32_12 : i32 to vector<32x60xi32>
    %15 = arith.select %10, %14, %13 : vector<32x60xi1>, vector<32x60xi32>
    %16 = arith.subi %6, %15 : vector<32x60xi32>
    %c0_13 = arith.constant 0 : index
    %c0_14 = arith.constant 0 : index
    %c0_15 = arith.constant 0 : index
    %17 = vector.load %arg0[%c0_13, %c0_14, %c0_15] : memref<2x34x1xi32, #tpu.memory_space<vmem>>, vector<1x34x1xi32>
    %18 = vector.shape_cast %17 : vector<1x34x1xi32> to vector<34x1xi32>
    %19 = vector.extract_strided_slice %18 {offsets = [0, 0], sizes = [32, 1], strides = [1, 1]} : vector<34x1xi32> to vector<32x1xi32>
    %20 = vector.extract_strided_slice %18 {offsets = [1, 0], sizes = [32, 1], strides = [1, 1]} : vector<34x1xi32> to vector<32x1xi32>
    %21 = vector.extract_strided_slice %18 {offsets = [2, 0], sizes = [32, 1], strides = [1, 1]} : vector<34x1xi32> to vector<32x1xi32>
    %22 = vector.shape_cast %20 : vector<32x1xi32> to vector<32x1xi32>
    %23 = vector.broadcast %22 : vector<32x1xi32> to vector<32x60xi32>
    %24 = vector.shape_cast %19 : vector<32x1xi32> to vector<32x1xi32>
    %25 = vector.broadcast %24 : vector<32x1xi32> to vector<32x60xi32>
    %26 = arith.select %8, %23, %25 : vector<32x60xi1>, vector<32x60xi32>
    %27 = vector.shape_cast %21 : vector<32x1xi32> to vector<32x1xi32>
    %28 = vector.broadcast %27 : vector<32x1xi32> to vector<32x60xi32>
    %29 = arith.select %10, %28, %26 : vector<32x60xi1>, vector<32x60xi32>
    %30 = arith.cmpi eq, %29, %16 : vector<32x60xi32>
    %cst = arith.constant 1.000000e+00 : f32
    %cst_16 = arith.constant 0.000000e+00 : f32
    %31 = vector.broadcast %cst : f32 to vector<32x60xf32>
    %32 = vector.broadcast %cst_16 : f32 to vector<32x60xf32>
    %33 = arith.select %30, %31, %32 : vector<32x60xi1>, vector<32x60xf32>
    %34 = arith.truncf %33 : vector<32x60xf32> to vector<32x60xbf16>
    %cst_17 = arith.constant dense<0.000000e+00> : vector<32x128xf32>
    %35 = tpu.matmul %34, %0, %cst_17 {dimension_numbers = #tpu.dot_dimension_numbers<[1], [0], [0], [1], [0, 0, 1, 1], [], []>} : vector<32x60xbf16>, vector<60x128xbf16>, vector<32x128xf32> -> vector<32x128xf32>
    %36 = vector.broadcast %1 : vector<1x128xf32> to vector<32x128xf32>
    %37 = arith.addf %35, %36 : vector<32x128xf32>
    %38 = vector.extract_strided_slice %37 {offsets = [0, 0], sizes = [25, 128], strides = [1, 1]} : vector<32x128xf32> to vector<25x128xf32>
    %39 = vector.extract_strided_slice %37 {offsets = [1, 0], sizes = [25, 128], strides = [1, 1]} : vector<32x128xf32> to vector<25x128xf32>
    %40 = vector.extract_strided_slice %37 {offsets = [2, 0], sizes = [25, 128], strides = [1, 1]} : vector<32x128xf32> to vector<25x128xf32>
    %41 = vector.extract_strided_slice %37 {offsets = [3, 0], sizes = [25, 128], strides = [1, 1]} : vector<32x128xf32> to vector<25x128xf32>
    %42 = vector.extract_strided_slice %37 {offsets = [4, 0], sizes = [25, 128], strides = [1, 1]} : vector<32x128xf32> to vector<25x128xf32>
    %43 = vector.extract_strided_slice %37 {offsets = [5, 0], sizes = [25, 128], strides = [1, 1]} : vector<32x128xf32> to vector<25x128xf32>
    %44 = vector.extract_strided_slice %37 {offsets = [6, 0], sizes = [25, 128], strides = [1, 1]} : vector<32x128xf32> to vector<25x128xf32>
    %45 = vector.extract_strided_slice %37 {offsets = [7, 0], sizes = [25, 128], strides = [1, 1]} : vector<32x128xf32> to vector<25x128xf32>
    %46 = tpu.concatenate %38, %39, %40, %41, %42, %43, %44, %45 in 1 : vector<25x128xf32>, vector<25x128xf32>, vector<25x128xf32>, vector<25x128xf32>, vector<25x128xf32>, vector<25x128xf32>, vector<25x128xf32>, vector<25x128xf32> -> vector<25x1024xf32>
    %47 = arith.truncf %46 : vector<25x1024xf32> to vector<25x1024xbf16>
    %cst_18 = arith.constant dense<0.000000e+00> : vector<25x16xf32>
    %48 = tpu.matmul %47, %2, %cst_18 {dimension_numbers = #tpu.dot_dimension_numbers<[1], [0], [0], [1], [0, 0, 1, 1], [], []>} : vector<25x1024xbf16>, vector<1024x16xbf16>, vector<25x16xf32> -> vector<25x16xf32>
    %49 = vector.broadcast %4 : vector<1x16xf32> to vector<25x16xf32>
    %50 = arith.addf %48, %49 : vector<25x16xf32>
    %cst_19 = arith.constant dense<0xFF800000> : vector<16xf32>
    %51 = vector.multi_reduction <maximumf>, %50, %cst_19 [0] : vector<25x16xf32> to vector<16xf32>
    %52 = vector.shape_cast %51 : vector<16xf32> to vector<1x16xf32>
    %cst_20 = arith.constant 0.000000e+00 : f32
    %53 = vector.broadcast %cst_20 : f32 to vector<1x16xf32>
    %54 = arith.maximumf %52, %53 : vector<1x16xf32>
    %55 = vector.extract_strided_slice %37 {offsets = [0, 0], sizes = [17, 128], strides = [1, 1]} : vector<32x128xf32> to vector<17x128xf32>
    %56 = vector.extract_strided_slice %37 {offsets = [1, 0], sizes = [17, 128], strides = [1, 1]} : vector<32x128xf32> to vector<17x128xf32>
    %57 = vector.extract_strided_slice %37 {offsets = [2, 0], sizes = [17, 128], strides = [1, 1]} : vector<32x128xf32> to vector<17x128xf32>
    %58 = vector.extract_strided_slice %37 {offsets = [3, 0], sizes = [17, 128], strides = [1, 1]} : vector<32x128xf32> to vector<17x128xf32>
    %59 = vector.extract_strided_slice %37 {offsets = [4, 0], sizes = [17, 128], strides = [1, 1]} : vector<32x128xf32> to vector<17x128xf32>
    %60 = vector.extract_strided_slice %37 {offsets = [5, 0], sizes = [17, 128], strides = [1, 1]} : vector<32x128xf32> to vector<17x128xf32>
    %61 = vector.extract_strided_slice %37 {offsets = [6, 0], sizes = [17, 128], strides = [1, 1]} : vector<32x128xf32> to vector<17x128xf32>
    %62 = vector.extract_strided_slice %37 {offsets = [7, 0], sizes = [17, 128], strides = [1, 1]} : vector<32x128xf32> to vector<17x128xf32>
    %63 = vector.extract_strided_slice %37 {offsets = [8, 0], sizes = [17, 128], strides = [1, 1]} : vector<32x128xf32> to vector<17x128xf32>
    %64 = vector.extract_strided_slice %37 {offsets = [9, 0], sizes = [17, 128], strides = [1, 1]} : vector<32x128xf32> to vector<17x128xf32>
    %65 = vector.extract_strided_slice %37 {offsets = [10, 0], sizes = [17, 128], strides = [1, 1]} : vector<32x128xf32> to vector<17x128xf32>
    %66 = vector.extract_strided_slice %37 {offsets = [11, 0], sizes = [17, 128], strides = [1, 1]} : vector<32x128xf32> to vector<17x128xf32>
    %67 = vector.extract_strided_slice %37 {offsets = [12, 0], sizes = [17, 128], strides = [1, 1]} : vector<32x128xf32> to vector<17x128xf32>
    %68 = vector.extract_strided_slice %37 {offsets = [13, 0], sizes = [17, 128], strides = [1, 1]} : vector<32x128xf32> to vector<17x128xf32>
    %69 = vector.extract_strided_slice %37 {offsets = [14, 0], sizes = [17, 128], strides = [1, 1]} : vector<32x128xf32> to vector<17x128xf32>
    %70 = vector.extract_strided_slice %37 {offsets = [15, 0], sizes = [17, 128], strides = [1, 1]} : vector<32x128xf32> to vector<17x128xf32>
    %71 = tpu.concatenate %55, %56, %57, %58, %59, %60, %61, %62, %63, %64, %65, %66, %67, %68, %69, %70 in 1 : vector<17x128xf32>, vector<17x128xf32>, vector<17x128xf32>, vector<17x128xf32>, vector<17x128xf32>, vector<17x128xf32>, vector<17x128xf32>, vector<17x128xf32>, vector<17x128xf32>, vector<17x128xf32>, vector<17x128xf32>, vector<17x128xf32>, vector<17x128xf32>, vector<17x128xf32>, vector<17x128xf32>, vector<17x128xf32> -> vector<17x2048xf32>
    %72 = arith.truncf %71 : vector<17x2048xf32> to vector<17x2048xbf16>
    %cst_21 = arith.constant dense<0.000000e+00> : vector<17x16xf32>
    %73 = tpu.matmul %72, %3, %cst_21 {dimension_numbers = #tpu.dot_dimension_numbers<[1], [0], [0], [1], [0, 0, 1, 1], [], []>} : vector<17x2048xbf16>, vector<2048x16xbf16>, vector<17x16xf32> -> vector<17x16xf32>
    %74 = vector.broadcast %5 : vector<1x16xf32> to vector<17x16xf32>
    %75 = arith.addf %73, %74 : vector<17x16xf32>
    %cst_22 = arith.constant dense<0xFF800000> : vector<16xf32>
    %76 = vector.multi_reduction <maximumf>, %75, %cst_22 [0] : vector<17x16xf32> to vector<16xf32>
    %77 = vector.shape_cast %76 : vector<16xf32> to vector<1x16xf32>
    %cst_23 = arith.constant 0.000000e+00 : f32
    %78 = vector.broadcast %cst_23 : f32 to vector<1x16xf32>
    %79 = arith.maximumf %77, %78 : vector<1x16xf32>
    %c1 = arith.constant 1 : index
    %c0_24 = arith.constant 0 : index
    %c0_25 = arith.constant 0 : index
    %80 = vector.load %arg0[%c1, %c0_24, %c0_25] : memref<2x34x1xi32, #tpu.memory_space<vmem>>, vector<1x34x1xi32>
    %81 = vector.shape_cast %80 : vector<1x34x1xi32> to vector<34x1xi32>
    %82 = vector.extract_strided_slice %81 {offsets = [0, 0], sizes = [32, 1], strides = [1, 1]} : vector<34x1xi32> to vector<32x1xi32>
    %83 = vector.extract_strided_slice %81 {offsets = [1, 0], sizes = [32, 1], strides = [1, 1]} : vector<34x1xi32> to vector<32x1xi32>
    %84 = vector.extract_strided_slice %81 {offsets = [2, 0], sizes = [32, 1], strides = [1, 1]} : vector<34x1xi32> to vector<32x1xi32>
    %85 = vector.shape_cast %83 : vector<32x1xi32> to vector<32x1xi32>
    %86 = vector.broadcast %85 : vector<32x1xi32> to vector<32x60xi32>
    %87 = vector.shape_cast %82 : vector<32x1xi32> to vector<32x1xi32>
    %88 = vector.broadcast %87 : vector<32x1xi32> to vector<32x60xi32>
    %89 = arith.select %8, %86, %88 : vector<32x60xi1>, vector<32x60xi32>
    %90 = vector.shape_cast %84 : vector<32x1xi32> to vector<32x1xi32>
    %91 = vector.broadcast %90 : vector<32x1xi32> to vector<32x60xi32>
    %92 = arith.select %10, %91, %89 : vector<32x60xi1>, vector<32x60xi32>
    %93 = arith.cmpi eq, %92, %16 : vector<32x60xi32>
    %cst_26 = arith.constant 1.000000e+00 : f32
    %cst_27 = arith.constant 0.000000e+00 : f32
    %94 = vector.broadcast %cst_26 : f32 to vector<32x60xf32>
    %95 = vector.broadcast %cst_27 : f32 to vector<32x60xf32>
    %96 = arith.select %93, %94, %95 : vector<32x60xi1>, vector<32x60xf32>
    %97 = arith.truncf %96 : vector<32x60xf32> to vector<32x60xbf16>
    %cst_28 = arith.constant dense<0.000000e+00> : vector<32x128xf32>
    %98 = tpu.matmul %97, %0, %cst_28 {dimension_numbers = #tpu.dot_dimension_numbers<[1], [0], [0], [1], [0, 0, 1, 1], [], []>} : vector<32x60xbf16>, vector<60x128xbf16>, vector<32x128xf32> -> vector<32x128xf32>
    %99 = vector.broadcast %1 : vector<1x128xf32> to vector<32x128xf32>
    %100 = arith.addf %98, %99 : vector<32x128xf32>
    %101 = vector.extract_strided_slice %100 {offsets = [0, 0], sizes = [25, 128], strides = [1, 1]} : vector<32x128xf32> to vector<25x128xf32>
    %102 = vector.extract_strided_slice %100 {offsets = [1, 0], sizes = [25, 128], strides = [1, 1]} : vector<32x128xf32> to vector<25x128xf32>
    %103 = vector.extract_strided_slice %100 {offsets = [2, 0], sizes = [25, 128], strides = [1, 1]} : vector<32x128xf32> to vector<25x128xf32>
    %104 = vector.extract_strided_slice %100 {offsets = [3, 0], sizes = [25, 128], strides = [1, 1]} : vector<32x128xf32> to vector<25x128xf32>
    %105 = vector.extract_strided_slice %100 {offsets = [4, 0], sizes = [25, 128], strides = [1, 1]} : vector<32x128xf32> to vector<25x128xf32>
    %106 = vector.extract_strided_slice %100 {offsets = [5, 0], sizes = [25, 128], strides = [1, 1]} : vector<32x128xf32> to vector<25x128xf32>
    %107 = vector.extract_strided_slice %100 {offsets = [6, 0], sizes = [25, 128], strides = [1, 1]} : vector<32x128xf32> to vector<25x128xf32>
    %108 = vector.extract_strided_slice %100 {offsets = [7, 0], sizes = [25, 128], strides = [1, 1]} : vector<32x128xf32> to vector<25x128xf32>
    %109 = tpu.concatenate %101, %102, %103, %104, %105, %106, %107, %108 in 1 : vector<25x128xf32>, vector<25x128xf32>, vector<25x128xf32>, vector<25x128xf32>, vector<25x128xf32>, vector<25x128xf32>, vector<25x128xf32>, vector<25x128xf32> -> vector<25x1024xf32>
    %110 = arith.truncf %109 : vector<25x1024xf32> to vector<25x1024xbf16>
    %cst_29 = arith.constant dense<0.000000e+00> : vector<25x16xf32>
    %111 = tpu.matmul %110, %2, %cst_29 {dimension_numbers = #tpu.dot_dimension_numbers<[1], [0], [0], [1], [0, 0, 1, 1], [], []>} : vector<25x1024xbf16>, vector<1024x16xbf16>, vector<25x16xf32> -> vector<25x16xf32>
    %112 = vector.broadcast %4 : vector<1x16xf32> to vector<25x16xf32>
    %113 = arith.addf %111, %112 : vector<25x16xf32>
    %cst_30 = arith.constant dense<0xFF800000> : vector<16xf32>
    %114 = vector.multi_reduction <maximumf>, %113, %cst_30 [0] : vector<25x16xf32> to vector<16xf32>
    %115 = vector.shape_cast %114 : vector<16xf32> to vector<1x16xf32>
    %cst_31 = arith.constant 0.000000e+00 : f32
    %116 = vector.broadcast %cst_31 : f32 to vector<1x16xf32>
    %117 = arith.maximumf %115, %116 : vector<1x16xf32>
    %118 = vector.extract_strided_slice %100 {offsets = [0, 0], sizes = [17, 128], strides = [1, 1]} : vector<32x128xf32> to vector<17x128xf32>
    %119 = vector.extract_strided_slice %100 {offsets = [1, 0], sizes = [17, 128], strides = [1, 1]} : vector<32x128xf32> to vector<17x128xf32>
    %120 = vector.extract_strided_slice %100 {offsets = [2, 0], sizes = [17, 128], strides = [1, 1]} : vector<32x128xf32> to vector<17x128xf32>
    %121 = vector.extract_strided_slice %100 {offsets = [3, 0], sizes = [17, 128], strides = [1, 1]} : vector<32x128xf32> to vector<17x128xf32>
    %122 = vector.extract_strided_slice %100 {offsets = [4, 0], sizes = [17, 128], strides = [1, 1]} : vector<32x128xf32> to vector<17x128xf32>
    %123 = vector.extract_strided_slice %100 {offsets = [5, 0], sizes = [17, 128], strides = [1, 1]} : vector<32x128xf32> to vector<17x128xf32>
    %124 = vector.extract_strided_slice %100 {offsets = [6, 0], sizes = [17, 128], strides = [1, 1]} : vector<32x128xf32> to vector<17x128xf32>
    %125 = vector.extract_strided_slice %100 {offsets = [7, 0], sizes = [17, 128], strides = [1, 1]} : vector<32x128xf32> to vector<17x128xf32>
    %126 = vector.extract_strided_slice %100 {offsets = [8, 0], sizes = [17, 128], strides = [1, 1]} : vector<32x128xf32> to vector<17x128xf32>
    %127 = vector.extract_strided_slice %100 {offsets = [9, 0], sizes = [17, 128], strides = [1, 1]} : vector<32x128xf32> to vector<17x128xf32>
    %128 = vector.extract_strided_slice %100 {offsets = [10, 0], sizes = [17, 128], strides = [1, 1]} : vector<32x128xf32> to vector<17x128xf32>
    %129 = vector.extract_strided_slice %100 {offsets = [11, 0], sizes = [17, 128], strides = [1, 1]} : vector<32x128xf32> to vector<17x128xf32>
    %130 = vector.extract_strided_slice %100 {offsets = [12, 0], sizes = [17, 128], strides = [1, 1]} : vector<32x128xf32> to vector<17x128xf32>
    %131 = vector.extract_strided_slice %100 {offsets = [13, 0], sizes = [17, 128], strides = [1, 1]} : vector<32x128xf32> to vector<17x128xf32>
    %132 = vector.extract_strided_slice %100 {offsets = [14, 0], sizes = [17, 128], strides = [1, 1]} : vector<32x128xf32> to vector<17x128xf32>
    %133 = vector.extract_strided_slice %100 {offsets = [15, 0], sizes = [17, 128], strides = [1, 1]} : vector<32x128xf32> to vector<17x128xf32>
    %134 = tpu.concatenate %118, %119, %120, %121, %122, %123, %124, %125, %126, %127, %128, %129, %130, %131, %132, %133 in 1 : vector<17x128xf32>, vector<17x128xf32>, vector<17x128xf32>, vector<17x128xf32>, vector<17x128xf32>, vector<17x128xf32>, vector<17x128xf32>, vector<17x128xf32>, vector<17x128xf32>, vector<17x128xf32>, vector<17x128xf32>, vector<17x128xf32>, vector<17x128xf32>, vector<17x128xf32>, vector<17x128xf32>, vector<17x128xf32> -> vector<17x2048xf32>
    %135 = arith.truncf %134 : vector<17x2048xf32> to vector<17x2048xbf16>
    %cst_32 = arith.constant dense<0.000000e+00> : vector<17x16xf32>
    %136 = tpu.matmul %135, %3, %cst_32 {dimension_numbers = #tpu.dot_dimension_numbers<[1], [0], [0], [1], [0, 0, 1, 1], [], []>} : vector<17x2048xbf16>, vector<2048x16xbf16>, vector<17x16xf32> -> vector<17x16xf32>
    %137 = vector.broadcast %5 : vector<1x16xf32> to vector<17x16xf32>
    %138 = arith.addf %136, %137 : vector<17x16xf32>
    %cst_33 = arith.constant dense<0xFF800000> : vector<16xf32>
    %139 = vector.multi_reduction <maximumf>, %138, %cst_33 [0] : vector<17x16xf32> to vector<16xf32>
    %140 = vector.shape_cast %139 : vector<16xf32> to vector<1x16xf32>
    %cst_34 = arith.constant 0.000000e+00 : f32
    %141 = vector.broadcast %cst_34 : f32 to vector<1x16xf32>
    %142 = arith.maximumf %140, %141 : vector<1x16xf32>
    %143 = tpu.concatenate %54, %117 in 0 : vector<1x16xf32>, vector<1x16xf32> -> vector<2x16xf32>
    %144 = tpu.concatenate %79, %142 in 0 : vector<1x16xf32>, vector<1x16xf32> -> vector<2x16xf32>
    %c0_35 = arith.constant 0 : index
    %c0_36 = arith.constant 0 : index
    %145 = vector.load %arg8[%c0_35, %c0_36] : memref<1x64xf32, #tpu.memory_space<vmem>>, vector<1x64xf32>
    %146 = arith.truncf %143 : vector<2x16xf32> to vector<2x16xbf16>
    %c0_37 = arith.constant 0 : index
    %c0_38 = arith.constant 0 : index
    %147 = vector.load %arg7[%c0_37, %c0_38] : memref<32x64xbf16, #tpu.memory_space<vmem>>, vector<16x64xbf16>
    %cst_39 = arith.constant dense<0.000000e+00> : vector<2x64xf32>
    %148 = tpu.matmul %146, %147, %cst_39 {dimension_numbers = #tpu.dot_dimension_numbers<[1], [0], [0], [1], [0, 0, 1, 1], [], []>} : vector<2x16xbf16>, vector<16x64xbf16>, vector<2x64xf32> -> vector<2x64xf32>
    %149 = vector.broadcast %145 : vector<1x64xf32> to vector<2x64xf32>
    %150 = arith.addf %149, %148 : vector<2x64xf32>
    %151 = arith.truncf %144 : vector<2x16xf32> to vector<2x16xbf16>
    %c16 = arith.constant 16 : index
    %c0_40 = arith.constant 0 : index
    %152 = vector.load %arg7[%c16, %c0_40] : memref<32x64xbf16, #tpu.memory_space<vmem>>, vector<16x64xbf16>
    %cst_41 = arith.constant dense<0.000000e+00> : vector<2x64xf32>
    %153 = tpu.matmul %151, %152, %cst_41 {dimension_numbers = #tpu.dot_dimension_numbers<[1], [0], [0], [1], [0, 0, 1, 1], [], []>} : vector<2x16xbf16>, vector<16x64xbf16>, vector<2x64xf32> -> vector<2x64xf32>
    %154 = arith.addf %150, %153 : vector<2x64xf32>
    %cst_42 = arith.constant 0.000000e+00 : f32
    %155 = vector.broadcast %cst_42 : f32 to vector<2x64xf32>
    %156 = arith.maximumf %154, %155 : vector<2x64xf32>
    %157 = arith.truncf %156 : vector<2x64xf32> to vector<2x64xbf16>
    %c0_43 = arith.constant 0 : index
    %c0_44 = arith.constant 0 : index
    %158 = vector.load %arg9[%c0_43, %c0_44] : memref<64x32xbf16, #tpu.memory_space<vmem>>, vector<64x32xbf16>
    %cst_45 = arith.constant dense<0.000000e+00> : vector<2x32xf32>
    %159 = tpu.matmul %157, %158, %cst_45 {dimension_numbers = #tpu.dot_dimension_numbers<[1], [0], [0], [1], [0, 0, 1, 1], [], []>} : vector<2x64xbf16>, vector<64x32xbf16>, vector<2x32xf32> -> vector<2x32xf32>
    %c0_46 = arith.constant 0 : index
    %c0_47 = arith.constant 0 : index
    %160 = vector.load %arg10[%c0_46, %c0_47] : memref<1x32xf32, #tpu.memory_space<vmem>>, vector<1x32xf32>
    %161 = vector.broadcast %160 : vector<1x32xf32> to vector<2x32xf32>
    %162 = arith.addf %159, %161 : vector<2x32xf32>
    %cst_48 = arith.constant 0.000000e+00 : f32
    %163 = vector.broadcast %cst_48 : f32 to vector<2x32xf32>
    %164 = arith.maximumf %162, %163 : vector<2x32xf32>
    %165 = arith.truncf %164 : vector<2x32xf32> to vector<2x32xbf16>
    %c0_49 = arith.constant 0 : index
    %c0_50 = arith.constant 0 : index
    %166 = vector.load %arg11[%c0_49, %c0_50] : memref<32x1024xbf16, #tpu.memory_space<vmem>>, vector<32x1024xbf16>
    %cst_51 = arith.constant dense<0.000000e+00> : vector<2x1024xf32>
    %167 = tpu.matmul %165, %166, %cst_51 {dimension_numbers = #tpu.dot_dimension_numbers<[1], [0], [0], [1], [0, 0, 1, 1], [], []>} : vector<2x32xbf16>, vector<32x1024xbf16>, vector<2x1024xf32> -> vector<2x1024xf32>
    %c0_52 = arith.constant 0 : index
    %c0_53 = arith.constant 0 : index
    %168 = vector.load %arg12[%c0_52, %c0_53] : memref<1x1024xf32, #tpu.memory_space<vmem>>, vector<1x1024xf32>
    %169 = vector.broadcast %168 : vector<1x1024xf32> to vector<2x1024xf32>
    %170 = arith.addf %167, %169 : vector<2x1024xf32>
    %cst_54 = arith.constant 0.000000e+00 : f32
    %171 = vector.broadcast %cst_54 : f32 to vector<2x1024xf32>
    %172 = arith.maximumf %170, %171 : vector<2x1024xf32>
    %173 = arith.truncf %172 : vector<2x1024xf32> to vector<2x1024xbf16>
    %c0_55 = arith.constant 0 : index
    %c0_56 = arith.constant 0 : index
    %174 = vector.load %arg13[%c0_55, %c0_56] : memref<1024x10xbf16, #tpu.memory_space<vmem>>, vector<1024x10xbf16>
    %cst_57 = arith.constant dense<0.000000e+00> : vector<2x10xf32>
    %175 = tpu.matmul %173, %174, %cst_57 {dimension_numbers = #tpu.dot_dimension_numbers<[1], [0], [0], [1], [0, 0, 1, 1], [], []>} : vector<2x1024xbf16>, vector<1024x10xbf16>, vector<2x10xf32> -> vector<2x10xf32>
    %c0_58 = arith.constant 0 : index
    %c0_59 = arith.constant 0 : index
    %176 = vector.load %arg14[%c0_58, %c0_59] : memref<1x10xf32, #tpu.memory_space<vmem>>, vector<1x10xf32>
    %177 = vector.broadcast %176 : vector<1x10xf32> to vector<2x10xf32>
    %178 = arith.addf %175, %177 : vector<2x10xf32>
    %c0_60 = arith.constant 0 : index
    %c0_61 = arith.constant 0 : index
    %179 = vector.load %arg15[%c0_60, %c0_61] : memref<2x10xf32, #tpu.memory_space<vmem>>, vector<2x10xf32>
    tpu.vector_store %arg15[%c0_60, %c0_61], %178 {strides = array<i32>} : memref<2x10xf32, #tpu.memory_space<vmem>>, vector<2x10xf32>,
    return
  }
}

</mosaic_0001>

<llo_original>
// kernel: dpg_conv_seq_forward.1
$region0: #{dpg_conv_seq_forward.1}
  #allocation0 [shape = 'u32[]', space=smem, size = 0x4, offset = 0x4, fixed_abs, tag = 'smem constant byte address 0x4 - core index']
  #allocation1 [shape = 'u32[144,128]{1,0:T(1,128)}', space=vmem, size = 0x12000, scoped, tag = 'internal scratch']
  %s0 = inlined_call_operand.vmem [shape: s32[2,34,1], index: 0, kind: input, shape index: {}]
  %s1 = inlined_call_operand.vmem [shape: bf16[60,128], index: 1, kind: input, shape index: {}]
  %s2 = inlined_call_operand.vmem [shape: f32[1,128], index: 2, kind: input, shape index: {}]
  %s3 = inlined_call_operand.vmem [shape: bf16[1024,16], index: 3, kind: input, shape index: {}]
  %s4 = inlined_call_operand.vmem [shape: f32[1,16], index: 4, kind: input, shape index: {}]
  %s5 = inlined_call_operand.vmem [shape: bf16[2048,16], index: 5, kind: input, shape index: {}]
  %s6 = inlined_call_operand.vmem [shape: f32[1,16], index: 6, kind: input, shape index: {}]
  %s7 = inlined_call_operand.vmem [shape: bf16[32,64], index: 7, kind: input, shape index: {}]
  %s8 = inlined_call_operand.vmem [shape: f32[1,64], index: 8, kind: input, shape index: {}]
  %s9 = inlined_call_operand.vmem [shape: bf16[64,32], index: 9, kind: input, shape index: {}]
  %s10 = inlined_call_operand.vmem [shape: f32[1,32], index: 10, kind: input, shape index: {}]
  %s11 = inlined_call_operand.vmem [shape: bf16[32,1024], index: 11, kind: input, shape index: {}]
  %s12 = inlined_call_operand.vmem [shape: f32[1,1024], index: 12, kind: input, shape index: {}]
  %s13 = inlined_call_operand.vmem [shape: bf16[1024,10], index: 13, kind: input, shape index: {}]
  %s14 = inlined_call_operand.vmem [shape: f32[1,10], index: 14, kind: input, shape index: {}]
  %s15 = inlined_call_operand.hbm [shape: f32[2,10], index: 15, kind: output, shape index: {}]
  %s16 = sld [smem:[#allocation0]]
  $region70: #{dpg_conv_seq_forward.1} parent=0
    _
  %s18 = ssub.s32 1, %s16
  %s19 = scalar_select 0, %s18, %s16
  $region1: #{dpg_conv_seq_forward.1} parent=0
    #allocation2 [shape = 'u8[1024]{0}', space=vmem, size = 0x400, scoped, tag = 'output window, operand 0, single buffered']
    #allocation3 [shape = 's32[1]{0}', space=sflag, size = 0x4, scoped, tag = 'scoped memory for dpg_conv_seq_forward.1']
    %20 = vsyncpa [#allocation3], 0
    // Predicated region
    $region2: #{dpg_conv_seq_forward.1} parent=1 // pred_check
      _
    $region3: #{dpg_conv_seq_forward.1} parent=1 // pred_check_branch
      %22 = sbr.rel (0) target = $region5
    $region4: #{dpg_conv_seq_forward.1} parent=1 // pred_region
      _
    $region5: #{dpg_conv_seq_forward.1} parent=1 // pred_fallthru
      _
    // Predicated region
    $region6: #{dpg_conv_seq_forward.1} parent=1 // pred_check
      _
    $region7: #{dpg_conv_seq_forward.1} parent=1 // pred_check_branch
      %24 = sbr.rel (0) target = $region9
    $region8: #{dpg_conv_seq_forward.1} parent=1 // pred_region
      _
    $region9: #{dpg_conv_seq_forward.1} parent=1 // pred_fallthru
      _
    // Predicated region
    $region10: #{dpg_conv_seq_forward.1} parent=1 // pred_check
      _
    $region11: #{dpg_conv_seq_forward.1} parent=1 // pred_check_branch
      %26 = sbr.rel (0) target = $region13
    $region12: #{dpg_conv_seq_forward.1} parent=1 // pred_region
      _
    $region13: #{dpg_conv_seq_forward.1} parent=1 // pred_fallthru
      _
    // Predicated region
    $region14: #{dpg_conv_seq_forward.1} parent=1 // pred_check
      _
    $region15: #{dpg_conv_seq_forward.1} parent=1 // pred_check_branch
      %28 = sbr.rel (0) target = $region17
    $region16: #{dpg_conv_seq_forward.1} parent=1 // pred_region
      _
    $region17: #{dpg_conv_seq_forward.1} parent=1 // pred_fallthru
      _
    // Predicated region
    $region18: #{dpg_conv_seq_forward.1} parent=1 // pred_check
      _
    $region19: #{dpg_conv_seq_forward.1} parent=1 // pred_check_branch
      %30 = sbr.rel (0) target = $region21
    $region20: #{dpg_conv_seq_forward.1} parent=1 // pred_region
      _
    $region21: #{dpg_conv_seq_forward.1} parent=1 // pred_fallthru
      _
    // Predicated region
    $region22: #{dpg_conv_seq_forward.1} parent=1 // pred_check
      _
    $region23: #{dpg_conv_seq_forward.1} parent=1 // pred_check_branch
      %32 = sbr.rel (0) target = $region25
    $region24: #{dpg_conv_seq_forward.1} parent=1 // pred_region
      _
    $region25: #{dpg_conv_seq_forward.1} parent=1 // pred_fallthru
      _
    // Predicated region
    $region26: #{dpg_conv_seq_forward.1} parent=1 // pred_check
      _
    $region27: #{dpg_conv_seq_forward.1} parent=1 // pred_check_branch
      %34 = sbr.rel (0) target = $region29
    $region28: #{dpg_conv_seq_forward.1} parent=1 // pred_region
      _
    $region29: #{dpg_conv_seq_forward.1} parent=1 // pred_fallthru
      _
    // Predicated region
    $region30: #{dpg_conv_seq_forward.1} parent=1 // pred_check
      _
    $region31: #{dpg_conv_seq_forward.1} parent=1 // pred_check_branch
      %36 = sbr.rel (0) target = $region33
    $region32: #{dpg_conv_seq_forward.1} parent=1 // pred_region
      _
    $region33: #{dpg_conv_seq_forward.1} parent=1 // pred_fallthru
      _
    // Predicated region
    $region34: #{dpg_conv_seq_forward.1} parent=1 // pred_check
      _
    $region35: #{dpg_conv_seq_forward.1} parent=1 // pred_check_branch
      %38 = sbr.rel (0) target = $region37
    $region36: #{dpg_conv_seq_forward.1} parent=1 // pred_region
      _
    $region37: #{dpg_conv_seq_forward.1} parent=1 // pred_fallthru
      _
    // Predicated region
    $region38: #{dpg_conv_seq_forward.1} parent=1 // pred_check
      _
    $region39: #{dpg_conv_seq_forward.1} parent=1 // pred_check_branch
      %40 = sbr.rel (0) target = $region41
    $region40: #{dpg_conv_seq_forward.1} parent=1 // pred_region
      _
    $region41: #{dpg_conv_seq_forward.1} parent=1 // pred_fallthru
      _
    // Predicated region
    $region42: #{dpg_conv_seq_forward.1} parent=1 // pred_check
      _
    $region43: #{dpg_conv_seq_forward.1} parent=1 // pred_check_branch
      %42 = sbr.rel (0) target = $region45
    $region44: #{dpg_conv_seq_forward.1} parent=1 // pred_region
      _
    $region45: #{dpg_conv_seq_forward.1} parent=1 // pred_fallthru
      _
    // Predicated region
    $region46: #{dpg_conv_seq_forward.1} parent=1 // pred_check
      _
    $region47: #{dpg_conv_seq_forward.1} parent=1 // pred_check_branch
      %44 = sbr.rel (0) target = $region49
    $region48: #{dpg_conv_seq_forward.1} parent=1 // pred_region
      _
    $region49: #{dpg_conv_seq_forward.1} parent=1 // pred_fallthru
      _
    // Predicated region
    $region50: #{dpg_conv_seq_forward.1} parent=1 // pred_check
      _
    $region51: #{dpg_conv_seq_forward.1} parent=1 // pred_check_branch
      %46 = sbr.rel (0) target = $region53
    $region52: #{dpg_conv_seq_forward.1} parent=1 // pred_region
      _
    $region53: #{dpg_conv_seq_forward.1} parent=1 // pred_fallthru
      _
    // Predicated region
    $region54: #{dpg_conv_seq_forward.1} parent=1 // pred_check
      _
    $region55: #{dpg_conv_seq_forward.1} parent=1 // pred_check_branch
      %48 = sbr.rel (0) target = $region57
    $region56: #{dpg_conv_seq_forward.1} parent=1 // pred_region
      _
    $region57: #{dpg_conv_seq_forward.1} parent=1 // pred_fallthru
      _
    // Predicated region
    $region58: #{dpg_conv_seq_forward.1} parent=1 // pred_check
      _
    $region59: #{dpg_conv_seq_forward.1} parent=1 // pred_check_branch
      %50 = sbr.rel (0) target = $region61
    $region60: #{dpg_conv_seq_forward.1} parent=1 // pred_region
      _
    $region61: #{dpg_conv_seq_forward.1} parent=1 // pred_fallthru
      _
    %v52 = vld [vmem:[%s1] sm:$0xf]
    %v53 = vld [vmem:[%s1 + $0x4] sm:$0xf]
    %v54 = vld [vmem:[%s1 + $0x8] sm:$0xf]
    %v55 = vld [vmem:[%s1 + $0xc] sm:$0xf]
    %v56 = vld [vmem:[%s1 + $0x10] sm:$0xf]
    %v57 = vld [vmem:[%s1 + $0x14] sm:$0xf]
    %v58 = vld [vmem:[%s1 + $0x18] sm:$0xf]
    %v59 = vld [vmem:[%s1 + $0x1c] sm:$0x3]
    %v60 = vld [vmem:[%s2] sm:$0x1]
    %v61 = vld [vmem:[%s3] sm:$0xf]
    %v62 = vld [vmem:[%s3 + $0x4] sm:$0xf]
    %v63 = vld [vmem:[%s3 + $0x8] sm:$0xf]
    %v64 = vld [vmem:[%s3 + $0xc] sm:$0xf]
    %v65 = vld [vmem:[%s3 + $0x10] sm:$0xf]
    %v66 = vld [vmem:[%s3 + $0x14] sm:$0xf]
    %v67 = vld [vmem:[%s3 + $0x18] sm:$0xf]
    %v68 = vld [vmem:[%s3 + $0x1c] sm:$0xf]
    %v69 = vld [vmem:[%s3 + $0x20] sm:$0xf]
    %v70 = vld [vmem:[%s3 + $0x24] sm:$0xf]
    %v71 = vld [vmem:[%s3 + $0x28] sm:$0xf]
    %v72 = vld [vmem:[%s3 + $0x2c] sm:$0xf]
    %v73 = vld [vmem:[%s3 + $0x30] sm:$0xf]
    %v74 = vld [vmem:[%s3 + $0x34] sm:$0xf]
    %v75 = vld [vmem:[%s3 + $0x38] sm:$0xf]
    %v76 = vld [vmem:[%s3 + $0x3c] sm:$0xf]
    %v77 = vld [vmem:[%s3 + $0x40] sm:$0xf]
    %v78 = vld [vmem:[%s3 + $0x44] sm:$0xf]
    %v79 = vld [vmem:[%s3 + $0x48] sm:$0xf]
    %v80 = vld [vmem:[%s3 + $0x4c] sm:$0xf]
    %v81 = vld [vmem:[%s3 + $0x50] sm:$0xf]
    %v82 = vld [vmem:[%s3 + $0x54] sm:$0xf]
    %v83 = vld [vmem:[%s3 + $0x58] sm:$0xf]
    %v84 = vld [vmem:[%s3 + $0x5c] sm:$0xf]
    %v85 = vld [vmem:[%s3 + $0x60] sm:$0xf]
    %v86 = vld [vmem:[%s3 + $0x64] sm:$0xf]
    %v87 = vld [vmem:[%s3 + $0x68] sm:$0xf]
    %v88 = vld [vmem:[%s3 + $0x6c] sm:$0xf]
    %v89 = vld [vmem:[%s3 + $0x70] sm:$0xf]
    %v90 = vld [vmem:[%s3 + $0x74] sm:$0xf]
    %v91 = vld [vmem:[%s3 + $0x78] sm:$0xf]
    %v92 = vld [vmem:[%s3 + $0x7c] sm:$0xf]
    %v93 = vld [vmem:[%s3 + $0x80] sm:$0xf]
    %v94 = vld [vmem:[%s3 + $0x84] sm:$0xf]
    %v95 = vld [vmem:[%s3 + $0x88] sm:$0xf]
    %v96 = vld [vmem:[%s3 + $0x8c] sm:$0xf]
    %v97 = vld [vmem:[%s3 + $0x90] sm:$0xf]
    %v98 = vld [vmem:[%s3 + $0x94] sm:$0xf]
    %v99 = vld [vmem:[%s3 + $0x98] sm:$0xf]
    %v100 = vld [vmem:[%s3 + $0x9c] sm:$0xf]
    %v101 = vld [vmem:[%s3 + $0xa0] sm:$0xf]
    %v102 = vld [vmem:[%s3 + $0xa4] sm:$0xf]
    %v103 = vld [vmem:[%s3 + $0xa8] sm:$0xf]
    %v104 = vld [vmem:[%s3 + $0xac] sm:$0xf]
    %v105 = vld [vmem:[%s3 + $0xb0] sm:$0xf]
    %v106 = vld [vmem:[%s3 + $0xb4] sm:$0xf]
    %v107 = vld [vmem:[%s3 + $0xb8] sm:$0xf]
    %v108 = vld [vmem:[%s3 + $0xbc] sm:$0xf]
    %v109 = vld [vmem:[%s3 + $0xc0] sm:$0xf]
    %v110 = vld [vmem:[%s3 + $0xc4] sm:$0xf]
    %v111 = vld [vmem:[%s3 + $0xc8] sm:$0xf]
    %v112 = vld [vmem:[%s3 + $0xcc] sm:$0xf]
    %v113 = vld [vmem:[%s3 + $0xd0] sm:$0xf]
    %v114 = vld [vmem:[%s3 + $0xd4] sm:$0xf]
    %v115 = vld [vmem:[%s3 + $0xd8] sm:$0xf]
    %v116 = vld [vmem:[%s3 + $0xdc] sm:$0xf]
    %v117 = vld [vmem:[%s3 + $0xe0] sm:$0xf]
    %v118 = vld [vmem:[%s3 + $0xe4] sm:$0xf]
    %v119 = vld [vmem:[%s3 + $0xe8] sm:$0xf]
    %v120 = vld [vmem:[%s3 + $0xec] sm:$0xf]
    %v121 = vld [vmem:[%s3 + $0xf0] sm:$0xf]
    %v122 = vld [vmem:[%s3 + $0xf4] sm:$0xf]
    %v123 = vld [vmem:[%s3 + $0xf8] sm:$0xf]
    %v124 = vld [vmem:[%s3 + $0xfc] sm:$0xf]
    %v125 = vld [vmem:[%s3 + $0x100] sm:$0xf]
    %v126 = vld [vmem:[%s3 + $0x104] sm:$0xf]
    %v127 = vld [vmem:[%s3 + $0x108] sm:$0xf]
    %v128 = vld [vmem:[%s3 + $0x10c] sm:$0xf]
    %v129 = vld [vmem:[%s3 + $0x110] sm:$0xf]
    %v130 = vld [vmem:[%s3 + $0x114] sm:$0xf]
    %v131 = vld [vmem:[%s3 + $0x118] sm:$0xf]
    %v132 = vld [vmem:[%s3 + $0x11c] sm:$0xf]
    %v133 = vld [vmem:[%s3 + $0x120] sm:$0xf]
    %v134 = vld [vmem:[%s3 + $0x124] sm:$0xf]
    %v135 = vld [vmem:[%s3 + $0x128] sm:$0xf]
    %v136 = vld [vmem:[%s3 + $0x12c] sm:$0xf]
    %v137 = vld [vmem:[%s3 + $0x130] sm:$0xf]
    %v138 = vld [vmem:[%s3 + $0x134] sm:$0xf]
    %v139 = vld [vmem:[%s3 + $0x138] sm:$0xf]
    %v140 = vld [vmem:[%s3 + $0x13c] sm:$0xf]
    %v141 = vld [vmem:[%s3 + $0x140] sm:$0xf]
    %v142 = vld [vmem:[%s3 + $0x144] sm:$0xf]
    %v143 = vld [vmem:[%s3 + $0x148] sm:$0xf]
    %v144 = vld [vmem:[%s3 + $0x14c] sm:$0xf]
    %v145 = vld [vmem:[%s3 + $0x150] sm:$0xf]
    %v146 = vld [vmem:[%s3 + $0x154] sm:$0xf]
    %v147 = vld [vmem:[%s3 + $0x158] sm:$0xf]
    %v148 = vld [vmem:[%s3 + $0x15c] sm:$0xf]
    %v149 = vld [vmem:[%s3 + $0x160] sm:$0xf]
    %v150 = vld [vmem:[%s3 + $0x164] sm:$0xf]
    %v151 = vld [vmem:[%s3 + $0x168] sm:$0xf]
    %v152 = vld [vmem:[%s3 + $0x16c] sm:$0xf]
    %v153 = vld [vmem:[%s3 + $0x170] sm:$0xf]
    %v154 = vld [vmem:[%s3 + $0x174] sm:$0xf]
    %v155 = vld [vmem:[%s3 + $0x178] sm:$0xf]
    %v156 = vld [vmem:[%s3 + $0x17c] sm:$0xf]
    %v157 = vld [vmem:[%s3 + $0x180] sm:$0xf]
    %v158 = vld [vmem:[%s3 + $0x184] sm:$0xf]
    %v159 = vld [vmem:[%s3 + $0x188] sm:$0xf]
    %v160 = vld [vmem:[%s3 + $0x18c] sm:$0xf]
    %v161 = vld [vmem:[%s3 + $0x190] sm:$0xf]
    %v162 = vld [vmem:[%s3 + $0x194] sm:$0xf]
    %v163 = vld [vmem:[%s3 + $0x198] sm:$0xf]
    %v164 = vld [vmem:[%s3 + $0x19c] sm:$0xf]
    %v165 = vld [vmem:[%s3 + $0x1a0] sm:$0xf]
    %v166 = vld [vmem:[%s3 + $0x1a4] sm:$0xf]
    %v167 = vld [vmem:[%s3 + $0x1a8] sm:$0xf]
    %v168 = vld [vmem:[%s3 + $0x1ac] sm:$0xf]
    %v169 = vld [vmem:[%s3 + $0x1b0] sm:$0xf]
    %v170 = vld [vmem:[%s3 + $0x1b4] sm:$0xf]
    %v171 = vld [vmem:[%s3 + $0x1b8] sm:$0xf]
    %v172 = vld [vmem:[%s3 + $0x1bc] sm:$0xf]
    %v173 = vld [vmem:[%s3 + $0x1c0] sm:$0xf]
    %v174 = vld [vmem:[%s3 + $0x1c4] sm:$0xf]
    %v175 = vld [vmem:[%s3 + $0x1c8] sm:$0xf]
    %v176 = vld [vmem:[%s3 + $0x1cc] sm:$0xf]
    %v177 = vld [vmem:[%s3 + $0x1d0] sm:$0xf]
    %v178 = vld [vmem:[%s3 + $0x1d4] sm:$0xf]
    %v179 = vld [vmem:[%s3 + $0x1d8] sm:$0xf]
    %v180 = vld [vmem:[%s3 + $0x1dc] sm:$0xf]
    %v181 = vld [vmem:[%s3 + $0x1e0] sm:$0xf]
    %v182 = vld [vmem:[%s3 + $0x1e4] sm:$0xf]
    %v183 = vld [vmem:[%s3 + $0x1e8] sm:$0xf]
    %v184 = vld [vmem:[%s3 + $0x1ec] sm:$0xf]
    %v185 = vld [vmem:[%s3 + $0x1f0] sm:$0xf]
    %v186 = vld [vmem:[%s3 + $0x1f4] sm:$0xf]
    %v187 = vld [vmem:[%s3 + $0x1f8] sm:$0xf]
    %v188 = vld [vmem:[%s3 + $0x1fc] sm:$0xf]
    %v189 = vld [vmem:[%s5] sm:$0xf]
    %v190 = vld [vmem:[%s5 + $0x4] sm:$0xf]
    %v191 = vld [vmem:[%s5 + $0x8] sm:$0xf]
    %v192 = vld [vmem:[%s5 + $0xc] sm:$0xf]
    %v193 = vld [vmem:[%s5 + $0x10] sm:$0xf]
    %v194 = vld [vmem:[%s5 + $0x14] sm:$0xf]
    %v195 = vld [vmem:[%s5 + $0x18] sm:$0xf]
    %v196 = vld [vmem:[%s5 + $0x1c] sm:$0xf]
    %v197 = vld [vmem:[%s5 + $0x20] sm:$0xf]
    %v198 = vld [vmem:[%s5 + $0x24] sm:$0xf]
    %v199 = vld [vmem:[%s5 + $0x28] sm:$0xf]
    %v200 = vld [vmem:[%s5 + $0x2c] sm:$0xf]
    %v201 = vld [vmem:[%s5 + $0x30] sm:$0xf]
    %v202 = vld [vmem:[%s5 + $0x34] sm:$0xf]
    %v203 = vld [vmem:[%s5 + $0x38] sm:$0xf]
    %v204 = vld [vmem:[%s5 + $0x3c] sm:$0xf]
    %v205 = vld [vmem:[%s5 + $0x40] sm:$0xf]
    %v206 = vld [vmem:[%s5 + $0x44] sm:$0xf]
    %v207 = vld [vmem:[%s5 + $0x48] sm:$0xf]
    %v208 = vld [vmem:[%s5 + $0x4c] sm:$0xf]
    %v209 = vld [vmem:[%s5 + $0x50] sm:$0xf]
    %v210 = vld [vmem:[%s5 + $0x54] sm:$0xf]
    %v211 = vld [vmem:[%s5 + $0x58] sm:$0xf]
    %v212 = vld [vmem:[%s5 + $0x5c] sm:$0xf]
    %v213 = vld [vmem:[%s5 + $0x60] sm:$0xf]
    %v214 = vld [vmem:[%s5 + $0x64] sm:$0xf]
    %v215 = vld [vmem:[%s5 + $0x68] sm:$0xf]
    %v216 = vld [vmem:[%s5 + $0x6c] sm:$0xf]
    %v217 = vld [vmem:[%s5 + $0x70] sm:$0xf]
    %v218 = vld [vmem:[%s5 + $0x74] sm:$0xf]
    %v219 = vld [vmem:[%s5 + $0x78] sm:$0xf]
    %v220 = vld [vmem:[%s5 + $0x7c] sm:$0xf]
    %v221 = vld [vmem:[%s5 + $0x80] sm:$0xf]
    %v222 = vld [vmem:[%s5 + $0x84] sm:$0xf]
    %v223 = vld [vmem:[%s5 + $0x88] sm:$0xf]
    %v224 = vld [vmem:[%s5 + $0x8c] sm:$0xf]
    %v225 = vld [vmem:[%s5 + $0x90] sm:$0xf]
    %v226 = vld [vmem:[%s5 + $0x94] sm:$0xf]
    %v227 = vld [vmem:[%s5 + $0x98] sm:$0xf]
    %v228 = vld [vmem:[%s5 + $0x9c] sm:$0xf]
    %v229 = vld [vmem:[%s5 + $0xa0] sm:$0xf]
    %v230 = vld [vmem:[%s5 + $0xa4] sm:$0xf]
    %v231 = vld [vmem:[%s5 + $0xa8] sm:$0xf]
    %v232 = vld [vmem:[%s5 + $0xac] sm:$0xf]
    %v233 = vld [vmem:[%s5 + $0xb0] sm:$0xf]
    %v234 = vld [vmem:[%s5 + $0xb4] sm:$0xf]
    %v235 = vld [vmem:[%s5 + $0xb8] sm:$0xf]
    %v236 = vld [vmem:[%s5 + $0xbc] sm:$0xf]
    %v237 = vld [vmem:[%s5 + $0xc0] sm:$0xf]
    %v238 = vld [vmem:[%s5 + $0xc4] sm:$0xf]
    %v239 = vld [vmem:[%s5 + $0xc8] sm:$0xf]
    %v240 = vld [vmem:[%s5 + $0xcc] sm:$0xf]
    %v241 = vld [vmem:[%s5 + $0xd0] sm:$0xf]
    %v242 = vld [vmem:[%s5 + $0xd4] sm:$0xf]
    %v243 = vld [vmem:[%s5 + $0xd8] sm:$0xf]
    %v244 = vld [vmem:[%s5 + $0xdc] sm:$0xf]
    %v245 = vld [vmem:[%s5 + $0xe0] sm:$0xf]
    %v246 = vld [vmem:[%s5 + $0xe4] sm:$0xf]
    %v247 = vld [vmem:[%s5 + $0xe8] sm:$0xf]
    %v248 = vld [vmem:[%s5 + $0xec] sm:$0xf]
    %v249 = vld [vmem:[%s5 + $0xf0] sm:$0xf]
    %v250 = vld [vmem:[%s5 + $0xf4] sm:$0xf]
    %v251 = vld [vmem:[%s5 + $0xf8] sm:$0xf]
    %v252 = vld [vmem:[%s5 + $0xfc] sm:$0xf]
    %v253 = vld [vmem:[%s5 + $0x100] sm:$0xf]
    %v254 = vld [vmem:[%s5 + $0x104] sm:$0xf]
    %v255 = vld [vmem:[%s5 + $0x108] sm:$0xf]
    %v256 = vld [vmem:[%s5 + $0x10c] sm:$0xf]
    %v257 = vld [vmem:[%s5 + $0x110] sm:$0xf]
    %v258 = vld [vmem:[%s5 + $0x114] sm:$0xf]
    %v259 = vld [vmem:[%s5 + $0x118] sm:$0xf]
    %v260 = vld [vmem:[%s5 + $0x11c] sm:$0xf]
    %v261 = vld [vmem:[%s5 + $0x120] sm:$0xf]
    %v262 = vld [vmem:[%s5 + $0x124] sm:$0xf]
    %v263 = vld [vmem:[%s5 + $0x128] sm:$0xf]
    %v264 = vld [vmem:[%s5 + $0x12c] sm:$0xf]
    %v265 = vld [vmem:[%s5 + $0x130] sm:$0xf]
    %v266 = vld [vmem:[%s5 + $0x134] sm:$0xf]
    %v267 = vld [vmem:[%s5 + $0x138] sm:$0xf]
    %v268 = vld [vmem:[%s5 + $0x13c] sm:$0xf]
    %v269 = vld [vmem:[%s5 + $0x140] sm:$0xf]
    %v270 = vld [vmem:[%s5 + $0x144] sm:$0xf]
    %v271 = vld [vmem:[%s5 + $0x148] sm:$0xf]
    %v272 = vld [vmem:[%s5 + $0x14c] sm:$0xf]
    %v273 = vld [vmem:[%s5 + $0x150] sm:$0xf]
    %v274 = vld [vmem:[%s5 + $0x154] sm:$0xf]
    %v275 = vld [vmem:[%s5 + $0x158] sm:$0xf]
    %v276 = vld [vmem:[%s5 + $0x15c] sm:$0xf]
    %v277 = vld [vmem:[%s5 + $0x160] sm:$0xf]
    %v278 = vld [vmem:[%s5 + $0x164] sm:$0xf]
    %v279 = vld [vmem:[%s5 + $0x168] sm:$0xf]
    %v280 = vld [vmem:[%s5 + $0x16c] sm:$0xf]
    %v281 = vld [vmem:[%s5 + $0x170] sm:$0xf]
    %v282 = vld [vmem:[%s5 + $0x174] sm:$0xf]
    %v283 = vld [vmem:[%s5 + $0x178] sm:$0xf]
    %v284 = vld [vmem:[%s5 + $0x17c] sm:$0xf]
    %v285 = vld [vmem:[%s5 + $0x180] sm:$0xf]
    %v286 = vld [vmem:[%s5 + $0x184] sm:$0xf]
    %v287 = vld [vmem:[%s5 + $0x188] sm:$0xf]
    %v288 = vld [vmem:[%s5 + $0x18c] sm:$0xf]
    %v289 = vld [vmem:[%s5 + $0x190] sm:$0xf]
    %v290 = vld [vmem:[%s5 + $0x194] sm:$0xf]
    %v291 = vld [vmem:[%s5 + $0x198] sm:$0xf]
    %v292 = vld [vmem:[%s5 + $0x19c] sm:$0xf]
    %v293 = vld [vmem:[%s5 + $0x1a0] sm:$0xf]
    %v294 = vld [vmem:[%s5 + $0x1a4] sm:$0xf]
    %v295 = vld [vmem:[%s5 + $0x1a8] sm:$0xf]
    %v296 = vld [vmem:[%s5 + $0x1ac] sm:$0xf]
    %v297 = vld [vmem:[%s5 + $0x1b0] sm:$0xf]
    %v298 = vld [vmem:[%s5 + $0x1b4] sm:$0xf]
    %v299 = vld [vmem:[%s5 + $0x1b8] sm:$0xf]
    %v300 = vld [vmem:[%s5 + $0x1bc] sm:$0xf]
    %v301 = vld [vmem:[%s5 + $0x1c0] sm:$0xf]
    %v302 = vld [vmem:[%s5 + $0x1c4] sm:$0xf]
    %v303 = vld [vmem:[%s5 + $0x1c8] sm:$0xf]
    %v304 = vld [vmem:[%s5 + $0x1cc] sm:$0xf]
    %v305 = vld [vmem:[%s5 + $0x1d0] sm:$0xf]
    %v306 = vld [vmem:[%s5 + $0x1d4] sm:$0xf]
    %v307 = vld [vmem:[%s5 + $0x1d8] sm:$0xf]
    %v308 = vld [vmem:[%s5 + $0x1dc] sm:$0xf]
    %v309 = vld [vmem:[%s5 + $0x1e0] sm:$0xf]
    %v310 = vld [vmem:[%s5 + $0x1e4] sm:$0xf]
    %v311 = vld [vmem:[%s5 + $0x1e8] sm:$0xf]
    %v312 = vld [vmem:[%s5 + $0x1ec] sm:$0xf]
    %v313 = vld [vmem:[%s5 + $0x1f0] sm:$0xf]
    %v314 = vld [vmem:[%s5 + $0x1f4] sm:$0xf]
    %v315 = vld [vmem:[%s5 + $0x1f8] sm:$0xf]
    %v316 = vld [vmem:[%s5 + $0x1fc] sm:$0xf]
    %v317 = vld [vmem:[%s5 + $0x200] sm:$0xf]
    %v318 = vld [vmem:[%s5 + $0x204] sm:$0xf]
    %v319 = vld [vmem:[%s5 + $0x208] sm:$0xf]
    %v320 = vld [vmem:[%s5 + $0x20c] sm:$0xf]
    %v321 = vld [vmem:[%s5 + $0x210] sm:$0xf]
    %v322 = vld [vmem:[%s5 + $0x214] sm:$0xf]
    %v323 = vld [vmem:[%s5 + $0x218] sm:$0xf]
    %v324 = vld [vmem:[%s5 + $0x21c] sm:$0xf]
    %v325 = vld [vmem:[%s5 + $0x220] sm:$0xf]
    %v326 = vld [vmem:[%s5 + $0x224] sm:$0xf]
    %v327 = vld [vmem:[%s5 + $0x228] sm:$0xf]
    %v328 = vld [vmem:[%s5 + $0x22c] sm:$0xf]
    %v329 = vld [vmem:[%s5 + $0x230] sm:$0xf]
    %v330 = vld [vmem:[%s5 + $0x234] sm:$0xf]
    %v331 = vld [vmem:[%s5 + $0x238] sm:$0xf]
    %v332 = vld [vmem:[%s5 + $0x23c] sm:$0xf]
    %v333 = vld [vmem:[%s5 + $0x240] sm:$0xf]
    %v334 = vld [vmem:[%s5 + $0x244] sm:$0xf]
    %v335 = vld [vmem:[%s5 + $0x248] sm:$0xf]
    %v336 = vld [vmem:[%s5 + $0x24c] sm:$0xf]
    %v337 = vld [vmem:[%s5 + $0x250] sm:$0xf]
    %v338 = vld [vmem:[%s5 + $0x254] sm:$0xf]
    %v339 = vld [vmem:[%s5 + $0x258] sm:$0xf]
    %v340 = vld [vmem:[%s5 + $0x25c] sm:$0xf]
    %v341 = vld [vmem:[%s5 + $0x260] sm:$0xf]
    %v342 = vld [vmem:[%s5 + $0x264] sm:$0xf]
    %v343 = vld [vmem:[%s5 + $0x268] sm:$0xf]
    %v344 = vld [vmem:[%s5 + $0x26c] sm:$0xf]
    %v345 = vld [vmem:[%s5 + $0x270] sm:$0xf]
    %v346 = vld [vmem:[%s5 + $0x274] sm:$0xf]
    %v347 = vld [vmem:[%s5 + $0x278] sm:$0xf]
    %v348 = vld [vmem:[%s5 + $0x27c] sm:$0xf]
    %v349 = vld [vmem:[%s5 + $0x280] sm:$0xf]
    %v350 = vld [vmem:[%s5 + $0x284] sm:$0xf]
    %v351 = vld [vmem:[%s5 + $0x288] sm:$0xf]
    %v352 = vld [vmem:[%s5 + $0x28c] sm:$0xf]
    %v353 = vld [vmem:[%s5 + $0x290] sm:$0xf]
    %v354 = vld [vmem:[%s5 + $0x294] sm:$0xf]
    %v355 = vld [vmem:[%s5 + $0x298] sm:$0xf]
    %v356 = vld [vmem:[%s5 + $0x29c] sm:$0xf]
    %v357 = vld [vmem:[%s5 + $0x2a0] sm:$0xf]
    %v358 = vld [vmem:[%s5 + $0x2a4] sm:$0xf]
    %v359 = vld [vmem:[%s5 + $0x2a8] sm:$0xf]
    %v360 = vld [vmem:[%s5 + $0x2ac] sm:$0xf]
    %v361 = vld [vmem:[%s5 + $0x2b0] sm:$0xf]
    %v362 = vld [vmem:[%s5 + $0x2b4] sm:$0xf]
    %v363 = vld [vmem:[%s5 + $0x2b8] sm:$0xf]
    %v364 = vld [vmem:[%s5 + $0x2bc] sm:$0xf]
    %v365 = vld [vmem:[%s5 + $0x2c0] sm:$0xf]
    %v366 = vld [vmem:[%s5 + $0x2c4] sm:$0xf]
    %v367 = vld [vmem:[%s5 + $0x2c8] sm:$0xf]
    %v368 = vld [vmem:[%s5 + $0x2cc] sm:$0xf]
    %v369 = vld [vmem:[%s5 + $0x2d0] sm:$0xf]
    %v370 = vld [vmem:[%s5 + $0x2d4] sm:$0xf]
    %v371 = vld [vmem:[%s5 + $0x2d8] sm:$0xf]
    %v372 = vld [vmem:[%s5 + $0x2dc] sm:$0xf]
    %v373 = vld [vmem:[%s5 + $0x2e0] sm:$0xf]
    %v374 = vld [vmem:[%s5 + $0x2e4] sm:$0xf]
    %v375 = vld [vmem:[%s5 + $0x2e8] sm:$0xf]
    %v376 = vld [vmem:[%s5 + $0x2ec] sm:$0xf]
    %v377 = vld [vmem:[%s5 + $0x2f0] sm:$0xf]
    %v378 = vld [vmem:[%s5 + $0x2f4] sm:$0xf]
    %v379 = vld [vmem:[%s5 + $0x2f8] sm:$0xf]
    %v380 = vld [vmem:[%s5 + $0x2fc] sm:$0xf]
    %v381 = vld [vmem:[%s5 + $0x300] sm:$0xf]
    %v382 = vld [vmem:[%s5 + $0x304] sm:$0xf]
    %v383 = vld [vmem:[%s5 + $0x308] sm:$0xf]
    %v384 = vld [vmem:[%s5 + $0x30c] sm:$0xf]
    %v385 = vld [vmem:[%s5 + $0x310] sm:$0xf]
    %v386 = vld [vmem:[%s5 + $0x314] sm:$0xf]
    %v387 = vld [vmem:[%s5 + $0x318] sm:$0xf]
    %v388 = vld [vmem:[%s5 + $0x31c] sm:$0xf]
    %v389 = vld [vmem:[%s5 + $0x320] sm:$0xf]
    %v390 = vld [vmem:[%s5 + $0x324] sm:$0xf]
    %v391 = vld [vmem:[%s5 + $0x328] sm:$0xf]
    %v392 = vld [vmem:[%s5 + $0x32c] sm:$0xf]
    %v393 = vld [vmem:[%s5 + $0x330] sm:$0xf]
    %v394 = vld [vmem:[%s5 + $0x334] sm:$0xf]
    %v395 = vld [vmem:[%s5 + $0x338] sm:$0xf]
    %v396 = vld [vmem:[%s5 + $0x33c] sm:$0xf]
    %v397 = vld [vmem:[%s5 + $0x340] sm:$0xf]
    %v398 = vld [vmem:[%s5 + $0x344] sm:$0xf]
    %v399 = vld [vmem:[%s5 + $0x348] sm:$0xf]
    %v400 = vld [vmem:[%s5 + $0x34c] sm:$0xf]
    %v401 = vld [vmem:[%s5 + $0x350] sm:$0xf]
    %v402 = vld [vmem:[%s5 + $0x354] sm:$0xf]
    %v403 = vld [vmem:[%s5 + $0x358] sm:$0xf]
    %v404 = vld [vmem:[%s5 + $0x35c] sm:$0xf]
    %v405 = vld [vmem:[%s5 + $0x360] sm:$0xf]
    %v406 = vld [vmem:[%s5 + $0x364] sm:$0xf]
    %v407 = vld [vmem:[%s5 + $0x368] sm:$0xf]
    %v408 = vld [vmem:[%s5 + $0x36c] sm:$0xf]
    %v409 = vld [vmem:[%s5 + $0x370] sm:$0xf]
    %v410 = vld [vmem:[%s5 + $0x374] sm:$0xf]
    %v411 = vld [vmem:[%s5 + $0x378] sm:$0xf]
    %v412 = vld [vmem:[%s5 + $0x37c] sm:$0xf]
    %v413 = vld [vmem:[%s5 + $0x380] sm:$0xf]
    %v414 = vld [vmem:[%s5 + $0x384] sm:$0xf]
    %v415 = vld [vmem:[%s5 + $0x388] sm:$0xf]
    %v416 = vld [vmem:[%s5 + $0x38c] sm:$0xf]
    %v417 = vld [vmem:[%s5 + $0x390] sm:$0xf]
    %v418 = vld [vmem:[%s5 + $0x394] sm:$0xf]
    %v419 = vld [vmem:[%s5 + $0x398] sm:$0xf]
    %v420 = vld [vmem:[%s5 + $0x39c] sm:$0xf]
    %v421 = vld [vmem:[%s5 + $0x3a0] sm:$0xf]
    %v422 = vld [vmem:[%s5 + $0x3a4] sm:$0xf]
    %v423 = vld [vmem:[%s5 + $0x3a8] sm:$0xf]
    %v424 = vld [vmem:[%s5 + $0x3ac] sm:$0xf]
    %v425 = vld [vmem:[%s5 + $0x3b0] sm:$0xf]
    %v426 = vld [vmem:[%s5 + $0x3b4] sm:$0xf]
    %v427 = vld [vmem:[%s5 + $0x3b8] sm:$0xf]
    %v428 = vld [vmem:[%s5 + $0x3bc] sm:$0xf]
    %v429 = vld [vmem:[%s5 + $0x3c0] sm:$0xf]
    %v430 = vld [vmem:[%s5 + $0x3c4] sm:$0xf]
    %v431 = vld [vmem:[%s5 + $0x3c8] sm:$0xf]
    %v432 = vld [vmem:[%s5 + $0x3cc] sm:$0xf]
    %v433 = vld [vmem:[%s5 + $0x3d0] sm:$0xf]
    %v434 = vld [vmem:[%s5 + $0x3d4] sm:$0xf]
    %v435 = vld [vmem:[%s5 + $0x3d8] sm:$0xf]
    %v436 = vld [vmem:[%s5 + $0x3dc] sm:$0xf]
    %v437 = vld [vmem:[%s5 + $0x3e0] sm:$0xf]
    %v438 = vld [vmem:[%s5 + $0x3e4] sm:$0xf]
    %v439 = vld [vmem:[%s5 + $0x3e8] sm:$0xf]
    %v440 = vld [vmem:[%s5 + $0x3ec] sm:$0xf]
    %v441 = vld [vmem:[%s5 + $0x3f0] sm:$0xf]
    %v442 = vld [vmem:[%s5 + $0x3f4] sm:$0xf]
    %v443 = vld [vmem:[%s5 + $0x3f8] sm:$0xf]
    %v444 = vld [vmem:[%s5 + $0x3fc] sm:$0xf]
    %v445 = vld [vmem:[%s4] sm:$0x1]
    %v446 = vld [vmem:[%s6] sm:$0x1]
    %v447 = vlaneseq
    %v448 = vand.u32 %v447, 127
    %vm449 = vcmp.ge.s32.totalorder %v448, 20
    %vm450 = vcmp.ge.s32.totalorder %v448, 40
    %v451 = vsel %vm449, 20, 0
    %v452 = vsel %vm450, 40, %v451
    %v453 = vsub.s32 %v448, %v452
    %v454 = vld [vmem:[%s0] sm:$0xff]
    %v455 = vld [vmem:[%s0 + $0x8] sm:$0xff]
    %v456 = vld [vmem:[%s0 + $0x10] sm:$0xff]
    %v457 = vld [vmem:[%s0 + $0x18] sm:$0xff]
    %v458 = vld [vmem:[%s0 + $0x20] sm:$0x3]
    %459 = vset.pattern.permute.xlu0 0
    %460 = vperm.xlu0 %459, %v454
    %v461 = vpop.permute.xlu0 %460
    %462 = vset.pattern.permute.xlu0 0
    %463 = vperm.xlu0 %462, %v455
    %v464 = vpop.permute.xlu0 %463
    %465 = vset.pattern.permute.xlu0 0
    %466 = vperm.xlu0 %465, %v456
    %v467 = vpop.permute.xlu0 %466
    %468 = vset.pattern.permute.xlu0 0
    %469 = vperm.xlu0 %468, %v457
    %v470 = vpop.permute.xlu0 %469
    %471 = vset.pattern.permute.xlu0 0
    %472 = vperm.xlu0 %471, %v458
    %v473 = vpop.permute.xlu0 %472
    %vm474 = vcmask 1040384
    %v475 = vrot.slane %v461, 7
    %v476 = vrot.slane %v464, 7
    %v477 = vsel %vm474, %v475, %v476
    %v478 = vrot.slane %v467, 7
    %v479 = vsel %vm474, %v476, %v478
    %v480 = vrot.slane %v470, 7
    %v481 = vsel %vm474, %v478, %v480
    %v482 = vsel %vm449, %v461, %v475
    %v483 = vsel %vm449, %v464, %v477
    %v484 = vsel %vm449, %v467, %v479
    %v485 = vsel %vm449, %v470, %v481
    %v486 = vsel %vm449, %v473, %v480
    %v487 = vrot.slane %v482, 7
    %v488 = vrot.slane %v483, 7
    %v489 = vsel %vm474, %v487, %v488
    %v490 = vrot.slane %v484, 7
    %v491 = vsel %vm474, %v488, %v490
    %v492 = vrot.slane %v485, 7
    %v493 = vsel %vm474, %v490, %v492
    %v494 = vrot.slane %v486, 7
    %v495 = vsel %vm474, %v492, %v494
    %v496 = vsel %vm450, %v461, %v487
    %v497 = vsel %vm450, %v464, %v489
    %v498 = vsel %vm450, %v467, %v491
    %v499 = vsel %vm450, %v470, %v493
    %v500 = vsel %vm450, %v473, %v495
    %vm501 = vcmp.eq.s32.totalorder %v496, %v453
    %vm502 = vcmp.eq.s32.totalorder %v497, %v453
    %vm503 = vcmp.eq.s32.totalorder %v498, %v453
    %vm504 = vcmp.eq.s32.totalorder %v499, %v453
    %vm505 = vcmp.eq.s32.totalorder %v500, %v453
    %v506 = vsel %vm501, 1.0, 0.0
    %v507 = vsel %vm502, 1.0, 0.0
    %v508 = vsel %vm503, 1.0, 0.0
    %v509 = vsel %vm504, 1.0, 0.0
    %v510 = vsel %vm505, 1.0, 0.0
    %v511 = vpack.c.bf16 %v507, %v506
    %v512 = vpack.c.bf16 %v509, %v508
    %v513 = vpack.c.bf16 %v510, %v510
    %v515 = vlaneseq
    %v516 = vshrl.u32 %v515, 7
    %v517 = vsub.s32 0, %v516
    %v518 = vrot.slane %v60, %v517
    %vm523 = vcmask 1046528
    %v524 = vrot.slane %v511, 1
    %v525 = vrot.slane %v512, 1
    %v526 = vsel %vm523, %v524, %v525
    %v527 = vrot.slane %v513, 1
    %v528 = vsel %vm523, %v525, %v527
    %v537 = vunpack.c.l.b16 %v52
    %v538 = vunpack.c.l.b16 %v53
    %v539 = vunpack.c.l.b16 %v54
    %v540 = vunpack.c.l.b16 %v55
    %v541 = vunpack.c.l.b16 %v56
    %v542 = vunpack.c.l.b16 %v57
    %v543 = vunpack.c.l.b16 %v58
    %v544 = vunpack.c.l.b16 %v59
    %v545 = vpack.c.b16 %v538, %v537
    %v546 = vpack.c.b16 %v540, %v539
    %v547 = vpack.c.b16 %v542, %v541
    %v548 = vpack.c.b16 %v544, %v543
    %vm552 = vcmask 490496
    %v554 = vsel %vm552, %v526, 0
    %v557 = vsel %vm552, %v528, 0
    %vm559 = vcmask 1045504
    %v561 = vsel %vm559, %v548, 0
    %563 = vmatprep.subr.bf16.mxu0 0
    %564 = vmatpush1.bf16.msra.mxu0 0
    %565 = vmatprep.subr.bf16.mxu0 0
    %566 = vmatpush1.bf16.msra.mxu0 0
    %567 = vmatprep.subr.bf16.mxu0 0
    %568 = vmatpush1.bf16.msra.mxu0 0
    %569 = vmatprep.subr.bf16.mxu0 0
    %570 = vmatpush1.bf16.msra.mxu0 0
    %571 = vmatprep.subr.bf16.mxu0 0
    %572 = vmatpush1.bf16.msra.mxu0 %v561
    %573 = vmatprep.subr.bf16.mxu0 0
    %574 = vmatpush1.bf16.msra.mxu0 %v547
    %575 = vmatprep.subr.bf16.mxu0 0
    %576 = vmatpush1.bf16.msra.mxu0 %v546
    %577 = vmatprep.subr.bf16.mxu0 0
    %578 = vmatpush1.bf16.msra.mxu0 %v545
    %579 = vmatprep.subr.bf16.mxu0 0
    %580 = vmatpush2.bf16.msra.mxu0 0
    %581 = vmatprep.subr.bf16.mxu0 0
    %582 = vmatpush2.bf16.msra.mxu0 0
    %583 = vmatprep.subr.bf16.mxu0 0
    %584 = vmatpush2.bf16.msra.mxu0 0
    %585 = vmatprep.subr.bf16.mxu0 0
    %586 = vmatpush2.bf16.msra.mxu0 0
    %587 = vmatprep.subr.bf16.mxu0 0
    %588 = vmatpush2.bf16.msra.mxu0 0
    %589 = vmatprep.subr.bf16.mxu0 0
    %590 = vmatpush2.bf16.msra.mxu0 0
    %591 = vmatprep.subr.bf16.mxu0 0
    %592 = vmatpush2.bf16.msra.mxu0 0
    %593 = vmatprep.subr.bf16.mxu0 0
    %594 = vmatpush2.bf16.msra.mxu0 0
    %595 = vmatprep.mubr.bf16.mxu0 0
    %596 = vmatmul.mubr.bf16.gmra.mxu0 %v554
    %v597 = vpop.f32.mrf.mxu0
    %v598 = vadd.f32 %v518, %v597
    %v599 = vpop.f32.mrf.mxu0
    %v600 = vpop.f32.mrf.mxu0
    %v601 = vadd.f32 %v518, %v600
    %v602 = vpop.f32.mrf.mxu0
    %603 = vmatprep.mubr.bf16.mxu0 0
    %604 = vmatmul.mubr.bf16.gmra.mxu0 %v557
    %v605 = vpop.f32.mrf.mxu0
    %v606 = vadd.f32 %v518, %v605
    %v607 = vpop.f32.mrf.mxu0
    %v608 = vpop.f32.mrf.mxu0
    %v609 = vadd.f32 %v518, %v608
    %v610 = vpop.f32.mrf.mxu0
    %611 = vdwg.mxu0
    %vm616 = vcmask 1046528
    %v617 = vrot.slane %v598, 1
    %v618 = vrot.slane %v601, 1
    %v619 = vsel %vm616, %v617, %v618
    %v620 = vrot.slane %v606, 1
    %v621 = vsel %vm616, %v618, %v620
    %v622 = vrot.slane %v609, 1
    %v623 = vsel %vm616, %v620, %v622
    %v628 = vrot.slane %v598, 2
    %v629 = vrot.slane %v601, 2
    %v630 = vsel %vm559, %v628, %v629
    %v631 = vrot.slane %v606, 2
    %v632 = vsel %vm559, %v629, %v631
    %v633 = vrot.slane %v609, 2
    %v634 = vsel %vm559, %v631, %v633
    %vm639 = vcmask 1044480
    %v640 = vrot.slane %v598, 3
    %v641 = vrot.slane %v601, 3
    %v642 = vsel %vm639, %v640, %v641
    %v643 = vrot.slane %v606, 3
    %v644 = vsel %vm639, %v641, %v643
    %v645 = vrot.slane %v609, 3
    %v646 = vsel %vm639, %v643, %v645
    %vm651 = vcmask 1043456
    %v652 = vrot.slane %v598, 4
    %v653 = vrot.slane %v601, 4
    %v654 = vsel %vm651, %v652, %v653
    %v655 = vrot.slane %v606, 4
    %v656 = vsel %vm651, %v653, %v655
    %v657 = vrot.slane %v609, 4
    %v658 = vsel %vm651, %v655, %v657
    %vm663 = vcmask 1042432
    %v664 = vrot.slane %v598, 5
    %v665 = vrot.slane %v601, 5
    %v666 = vsel %vm663, %v664, %v665
    %v667 = vrot.slane %v606, 5
    %v668 = vsel %vm663, %v665, %v667
    %v669 = vrot.slane %v609, 5
    %v670 = vsel %vm663, %v667, %v669
    %vm675 = vcmask 1041408
    %v676 = vrot.slane %v598, 6
    %v677 = vrot.slane %v601, 6
    %v678 = vsel %vm675, %v676, %v677
    %v679 = vrot.slane %v606, 6
    %v680 = vsel %vm675, %v677, %v679
    %v681 = vrot.slane %v609, 6
    %v682 = vsel %vm675, %v679, %v681
    %v687 = vrot.slane %v598, 7
    %v688 = vrot.slane %v601, 7
    %v689 = vsel %vm474, %v687, %v688
    %v690 = vrot.slane %v606, 7
    %v691 = vsel %vm474, %v688, %v690
    %v692 = vrot.slane %v609, 7
    %v693 = vsel %vm474, %v690, %v692
    %v698 = vpack.c.bf16 %v601, %v598
    %v699 = vpack.c.bf16 %v621, %v619
    %v700 = vpack.c.bf16 %v632, %v630
    %v701 = vpack.c.bf16 %v644, %v642
    %v702 = vpack.c.bf16 %v656, %v654
    %v703 = vpack.c.bf16 %v668, %v666
    %v704 = vpack.c.bf16 %v680, %v678
    %v705 = vpack.c.bf16 %v691, %v689
    %v706 = vpack.c.bf16 %v609, %v606
    %v707 = vpack.c.bf16 %v622, %v623
    %v708 = vpack.c.bf16 %v633, %v634
    %v709 = vpack.c.bf16 %v645, %v646
    %v710 = vpack.c.bf16 %v657, %v658
    %v711 = vpack.c.bf16 %v669, %v670
    %v712 = vpack.c.bf16 %v681, %v682
    %v713 = vpack.c.bf16 %v692, %v693
    %v715 = vlaneseq
    %v716 = vshrl.u32 %v715, 7
    %v717 = vsub.s32 0, %v716
    %v718 = vrot.slane %v445, %v717
    %v848 = vunpack.c.l.b16 %v61
    %v849 = vunpack.c.l.b16 %v62
    %v850 = vunpack.c.l.b16 %v63
    %v851 = vunpack.c.l.b16 %v64
    %v852 = vunpack.c.l.b16 %v65
    %v853 = vunpack.c.l.b16 %v66
    %v854 = vunpack.c.l.b16 %v67
    %v855 = vunpack.c.l.b16 %v68
    %v856 = vunpack.c.l.b16 %v69
    %v857 = vunpack.c.l.b16 %v70
    %v858 = vunpack.c.l.b16 %v71
    %v859 = vunpack.c.l.b16 %v72
    %v860 = vunpack.c.l.b16 %v73
    %v861 = vunpack.c.l.b16 %v74
    %v862 = vunpack.c.l.b16 %v75
    %v863 = vunpack.c.l.b16 %v76
    %v864 = vunpack.c.l.b16 %v77
    %v865 = vunpack.c.l.b16 %v78
    %v866 = vunpack.c.l.b16 %v79
    %v867 = vunpack.c.l.b16 %v80
    %v868 = vunpack.c.l.b16 %v81
    %v869 = vunpack.c.l.b16 %v82
    %v870 = vunpack.c.l.b16 %v83
    %v871 = vunpack.c.l.b16 %v84
    %v872 = vunpack.c.l.b16 %v85
    %v873 = vunpack.c.l.b16 %v86
    %v874 = vunpack.c.l.b16 %v87
    %v875 = vunpack.c.l.b16 %v88
    %v876 = vunpack.c.l.b16 %v89
    %v877 = vunpack.c.l.b16 %v90
    %v878 = vunpack.c.l.b16 %v91
    %v879 = vunpack.c.l.b16 %v92
    %v880 = vunpack.c.l.b16 %v93
    %v881 = vunpack.c.l.b16 %v94
    %v882 = vunpack.c.l.b16 %v95
    %v883 = vunpack.c.l.b16 %v96
    %v884 = vunpack.c.l.b16 %v97
    %v885 = vunpack.c.l.b16 %v98
    %v886 = vunpack.c.l.b16 %v99
    %v887 = vunpack.c.l.b16 %v100
    %v888 = vunpack.c.l.b16 %v101
    %v889 = vunpack.c.l.b16 %v102
    %v890 = vunpack.c.l.b16 %v103
    %v891 = vunpack.c.l.b16 %v104
    %v892 = vunpack.c.l.b16 %v105
    %v893 = vunpack.c.l.b16 %v106
    %v894 = vunpack.c.l.b16 %v107
    %v895 = vunpack.c.l.b16 %v108
    %v896 = vunpack.c.l.b16 %v109
    %v897 = vunpack.c.l.b16 %v110
    %v898 = vunpack.c.l.b16 %v111
    %v899 = vunpack.c.l.b16 %v112
    %v900 = vunpack.c.l.b16 %v113
    %v901 = vunpack.c.l.b16 %v114
    %v902 = vunpack.c.l.b16 %v115
    %v903 = vunpack.c.l.b16 %v116
    %v904 = vunpack.c.l.b16 %v117
    %v905 = vunpack.c.l.b16 %v118
    %v906 = vunpack.c.l.b16 %v119
    %v907 = vunpack.c.l.b16 %v120
    %v908 = vunpack.c.l.b16 %v121
    %v909 = vunpack.c.l.b16 %v122
    %v910 = vunpack.c.l.b16 %v123
    %v911 = vunpack.c.l.b16 %v124
    %v912 = vunpack.c.l.b16 %v125
    %v913 = vunpack.c.l.b16 %v126
    %v914 = vunpack.c.l.b16 %v127
    %v915 = vunpack.c.l.b16 %v128
    %v916 = vunpack.c.l.b16 %v129
    %v917 = vunpack.c.l.b16 %v130
    %v918 = vunpack.c.l.b16 %v131
    %v919 = vunpack.c.l.b16 %v132
    %v920 = vunpack.c.l.b16 %v133
    %v921 = vunpack.c.l.b16 %v134
    %v922 = vunpack.c.l.b16 %v135
    %v923 = vunpack.c.l.b16 %v136
    %v924 = vunpack.c.l.b16 %v137
    %v925 = vunpack.c.l.b16 %v138
    %v926 = vunpack.c.l.b16 %v139
    %v927 = vunpack.c.l.b16 %v140
    %v928 = vunpack.c.l.b16 %v141
    %v929 = vunpack.c.l.b16 %v142
    %v930 = vunpack.c.l.b16 %v143
    %v931 = vunpack.c.l.b16 %v144
    %v932 = vunpack.c.l.b16 %v145
    %v933 = vunpack.c.l.b16 %v146
    %v934 = vunpack.c.l.b16 %v147
    %v935 = vunpack.c.l.b16 %v148
    %v936 = vunpack.c.l.b16 %v149
    %v937 = vunpack.c.l.b16 %v150
    %v938 = vunpack.c.l.b16 %v151
    %v939 = vunpack.c.l.b16 %v152
    %v940 = vunpack.c.l.b16 %v153
    %v941 = vunpack.c.l.b16 %v154
    %v942 = vunpack.c.l.b16 %v155
    %v943 = vunpack.c.l.b16 %v156
    %v944 = vunpack.c.l.b16 %v157
    %v945 = vunpack.c.l.b16 %v158
    %v946 = vunpack.c.l.b16 %v159
    %v947 = vunpack.c.l.b16 %v160
    %v948 = vunpack.c.l.b16 %v161
    %v949 = vunpack.c.l.b16 %v162
    %v950 = vunpack.c.l.b16 %v163
    %v951 = vunpack.c.l.b16 %v164
    %v952 = vunpack.c.l.b16 %v165
    %v953 = vunpack.c.l.b16 %v166
    %v954 = vunpack.c.l.b16 %v167
    %v955 = vunpack.c.l.b16 %v168
    %v956 = vunpack.c.l.b16 %v169
    %v957 = vunpack.c.l.b16 %v170
    %v958 = vunpack.c.l.b16 %v171
    %v959 = vunpack.c.l.b16 %v172
    %v960 = vunpack.c.l.b16 %v173
    %v961 = vunpack.c.l.b16 %v174
    %v962 = vunpack.c.l.b16 %v175
    %v963 = vunpack.c.l.b16 %v176
    %v964 = vunpack.c.l.b16 %v177
    %v965 = vunpack.c.l.b16 %v178
    %v966 = vunpack.c.l.b16 %v179
    %v967 = vunpack.c.l.b16 %v180
    %v968 = vunpack.c.l.b16 %v181
    %v969 = vunpack.c.l.b16 %v182
    %v970 = vunpack.c.l.b16 %v183
    %v971 = vunpack.c.l.b16 %v184
    %v972 = vunpack.c.l.b16 %v185
    %v973 = vunpack.c.l.b16 %v186
    %v974 = vunpack.c.l.b16 %v187
    %v975 = vunpack.c.l.b16 %v188
    %v976 = vpack.c.b16 %v849, %v848
    %v977 = vpack.c.b16 %v851, %v850
    %v978 = vpack.c.b16 %v853, %v852
    %v979 = vpack.c.b16 %v855, %v854
    %v980 = vpack.c.b16 %v857, %v856
    %v981 = vpack.c.b16 %v859, %v858
    %v982 = vpack.c.b16 %v861, %v860
    %v983 = vpack.c.b16 %v863, %v862
    %v984 = vpack.c.b16 %v865, %v864
    %v985 = vpack.c.b16 %v867, %v866
    %v986 = vpack.c.b16 %v869, %v868
    %v987 = vpack.c.b16 %v871, %v870
    %v988 = vpack.c.b16 %v873, %v872
    %v989 = vpack.c.b16 %v875, %v874
    %v990 = vpack.c.b16 %v877, %v876
    %v991 = vpack.c.b16 %v879, %v878
    %v992 = vpack.c.b16 %v881, %v880
    %v993 = vpack.c.b16 %v883, %v882
    %v994 = vpack.c.b16 %v885, %v884
    %v995 = vpack.c.b16 %v887, %v886
    %v996 = vpack.c.b16 %v889, %v888
    %v997 = vpack.c.b16 %v891, %v890
    %v998 = vpack.c.b16 %v893, %v892
    %v999 = vpack.c.b16 %v895, %v894
    %v1000 = vpack.c.b16 %v897, %v896
    %v1001 = vpack.c.b16 %v899, %v898
    %v1002 = vpack.c.b16 %v901, %v900
    %v1003 = vpack.c.b16 %v903, %v902
    %v1004 = vpack.c.b16 %v905, %v904
    %v1005 = vpack.c.b16 %v907, %v906
    %v1006 = vpack.c.b16 %v909, %v908
    %v1007 = vpack.c.b16 %v911, %v910
    %v1008 = vpack.c.b16 %v913, %v912
    %v1009 = vpack.c.b16 %v915, %v914
    %v1010 = vpack.c.b16 %v917, %v916
    %v1011 = vpack.c.b16 %v919, %v918
    %v1012 = vpack.c.b16 %v921, %v920
    %v1013 = vpack.c.b16 %v923, %v922
    %v1014 = vpack.c.b16 %v925, %v924
    %v1015 = vpack.c.b16 %v927, %v926
    %v1016 = vpack.c.b16 %v929, %v928
    %v1017 = vpack.c.b16 %v931, %v930
    %v1018 = vpack.c.b16 %v933, %v932
    %v1019 = vpack.c.b16 %v935, %v934
    %v1020 = vpack.c.b16 %v937, %v936
    %v1021 = vpack.c.b16 %v939, %v938
    %v1022 = vpack.c.b16 %v941, %v940
    %v1023 = vpack.c.b16 %v943, %v942
    %v1024 = vpack.c.b16 %v945, %v944
    %v1025 = vpack.c.b16 %v947, %v946
    %v1026 = vpack.c.b16 %v949, %v948
    %v1027 = vpack.c.b16 %v951, %v950
    %v1028 = vpack.c.b16 %v953, %v952
    %v1029 = vpack.c.b16 %v955, %v954
    %v1030 = vpack.c.b16 %v957, %v956
    %v1031 = vpack.c.b16 %v959, %v958
    %v1032 = vpack.c.b16 %v961, %v960
    %v1033 = vpack.c.b16 %v963, %v962
    %v1034 = vpack.c.b16 %v965, %v964
    %v1035 = vpack.c.b16 %v967, %v966
    %v1036 = vpack.c.b16 %v969, %v968
    %v1037 = vpack.c.b16 %v971, %v970
    %v1038 = vpack.c.b16 %v973, %v972
    %v1039 = vpack.c.b16 %v975, %v974
    %1104 = vmatprep.subr.bf16.mxu0 0
    %1105 = vmatpush1.bf16.msra.mxu0 %v983
    %1106 = vmatprep.subr.bf16.mxu0 0
    %1107 = vmatpush1.bf16.msra.mxu0 %v982
    %1108 = vmatprep.subr.bf16.mxu0 0
    %1109 = vmatpush1.bf16.msra.mxu0 %v981
    %1110 = vmatprep.subr.bf16.mxu0 0
    %1111 = vmatpush1.bf16.msra.mxu0 %v980
    %1112 = vmatprep.subr.bf16.mxu0 0
    %1113 = vmatpush1.bf16.msra.mxu0 %v979
    %1114 = vmatprep.subr.bf16.mxu0 0
    %1115 = vmatpush1.bf16.msra.mxu0 %v978
    %1116 = vmatprep.subr.bf16.mxu0 0
    %1117 = vmatpush1.bf16.msra.mxu0 %v977
    %1118 = vmatprep.subr.bf16.mxu0 0
    %1119 = vmatpush1.bf16.msra.mxu0 %v976
    %1120 = vmatprep.subr.bf16.mxu0 0
    %1121 = vmatpush2.bf16.msra.mxu0 %v991
    %1122 = vmatprep.subr.bf16.mxu0 0
    %1123 = vmatpush2.bf16.msra.mxu0 %v990
    %1124 = vmatprep.subr.bf16.mxu0 0
    %1125 = vmatpush2.bf16.msra.mxu0 %v989
    %1126 = vmatprep.subr.bf16.mxu0 0
    %1127 = vmatpush2.bf16.msra.mxu0 %v988
    %1128 = vmatprep.subr.bf16.mxu0 0
    %1129 = vmatpush2.bf16.msra.mxu0 %v987
    %1130 = vmatprep.subr.bf16.mxu0 0
    %1131 = vmatpush2.bf16.msra.mxu0 %v986
    %1132 = vmatprep.subr.bf16.mxu0 0
    %1133 = vmatpush2.bf16.msra.mxu0 %v985
    %1134 = vmatprep.subr.bf16.mxu0 0
    %1135 = vmatpush2.bf16.msra.mxu0 %v984
    %1136 = vmatprep.mubr.bf16.mxu0 %v699
    %1137 = vmatmul.mubr.bf16.gmra.mxu0 %v698
    %v1138 = vpop.f32.mrf.mxu0
    %v1139 = vadd.f32 %v718, %v1138
    %v1140 = vpop.f32.mrf.mxu0
    %v1141 = vpop.f32.mrf.mxu0
    %v1142 = vadd.f32 %v718, %v1141
    %v1143 = vpop.f32.mrf.mxu0
    %1144 = vmatprep.mubr.bf16.mxu0 %v707
    %1145 = vmatmul.mubr.bf16.gmra.mxu0 %v706
    %v1146 = vpop.f32.mrf.mxu0
    %v1147 = vadd.f32 %v718, %v1146
    %v1148 = vpop.f32.mrf.mxu0
    %v1149 = vpop.f32.mrf.mxu0
    %v1150 = vadd.f32 %v718, %v1149
    %v1151 = vpop.f32.mrf.mxu0
    %1152 = vdwg.mxu0
    %1153 = vmatprep.subr.bf16.mxu0 0
    %1154 = vmatpush1.bf16.msra.mxu0 %v999
    %1155 = vmatprep.subr.bf16.mxu0 0
    %1156 = vmatpush1.bf16.msra.mxu0 %v998
    %1157 = vmatprep.subr.bf16.mxu0 0
    %1158 = vmatpush1.bf16.msra.mxu0 %v997
    %1159 = vmatprep.subr.bf16.mxu0 0
    %1160 = vmatpush1.bf16.msra.mxu0 %v996
    %1161 = vmatprep.subr.bf16.mxu0 0
    %1162 = vmatpush1.bf16.msra.mxu0 %v995
    %1163 = vmatprep.subr.bf16.mxu0 0
    %1164 = vmatpush1.bf16.msra.mxu0 %v994
    %1165 = vmatprep.subr.bf16.mxu0 0
    %1166 = vmatpush1.bf16.msra.mxu0 %v993
    %1167 = vmatprep.subr.bf16.mxu0 0
    %1168 = vmatpush1.bf16.msra.mxu0 %v992
    %1169 = vmatprep.subr.bf16.mxu0 0
    %1170 = vmatpush2.bf16.msra.mxu0 %v1007
    %1171 = vmatprep.subr.bf16.mxu0 0
    %1172 = vmatpush2.bf16.msra.mxu0 %v1006
    %1173 = vmatprep.subr.bf16.mxu0 0
    %1174 = vmatpush2.bf16.msra.mxu0 %v1005
    %1175 = vmatprep.subr.bf16.mxu0 0
    %1176 = vmatpush2.bf16.msra.mxu0 %v1004
    %1177 = vmatprep.subr.bf16.mxu0 0
    %1178 = vmatpush2.bf16.msra.mxu0 %v1003
    %1179 = vmatprep.subr.bf16.mxu0 0
    %1180 = vmatpush2.bf16.msra.mxu0 %v1002
    %1181 = vmatprep.subr.bf16.mxu0 0
    %1182 = vmatpush2.bf16.msra.mxu0 %v1001
    %1183 = vmatprep.subr.bf16.mxu0 0
    %1184 = vmatpush2.bf16.msra.mxu0 %v1000
    %1185 = vmatprep.mubr.bf16.mxu0 %v701
    %1186 = vmatmul.mubr.bf16.gmra.mxu0 %v700
    %v1187 = vpop.f32.mrf.mxu0
    %v1188 = vadd.f32 %v1139, %v1187
    %v1189 = vpop.f32.mrf.mxu0
    %v1190 = vpop.f32.mrf.mxu0
    %v1191 = vadd.f32 %v1142, %v1190
    %v1192 = vpop.f32.mrf.mxu0
    %1193 = vmatprep.mubr.bf16.mxu0 %v709
    %1194 = vmatmul.mubr.bf16.gmra.mxu0 %v708
    %v1195 = vpop.f32.mrf.mxu0
    %v1196 = vadd.f32 %v1147, %v1195
    %v1197 = vpop.f32.mrf.mxu0
    %v1198 = vpop.f32.mrf.mxu0
    %v1199 = vadd.f32 %v1150, %v1198
    %v1200 = vpop.f32.mrf.mxu0
    %1201 = vdwg.mxu0
    %1202 = vmatprep.subr.bf16.mxu0 0
    %1203 = vmatpush1.bf16.msra.mxu0 %v1015
    %1204 = vmatprep.subr.bf16.mxu0 0
    %1205 = vmatpush1.bf16.msra.mxu0 %v1014
    %1206 = vmatprep.subr.bf16.mxu0 0
    %1207 = vmatpush1.bf16.msra.mxu0 %v1013
    %1208 = vmatprep.subr.bf16.mxu0 0
    %1209 = vmatpush1.bf16.msra.mxu0 %v1012
    %1210 = vmatprep.subr.bf16.mxu0 0
    %1211 = vmatpush1.bf16.msra.mxu0 %v1011
    %1212 = vmatprep.subr.bf16.mxu0 0
    %1213 = vmatpush1.bf16.msra.mxu0 %v1010
    %1214 = vmatprep.subr.bf16.mxu0 0
    %1215 = vmatpush1.bf16.msra.mxu0 %v1009
    %1216 = vmatprep.subr.bf16.mxu0 0
    %1217 = vmatpush1.bf16.msra.mxu0 %v1008
    %1218 = vmatprep.subr.bf16.mxu0 0
    %1219 = vmatpush2.bf16.msra.mxu0 %v1023
    %1220 = vmatprep.subr.bf16.mxu0 0
    %1221 = vmatpush2.bf16.msra.mxu0 %v1022
    %1222 = vmatprep.subr.bf16.mxu0 0
    %1223 = vmatpush2.bf16.msra.mxu0 %v1021
    %1224 = vmatprep.subr.bf16.mxu0 0
    %1225 = vmatpush2.bf16.msra.mxu0 %v1020
    %1226 = vmatprep.subr.bf16.mxu0 0
    %1227 = vmatpush2.bf16.msra.mxu0 %v1019
    %1228 = vmatprep.subr.bf16.mxu0 0
    %1229 = vmatpush2.bf16.msra.mxu0 %v1018
    %1230 = vmatprep.subr.bf16.mxu0 0
    %1231 = vmatpush2.bf16.msra.mxu0 %v1017
    %1232 = vmatprep.subr.bf16.mxu0 0
    %1233 = vmatpush2.bf16.msra.mxu0 %v1016
    %1234 = vmatprep.mubr.bf16.mxu0 %v703
    %1235 = vmatmul.mubr.bf16.gmra.mxu0 %v702
    %v1236 = vpop.f32.mrf.mxu0
    %v1237 = vadd.f32 %v1188, %v1236
    %v1238 = vpop.f32.mrf.mxu0
    %v1239 = vpop.f32.mrf.mxu0
    %v1240 = vadd.f32 %v1191, %v1239
    %v1241 = vpop.f32.mrf.mxu0
    %1242 = vmatprep.mubr.bf16.mxu0 %v711
    %1243 = vmatmul.mubr.bf16.gmra.mxu0 %v710
    %v1244 = vpop.f32.mrf.mxu0
    %v1245 = vadd.f32 %v1196, %v1244
    %v1246 = vpop.f32.mrf.mxu0
    %v1247 = vpop.f32.mrf.mxu0
    %v1248 = vadd.f32 %v1199, %v1247
    %v1249 = vpop.f32.mrf.mxu0
    %1250 = vdwg.mxu0
    %1251 = vmatprep.subr.bf16.mxu0 0
    %1252 = vmatpush1.bf16.msra.mxu0 %v1031
    %1253 = vmatprep.subr.bf16.mxu0 0
    %1254 = vmatpush1.bf16.msra.mxu0 %v1030
    %1255 = vmatprep.subr.bf16.mxu0 0
    %1256 = vmatpush1.bf16.msra.mxu0 %v1029
    %1257 = vmatprep.subr.bf16.mxu0 0
    %1258 = vmatpush1.bf16.msra.mxu0 %v1028
    %1259 = vmatprep.subr.bf16.mxu0 0
    %1260 = vmatpush1.bf16.msra.mxu0 %v1027
    %1261 = vmatprep.subr.bf16.mxu0 0
    %1262 = vmatpush1.bf16.msra.mxu0 %v1026
    %1263 = vmatprep.subr.bf16.mxu0 0
    %1264 = vmatpush1.bf16.msra.mxu0 %v1025
    %1265 = vmatprep.subr.bf16.mxu0 0
    %1266 = vmatpush1.bf16.msra.mxu0 %v1024
    %1267 = vmatprep.subr.bf16.mxu0 0
    %1268 = vmatpush2.bf16.msra.mxu0 %v1039
    %1269 = vmatprep.subr.bf16.mxu0 0
    %1270 = vmatpush2.bf16.msra.mxu0 %v1038
    %1271 = vmatprep.subr.bf16.mxu0 0
    %1272 = vmatpush2.bf16.msra.mxu0 %v1037
    %1273 = vmatprep.subr.bf16.mxu0 0
    %1274 = vmatpush2.bf16.msra.mxu0 %v1036
    %1275 = vmatprep.subr.bf16.mxu0 0
    %1276 = vmatpush2.bf16.msra.mxu0 %v1035
    %1277 = vmatprep.subr.bf16.mxu0 0
    %1278 = vmatpush2.bf16.msra.mxu0 %v1034
    %1279 = vmatprep.subr.bf16.mxu0 0
    %1280 = vmatpush2.bf16.msra.mxu0 %v1033
    %1281 = vmatprep.subr.bf16.mxu0 0
    %1282 = vmatpush2.bf16.msra.mxu0 %v1032
    %1283 = vmatprep.mubr.bf16.mxu0 %v705
    %1284 = vmatmul.mubr.bf16.gmra.mxu0 %v704
    %v1285 = vpop.f32.mrf.mxu0
    %v1286 = vadd.f32 %v1237, %v1285
    %v1287 = vpop.f32.mrf.mxu0
    %v1288 = vpop.f32.mrf.mxu0
    %v1289 = vadd.f32 %v1240, %v1288
    %v1290 = vpop.f32.mrf.mxu0
    %1291 = vmatprep.mubr.bf16.mxu0 %v713
    %1292 = vmatmul.mubr.bf16.gmra.mxu0 %v712
    %v1293 = vpop.f32.mrf.mxu0
    %v1294 = vadd.f32 %v1245, %v1293
    %v1295 = vpop.f32.mrf.mxu0
    %v1296 = vpop.f32.mrf.mxu0
    %v1297 = vadd.f32 %v1248, %v1296
    %v1298 = vpop.f32.mrf.mxu0
    %1299 = vdwg.mxu0
    %vm1300 = vcmask 130048
    %v1301 = vsel %vm1300, %v1286, -inf
    %v1302 = vsel %vm1300, %v1289, -inf
    %v1303 = vsel %vm1300, %v1294, -inf
    %vm1304 = vcmask 122880
    %v1305 = vsel %vm1304, %v1297, -inf
    %v1306 = vmax.f32 %v1301, %v1302
    %v1307 = vmax.f32 %v1303, %v1305
    %v1308 = vmax.f32 %v1306, %v1307
    %v1309 = vrot.slane %v1308, 4
    %v1310 = vmax.f32 %v1308, %v1309
    %v1311 = vrot.slane %v1310, 2
    %v1312 = vmax.f32 %v1310, %v1311
    %v1313 = vrot.slane %v1312, 1
    %v1314 = vmax.f32 %v1312, %v1313
    %v1315 = vmax.f32 %v1314, 0.0
    %v1323 = vpack.c.bf16 %v606, %v601
    %v1324 = vpack.c.bf16 %v623, %v621
    %v1325 = vpack.c.bf16 %v634, %v632
    %v1326 = vpack.c.bf16 %v646, %v644
    %v1327 = vpack.c.bf16 %v658, %v656
    %v1328 = vpack.c.bf16 %v670, %v668
    %v1329 = vpack.c.bf16 %v682, %v680
    %v1330 = vpack.c.bf16 %v693, %v691
    %v1331 = vpack.c.bf16 %v606, %v606
    %v1332 = vpack.c.bf16 %v620, %v620
    %v1333 = vpack.c.bf16 %v631, %v631
    %v1334 = vpack.c.bf16 %v643, %v643
    %v1335 = vpack.c.bf16 %v655, %v655
    %v1336 = vpack.c.bf16 %v667, %v667
    %v1337 = vpack.c.bf16 %v679, %v679
    %v1338 = vpack.c.bf16 %v690, %v690
    %v1339 = vpack.c.bf16 %v609, %v609
    %v1340 = vpack.c.bf16 %v622, %v622
    %v1341 = vpack.c.bf16 %v633, %v633
    %v1342 = vpack.c.bf16 %v645, %v645
    %v1343 = vpack.c.bf16 %v657, %v657
    %v1344 = vpack.c.bf16 %v669, %v669
    %v1345 = vpack.c.bf16 %v681, %v681
    %v1346 = vpack.c.bf16 %v692, %v692
    %v1348 = vlaneseq
    %v1349 = vshrl.u32 %v1348, 7
    %v1350 = vsub.s32 0, %v1349
    %v1351 = vrot.slane %v446, %v1350
    %v1609 = vunpack.c.l.b16 %v189
    %v1610 = vunpack.c.l.b16 %v190
    %v1611 = vunpack.c.l.b16 %v191
    %v1612 = vunpack.c.l.b16 %v192
    %v1613 = vunpack.c.l.b16 %v193
    %v1614 = vunpack.c.l.b16 %v194
    %v1615 = vunpack.c.l.b16 %v195
    %v1616 = vunpack.c.l.b16 %v196
    %v1617 = vunpack.c.l.b16 %v197
    %v1618 = vunpack.c.l.b16 %v198
    %v1619 = vunpack.c.l.b16 %v199
    %v1620 = vunpack.c.l.b16 %v200
    %v1621 = vunpack.c.l.b16 %v201
    %v1622 = vunpack.c.l.b16 %v202
    %v1623 = vunpack.c.l.b16 %v203
    %v1624 = vunpack.c.l.b16 %v204
    %v1625 = vunpack.c.l.b16 %v205
    %v1626 = vunpack.c.l.b16 %v206
    %v1627 = vunpack.c.l.b16 %v207
    %v1628 = vunpack.c.l.b16 %v208
    %v1629 = vunpack.c.l.b16 %v209
    %v1630 = vunpack.c.l.b16 %v210
    %v1631 = vunpack.c.l.b16 %v211
    %v1632 = vunpack.c.l.b16 %v212
    %v1633 = vunpack.c.l.b16 %v213
    %v1634 = vunpack.c.l.b16 %v214
    %v1635 = vunpack.c.l.b16 %v215
    %v1636 = vunpack.c.l.b16 %v216
    %v1637 = vunpack.c.l.b16 %v217
    %v1638 = vunpack.c.l.b16 %v218
    %v1639 = vunpack.c.l.b16 %v219
    %v1640 = vunpack.c.l.b16 %v220
    %v1641 = vunpack.c.l.b16 %v221
    %v1642 = vunpack.c.l.b16 %v222
    %v1643 = vunpack.c.l.b16 %v223
    %v1644 = vunpack.c.l.b16 %v224
    %v1645 = vunpack.c.l.b16 %v225
    %v1646 = vunpack.c.l.b16 %v226
    %v1647 = vunpack.c.l.b16 %v227
    %v1648 = vunpack.c.l.b16 %v228
    %v1649 = vunpack.c.l.b16 %v229
    %v1650 = vunpack.c.l.b16 %v230
    %v1651 = vunpack.c.l.b16 %v231
    %v1652 = vunpack.c.l.b16 %v232
    %v1653 = vunpack.c.l.b16 %v233
    %v1654 = vunpack.c.l.b16 %v234
    %v1655 = vunpack.c.l.b16 %v235
    %v1656 = vunpack.c.l.b16 %v236
    %v1657 = vunpack.c.l.b16 %v237
    %v1658 = vunpack.c.l.b16 %v238
    %v1659 = vunpack.c.l.b16 %v239
    %v1660 = vunpack.c.l.b16 %v240
    %v1661 = vunpack.c.l.b16 %v241
    %v1662 = vunpack.c.l.b16 %v242
    %v1663 = vunpack.c.l.b16 %v243
    %v1664 = vunpack.c.l.b16 %v244
    %v1665 = vunpack.c.l.b16 %v245
    %v1666 = vunpack.c.l.b16 %v246
    %v1667 = vunpack.c.l.b16 %v247
    %v1668 = vunpack.c.l.b16 %v248
    %v1669 = vunpack.c.l.b16 %v249
    %v1670 = vunpack.c.l.b16 %v250
    %v1671 = vunpack.c.l.b16 %v251
    %v1672 = vunpack.c.l.b16 %v252
    %v1673 = vunpack.c.l.b16 %v253
    %v1674 = vunpack.c.l.b16 %v254
    %v1675 = vunpack.c.l.b16 %v255
    %v1676 = vunpack.c.l.b16 %v256
    %v1677 = vunpack.c.l.b16 %v257
    %v1678 = vunpack.c.l.b16 %v258
    %v1679 = vunpack.c.l.b16 %v259
    %v1680 = vunpack.c.l.b16 %v260
    %v1681 = vunpack.c.l.b16 %v261
    %v1682 = vunpack.c.l.b16 %v262
    %v1683 = vunpack.c.l.b16 %v263
    %v1684 = vunpack.c.l.b16 %v264
    %v1685 = vunpack.c.l.b16 %v265
    %v1686 = vunpack.c.l.b16 %v266
    %v1687 = vunpack.c.l.b16 %v267
    %v1688 = vunpack.c.l.b16 %v268
    %v1689 = vunpack.c.l.b16 %v269
    %v1690 = vunpack.c.l.b16 %v270
    %v1691 = vunpack.c.l.b16 %v271
    %v1692 = vunpack.c.l.b16 %v272
    %v1693 = vunpack.c.l.b16 %v273
    %v1694 = vunpack.c.l.b16 %v274
    %v1695 = vunpack.c.l.b16 %v275
    %v1696 = vunpack.c.l.b16 %v276
    %v1697 = vunpack.c.l.b16 %v277
    %v1698 = vunpack.c.l.b16 %v278
    %v1699 = vunpack.c.l.b16 %v279
    %v1700 = vunpack.c.l.b16 %v280
    %v1701 = vunpack.c.l.b16 %v281
    %v1702 = vunpack.c.l.b16 %v282
    %v1703 = vunpack.c.l.b16 %v283
    %v1704 = vunpack.c.l.b16 %v284
    %v1705 = vunpack.c.l.b16 %v285
    %v1706 = vunpack.c.l.b16 %v286
    %v1707 = vunpack.c.l.b16 %v287
    %v1708 = vunpack.c.l.b16 %v288
    %v1709 = vunpack.c.l.b16 %v289
    %v1710 = vunpack.c.l.b16 %v290
    %v1711 = vunpack.c.l.b16 %v291
    %v1712 = vunpack.c.l.b16 %v292
    %v1713 = vunpack.c.l.b16 %v293
    %v1714 = vunpack.c.l.b16 %v294
    %v1715 = vunpack.c.l.b16 %v295
    %v1716 = vunpack.c.l.b16 %v296
    %v1717 = vunpack.c.l.b16 %v297
    %v1718 = vunpack.c.l.b16 %v298
    %v1719 = vunpack.c.l.b16 %v299
    %v1720 = vunpack.c.l.b16 %v300
    %v1721 = vunpack.c.l.b16 %v301
    %v1722 = vunpack.c.l.b16 %v302
    %v1723 = vunpack.c.l.b16 %v303
    %v1724 = vunpack.c.l.b16 %v304
    %v1725 = vunpack.c.l.b16 %v305
    %v1726 = vunpack.c.l.b16 %v306
    %v1727 = vunpack.c.l.b16 %v307
    %v1728 = vunpack.c.l.b16 %v308
    %v1729 = vunpack.c.l.b16 %v309
    %v1730 = vunpack.c.l.b16 %v310
    %v1731 = vunpack.c.l.b16 %v311
    %v1732 = vunpack.c.l.b16 %v312
    %v1733 = vunpack.c.l.b16 %v313
    %v1734 = vunpack.c.l.b16 %v314
    %v1735 = vunpack.c.l.b16 %v315
    %v1736 = vunpack.c.l.b16 %v316
    %v1737 = vunpack.c.l.b16 %v317
    %v1738 = vunpack.c.l.b16 %v318
    %v1739 = vunpack.c.l.b16 %v319
    %v1740 = vunpack.c.l.b16 %v320
    %v1741 = vunpack.c.l.b16 %v321
    %v1742 = vunpack.c.l.b16 %v322
    %v1743 = vunpack.c.l.b16 %v323
    %v1744 = vunpack.c.l.b16 %v324
    %v1745 = vunpack.c.l.b16 %v325
    %v1746 = vunpack.c.l.b16 %v326
    %v1747 = vunpack.c.l.b16 %v327
    %v1748 = vunpack.c.l.b16 %v328
    %v1749 = vunpack.c.l.b16 %v329
    %v1750 = vunpack.c.l.b16 %v330
    %v1751 = vunpack.c.l.b16 %v331
    %v1752 = vunpack.c.l.b16 %v332
    %v1753 = vunpack.c.l.b16 %v333
    %v1754 = vunpack.c.l.b16 %v334
    %v1755 = vunpack.c.l.b16 %v335
    %v1756 = vunpack.c.l.b16 %v336
    %v1757 = vunpack.c.l.b16 %v337
    %v1758 = vunpack.c.l.b16 %v338
    %v1759 = vunpack.c.l.b16 %v339
    %v1760 = vunpack.c.l.b16 %v340
    %v1761 = vunpack.c.l.b16 %v341
    %v1762 = vunpack.c.l.b16 %v342
    %v1763 = vunpack.c.l.b16 %v343
    %v1764 = vunpack.c.l.b16 %v344
    %v1765 = vunpack.c.l.b16 %v345
    %v1766 = vunpack.c.l.b16 %v346
    %v1767 = vunpack.c.l.b16 %v347
    %v1768 = vunpack.c.l.b16 %v348
    %v1769 = vunpack.c.l.b16 %v349
    %v1770 = vunpack.c.l.b16 %v350
    %v1771 = vunpack.c.l.b16 %v351
    %v1772 = vunpack.c.l.b16 %v352
    %v1773 = vunpack.c.l.b16 %v353
    %v1774 = vunpack.c.l.b16 %v354
    %v1775 = vunpack.c.l.b16 %v355
    %v1776 = vunpack.c.l.b16 %v356
    %v1777 = vunpack.c.l.b16 %v357
    %v1778 = vunpack.c.l.b16 %v358
    %v1779 = vunpack.c.l.b16 %v359
    %v1780 = vunpack.c.l.b16 %v360
    %v1781 = vunpack.c.l.b16 %v361
    %v1782 = vunpack.c.l.b16 %v362
    %v1783 = vunpack.c.l.b16 %v363
    %v1784 = vunpack.c.l.b16 %v364
    %v1785 = vunpack.c.l.b16 %v365
    %v1786 = vunpack.c.l.b16 %v366
    %v1787 = vunpack.c.l.b16 %v367
    %v1788 = vunpack.c.l.b16 %v368
    %v1789 = vunpack.c.l.b16 %v369
    %v1790 = vunpack.c.l.b16 %v370
    %v1791 = vunpack.c.l.b16 %v371
    %v1792 = vunpack.c.l.b16 %v372
    %v1793 = vunpack.c.l.b16 %v373
    %v1794 = vunpack.c.l.b16 %v374
    %v1795 = vunpack.c.l.b16 %v375
    %v1796 = vunpack.c.l.b16 %v376
    %v1797 = vunpack.c.l.b16 %v377
    %v1798 = vunpack.c.l.b16 %v378
    %v1799 = vunpack.c.l.b16 %v379
    %v1800 = vunpack.c.l.b16 %v380
    %v1801 = vunpack.c.l.b16 %v381
    %v1802 = vunpack.c.l.b16 %v382
    %v1803 = vunpack.c.l.b16 %v383
    %v1804 = vunpack.c.l.b16 %v384
    %v1805 = vunpack.c.l.b16 %v385
    %v1806 = vunpack.c.l.b16 %v386
    %v1807 = vunpack.c.l.b16 %v387
    %v1808 = vunpack.c.l.b16 %v388
    %v1809 = vunpack.c.l.b16 %v389
    %v1810 = vunpack.c.l.b16 %v390
    %v1811 = vunpack.c.l.b16 %v391
    %v1812 = vunpack.c.l.b16 %v392
    %v1813 = vunpack.c.l.b16 %v393
    %v1814 = vunpack.c.l.b16 %v394
    %v1815 = vunpack.c.l.b16 %v395
    %v1816 = vunpack.c.l.b16 %v396
    %v1817 = vunpack.c.l.b16 %v397
    %v1818 = vunpack.c.l.b16 %v398
    %v1819 = vunpack.c.l.b16 %v399
    %v1820 = vunpack.c.l.b16 %v400
    %v1821 = vunpack.c.l.b16 %v401
    %v1822 = vunpack.c.l.b16 %v402
    %v1823 = vunpack.c.l.b16 %v403
    %v1824 = vunpack.c.l.b16 %v404
    %v1825 = vunpack.c.l.b16 %v405
    %v1826 = vunpack.c.l.b16 %v406
    %v1827 = vunpack.c.l.b16 %v407
    %v1828 = vunpack.c.l.b16 %v408
    %v1829 = vunpack.c.l.b16 %v409
    %v1830 = vunpack.c.l.b16 %v410
    %v1831 = vunpack.c.l.b16 %v411
    %v1832 = vunpack.c.l.b16 %v412
    %v1833 = vunpack.c.l.b16 %v413
    %v1834 = vunpack.c.l.b16 %v414
    %v1835 = vunpack.c.l.b16 %v415
    %v1836 = vunpack.c.l.b16 %v416
    %v1837 = vunpack.c.l.b16 %v417
    %v1838 = vunpack.c.l.b16 %v418
    %v1839 = vunpack.c.l.b16 %v419
    %v1840 = vunpack.c.l.b16 %v420
    %v1841 = vunpack.c.l.b16 %v421
    %v1842 = vunpack.c.l.b16 %v422
    %v1843 = vunpack.c.l.b16 %v423
    %v1844 = vunpack.c.l.b16 %v424
    %v1845 = vunpack.c.l.b16 %v425
    %v1846 = vunpack.c.l.b16 %v426
    %v1847 = vunpack.c.l.b16 %v427
    %v1848 = vunpack.c.l.b16 %v428
    %v1849 = vunpack.c.l.b16 %v429
    %v1850 = vunpack.c.l.b16 %v430
    %v1851 = vunpack.c.l.b16 %v431
    %v1852 = vunpack.c.l.b16 %v432
    %v1853 = vunpack.c.l.b16 %v433
    %v1854 = vunpack.c.l.b16 %v434
    %v1855 = vunpack.c.l.b16 %v435
    %v1856 = vunpack.c.l.b16 %v436
    %v1857 = vunpack.c.l.b16 %v437
    %v1858 = vunpack.c.l.b16 %v438
    %v1859 = vunpack.c.l.b16 %v439
    %v1860 = vunpack.c.l.b16 %v440
    %v1861 = vunpack.c.l.b16 %v441
    %v1862 = vunpack.c.l.b16 %v442
    %v1863 = vunpack.c.l.b16 %v443
    %v1864 = vunpack.c.l.b16 %v444
    %v1865 = vpack.c.b16 %v1610, %v1609
    %v1866 = vpack.c.b16 %v1612, %v1611
    %v1867 = vpack.c.b16 %v1614, %v1613
    %v1868 = vpack.c.b16 %v1616, %v1615
    %v1869 = vpack.c.b16 %v1618, %v1617
    %v1870 = vpack.c.b16 %v1620, %v1619
    %v1871 = vpack.c.b16 %v1622, %v1621
    %v1872 = vpack.c.b16 %v1624, %v1623
    %v1873 = vpack.c.b16 %v1626, %v1625
    %v1874 = vpack.c.b16 %v1628, %v1627
    %v1875 = vpack.c.b16 %v1630, %v1629
    %v1876 = vpack.c.b16 %v1632, %v1631
    %v1877 = vpack.c.b16 %v1634, %v1633
    %v1878 = vpack.c.b16 %v1636, %v1635
    %v1879 = vpack.c.b16 %v1638, %v1637
    %v1880 = vpack.c.b16 %v1640, %v1639
    %v1881 = vpack.c.b16 %v1642, %v1641
    %v1882 = vpack.c.b16 %v1644, %v1643
    %v1883 = vpack.c.b16 %v1646, %v1645
    %v1884 = vpack.c.b16 %v1648, %v1647
    %v1885 = vpack.c.b16 %v1650, %v1649
    %v1886 = vpack.c.b16 %v1652, %v1651
    %v1887 = vpack.c.b16 %v1654, %v1653
    %v1888 = vpack.c.b16 %v1656, %v1655
    %v1889 = vpack.c.b16 %v1658, %v1657
    %v1890 = vpack.c.b16 %v1660, %v1659
    %v1891 = vpack.c.b16 %v1662, %v1661
    %v1892 = vpack.c.b16 %v1664, %v1663
    %v1893 = vpack.c.b16 %v1666, %v1665
    %v1894 = vpack.c.b16 %v1668, %v1667
    %v1895 = vpack.c.b16 %v1670, %v1669
    %v1896 = vpack.c.b16 %v1672, %v1671
    %v1897 = vpack.c.b16 %v1674, %v1673
    %v1898 = vpack.c.b16 %v1676, %v1675
    %v1899 = vpack.c.b16 %v1678, %v1677
    %v1900 = vpack.c.b16 %v1680, %v1679
    %v1901 = vpack.c.b16 %v1682, %v1681
    %v1902 = vpack.c.b16 %v1684, %v1683
    %v1903 = vpack.c.b16 %v1686, %v1685
    %v1904 = vpack.c.b16 %v1688, %v1687
    %v1905 = vpack.c.b16 %v1690, %v1689
    %v1906 = vpack.c.b16 %v1692, %v1691
    %v1907 = vpack.c.b16 %v1694, %v1693
    %v1908 = vpack.c.b16 %v1696, %v1695
    %v1909 = vpack.c.b16 %v1698, %v1697
    %v1910 = vpack.c.b16 %v1700, %v1699
    %v1911 = vpack.c.b16 %v1702, %v1701
    %v1912 = vpack.c.b16 %v1704, %v1703
    %v1913 = vpack.c.b16 %v1706, %v1705
    %v1914 = vpack.c.b16 %v1708, %v1707
    %v1915 = vpack.c.b16 %v1710, %v1709
    %v1916 = vpack.c.b16 %v1712, %v1711
    %v1917 = vpack.c.b16 %v1714, %v1713
    %v1918 = vpack.c.b16 %v1716, %v1715
    %v1919 = vpack.c.b16 %v1718, %v1717
    %v1920 = vpack.c.b16 %v1720, %v1719
    %v1921 = vpack.c.b16 %v1722, %v1721
    %v1922 = vpack.c.b16 %v1724, %v1723
    %v1923 = vpack.c.b16 %v1726, %v1725
    %v1924 = vpack.c.b16 %v1728, %v1727
    %v1925 = vpack.c.b16 %v1730, %v1729
    %v1926 = vpack.c.b16 %v1732, %v1731
    %v1927 = vpack.c.b16 %v1734, %v1733
    %v1928 = vpack.c.b16 %v1736, %v1735
    %v1929 = vpack.c.b16 %v1738, %v1737
    %v1930 = vpack.c.b16 %v1740, %v1739
    %v1931 = vpack.c.b16 %v1742, %v1741
    %v1932 = vpack.c.b16 %v1744, %v1743
    %v1933 = vpack.c.b16 %v1746, %v1745
    %v1934 = vpack.c.b16 %v1748, %v1747
    %v1935 = vpack.c.b16 %v1750, %v1749
    %v1936 = vpack.c.b16 %v1752, %v1751
    %v1937 = vpack.c.b16 %v1754, %v1753
    %v1938 = vpack.c.b16 %v1756, %v1755
    %v1939 = vpack.c.b16 %v1758, %v1757
    %v1940 = vpack.c.b16 %v1760, %v1759
    %v1941 = vpack.c.b16 %v1762, %v1761
    %v1942 = vpack.c.b16 %v1764, %v1763
    %v1943 = vpack.c.b16 %v1766, %v1765
    %v1944 = vpack.c.b16 %v1768, %v1767
    %v1945 = vpack.c.b16 %v1770, %v1769
    %v1946 = vpack.c.b16 %v1772, %v1771
    %v1947 = vpack.c.b16 %v1774, %v1773
    %v1948 = vpack.c.b16 %v1776, %v1775
    %v1949 = vpack.c.b16 %v1778, %v1777
    %v1950 = vpack.c.b16 %v1780, %v1779
    %v1951 = vpack.c.b16 %v1782, %v1781
    %v1952 = vpack.c.b16 %v1784, %v1783
    %v1953 = vpack.c.b16 %v1786, %v1785
    %v1954 = vpack.c.b16 %v1788, %v1787
    %v1955 = vpack.c.b16 %v1790, %v1789
    %v1956 = vpack.c.b16 %v1792, %v1791
    %v1957 = vpack.c.b16 %v1794, %v1793
    %v1958 = vpack.c.b16 %v1796, %v1795
    %v1959 = vpack.c.b16 %v1798, %v1797
    %v1960 = vpack.c.b16 %v1800, %v1799
    %v1961 = vpack.c.b16 %v1802, %v1801
    %v1962 = vpack.c.b16 %v1804, %v1803
    %v1963 = vpack.c.b16 %v1806, %v1805
    %v1964 = vpack.c.b16 %v1808, %v1807
    %v1965 = vpack.c.b16 %v1810, %v1809
    %v1966 = vpack.c.b16 %v1812, %v1811
    %v1967 = vpack.c.b16 %v1814, %v1813
    %v1968 = vpack.c.b16 %v1816, %v1815
    %v1969 = vpack.c.b16 %v1818, %v1817
    %v1970 = vpack.c.b16 %v1820, %v1819
    %v1971 = vpack.c.b16 %v1822, %v1821
    %v1972 = vpack.c.b16 %v1824, %v1823
    %v1973 = vpack.c.b16 %v1826, %v1825
    %v1974 = vpack.c.b16 %v1828, %v1827
    %v1975 = vpack.c.b16 %v1830, %v1829
    %v1976 = vpack.c.b16 %v1832, %v1831
    %v1977 = vpack.c.b16 %v1834, %v1833
    %v1978 = vpack.c.b16 %v1836, %v1835
    %v1979 = vpack.c.b16 %v1838, %v1837
    %v1980 = vpack.c.b16 %v1840, %v1839
    %v1981 = vpack.c.b16 %v1842, %v1841
    %v1982 = vpack.c.b16 %v1844, %v1843
    %v1983 = vpack.c.b16 %v1846, %v1845
    %v1984 = vpack.c.b16 %v1848, %v1847
    %v1985 = vpack.c.b16 %v1850, %v1849
    %v1986 = vpack.c.b16 %v1852, %v1851
    %v1987 = vpack.c.b16 %v1854, %v1853
    %v1988 = vpack.c.b16 %v1856, %v1855
    %v1989 = vpack.c.b16 %v1858, %v1857
    %v1990 = vpack.c.b16 %v1860, %v1859
    %v1991 = vpack.c.b16 %v1862, %v1861
    %v1992 = vpack.c.b16 %v1864, %v1863
    %2121 = vmatprep.subr.bf16.mxu0 0
    %2122 = vmatpush1.bf16.msra.mxu0 %v1872
    %2123 = vmatprep.subr.bf16.mxu0 0
    %2124 = vmatpush1.bf16.msra.mxu0 %v1871
    %2125 = vmatprep.subr.bf16.mxu0 0
    %2126 = vmatpush1.bf16.msra.mxu0 %v1870
    %2127 = vmatprep.subr.bf16.mxu0 0
    %2128 = vmatpush1.bf16.msra.mxu0 %v1869
    %2129 = vmatprep.subr.bf16.mxu0 0
    %2130 = vmatpush1.bf16.msra.mxu0 %v1868
    %2131 = vmatprep.subr.bf16.mxu0 0
    %2132 = vmatpush1.bf16.msra.mxu0 %v1867
    %2133 = vmatprep.subr.bf16.mxu0 0
    %2134 = vmatpush1.bf16.msra.mxu0 %v1866
    %2135 = vmatprep.subr.bf16.mxu0 0
    %2136 = vmatpush1.bf16.msra.mxu0 %v1865
    %2137 = vmatprep.subr.bf16.mxu0 0
    %2138 = vmatpush2.bf16.msra.mxu0 %v1880
    %2139 = vmatprep.subr.bf16.mxu0 0
    %2140 = vmatpush2.bf16.msra.mxu0 %v1879
    %2141 = vmatprep.subr.bf16.mxu0 0
    %2142 = vmatpush2.bf16.msra.mxu0 %v1878
    %2143 = vmatprep.subr.bf16.mxu0 0
    %2144 = vmatpush2.bf16.msra.mxu0 %v1877
    %2145 = vmatprep.subr.bf16.mxu0 0
    %2146 = vmatpush2.bf16.msra.mxu0 %v1876
    %2147 = vmatprep.subr.bf16.mxu0 0
    %2148 = vmatpush2.bf16.msra.mxu0 %v1875
    %2149 = vmatprep.subr.bf16.mxu0 0
    %2150 = vmatpush2.bf16.msra.mxu0 %v1874
    %2151 = vmatprep.subr.bf16.mxu0 0
    %2152 = vmatpush2.bf16.msra.mxu0 %v1873
    %2153 = vmatprep.mubr.bf16.mxu0 %v699
    %2154 = vmatmul.mubr.bf16.gmra.mxu0 %v698
    %v2155 = vpop.f32.mrf.mxu0
    %v2156 = vadd.f32 %v1351, %v2155
    %v2157 = vpop.f32.mrf.mxu0
    %v2158 = vpop.f32.mrf.mxu0
    %v2159 = vadd.f32 %v1351, %v2158
    %v2160 = vpop.f32.mrf.mxu0
    %2161 = vmatprep.mubr.bf16.mxu0 %v1332
    %2162 = vmatmul.mubr.bf16.gmra.mxu0 %v1331
    %v2163 = vpop.f32.mrf.mxu0
    %v2164 = vadd.f32 %v1351, %v2163
    %v2165 = vpop.f32.mrf.mxu0
    %v2166 = vpop.f32.mrf.mxu0
    %v2167 = vpop.f32.mrf.mxu0
    %2168 = vdwg.mxu0
    %2169 = vmatprep.subr.bf16.mxu0 0
    %2170 = vmatpush1.bf16.msra.mxu0 %v1888
    %2171 = vmatprep.subr.bf16.mxu0 0
    %2172 = vmatpush1.bf16.msra.mxu0 %v1887
    %2173 = vmatprep.subr.bf16.mxu0 0
    %2174 = vmatpush1.bf16.msra.mxu0 %v1886
    %2175 = vmatprep.subr.bf16.mxu0 0
    %2176 = vmatpush1.bf16.msra.mxu0 %v1885
    %2177 = vmatprep.subr.bf16.mxu0 0
    %2178 = vmatpush1.bf16.msra.mxu0 %v1884
    %2179 = vmatprep.subr.bf16.mxu0 0
    %2180 = vmatpush1.bf16.msra.mxu0 %v1883
    %2181 = vmatprep.subr.bf16.mxu0 0
    %2182 = vmatpush1.bf16.msra.mxu0 %v1882
    %2183 = vmatprep.subr.bf16.mxu0 0
    %2184 = vmatpush1.bf16.msra.mxu0 %v1881
    %2185 = vmatprep.subr.bf16.mxu0 0
    %2186 = vmatpush2.bf16.msra.mxu0 %v1896
    %2187 = vmatprep.subr.bf16.mxu0 0
    %2188 = vmatpush2.bf16.msra.mxu0 %v1895
    %2189 = vmatprep.subr.bf16.mxu0 0
    %2190 = vmatpush2.bf16.msra.mxu0 %v1894
    %2191 = vmatprep.subr.bf16.mxu0 0
    %2192 = vmatpush2.bf16.msra.mxu0 %v1893
    %2193 = vmatprep.subr.bf16.mxu0 0
    %2194 = vmatpush2.bf16.msra.mxu0 %v1892
    %2195 = vmatprep.subr.bf16.mxu0 0
    %2196 = vmatpush2.bf16.msra.mxu0 %v1891
    %2197 = vmatprep.subr.bf16.mxu0 0
    %2198 = vmatpush2.bf16.msra.mxu0 %v1890
    %2199 = vmatprep.subr.bf16.mxu0 0
    %2200 = vmatpush2.bf16.msra.mxu0 %v1889
    %2201 = vmatprep.mubr.bf16.mxu0 %v701
    %2202 = vmatmul.mubr.bf16.gmra.mxu0 %v700
    %v2203 = vpop.f32.mrf.mxu0
    %v2204 = vadd.f32 %v2156, %v2203
    %v2205 = vpop.f32.mrf.mxu0
    %v2206 = vpop.f32.mrf.mxu0
    %v2207 = vadd.f32 %v2159, %v2206
    %v2208 = vpop.f32.mrf.mxu0
    %2209 = vmatprep.mubr.bf16.mxu0 %v1334
    %2210 = vmatmul.mubr.bf16.gmra.mxu0 %v1333
    %v2211 = vpop.f32.mrf.mxu0
    %v2212 = vadd.f32 %v2164, %v2211
    %v2213 = vpop.f32.mrf.mxu0
    %v2214 = vpop.f32.mrf.mxu0
    %v2215 = vpop.f32.mrf.mxu0
    %2216 = vdwg.mxu0
    %2217 = vmatprep.subr.bf16.mxu0 0
    %2218 = vmatpush1.bf16.msra.mxu0 %v1904
    %2219 = vmatprep.subr.bf16.mxu0 0
    %2220 = vmatpush1.bf16.msra.mxu0 %v1903
    %2221 = vmatprep.subr.bf16.mxu0 0
    %2222 = vmatpush1.bf16.msra.mxu0 %v1902
    %2223 = vmatprep.subr.bf16.mxu0 0
    %2224 = vmatpush1.bf16.msra.mxu0 %v1901
    %2225 = vmatprep.subr.bf16.mxu0 0
    %2226 = vmatpush1.bf16.msra.mxu0 %v1900
    %2227 = vmatprep.subr.bf16.mxu0 0
    %2228 = vmatpush1.bf16.msra.mxu0 %v1899
    %2229 = vmatprep.subr.bf16.mxu0 0
    %2230 = vmatpush1.bf16.msra.mxu0 %v1898
    %2231 = vmatprep.subr.bf16.mxu0 0
    %2232 = vmatpush1.bf16.msra.mxu0 %v1897
    %2233 = vmatprep.subr.bf16.mxu0 0
    %2234 = vmatpush2.bf16.msra.mxu0 %v1912
    %2235 = vmatprep.subr.bf16.mxu0 0
    %2236 = vmatpush2.bf16.msra.mxu0 %v1911
    %2237 = vmatprep.subr.bf16.mxu0 0
    %2238 = vmatpush2.bf16.msra.mxu0 %v1910
    %2239 = vmatprep.subr.bf16.mxu0 0
    %2240 = vmatpush2.bf16.msra.mxu0 %v1909
    %2241 = vmatprep.subr.bf16.mxu0 0
    %2242 = vmatpush2.bf16.msra.mxu0 %v1908
    %2243 = vmatprep.subr.bf16.mxu0 0
    %2244 = vmatpush2.bf16.msra.mxu0 %v1907
    %2245 = vmatprep.subr.bf16.mxu0 0
    %2246 = vmatpush2.bf16.msra.mxu0 %v1906
    %2247 = vmatprep.subr.bf16.mxu0 0
    %2248 = vmatpush2.bf16.msra.mxu0 %v1905
    %2249 = vmatprep.mubr.bf16.mxu0 %v703
    %2250 = vmatmul.mubr.bf16.gmra.mxu0 %v702
    %v2251 = vpop.f32.mrf.mxu0
    %v2252 = vadd.f32 %v2204, %v2251
    %v2253 = vpop.f32.mrf.mxu0
    %v2254 = vpop.f32.mrf.mxu0
    %v2255 = vadd.f32 %v2207, %v2254
    %v2256 = vpop.f32.mrf.mxu0
    %2257 = vmatprep.mubr.bf16.mxu0 %v1336
    %2258 = vmatmul.mubr.bf16.gmra.mxu0 %v1335
    %v2259 = vpop.f32.mrf.mxu0
    %v2260 = vadd.f32 %v2212, %v2259
    %v2261 = vpop.f32.mrf.mxu0
    %v2262 = vpop.f32.mrf.mxu0
    %v2263 = vpop.f32.mrf.mxu0
    %2264 = vdwg.mxu0
    %2265 = vmatprep.subr.bf16.mxu0 0
    %2266 = vmatpush1.bf16.msra.mxu0 %v1920
    %2267 = vmatprep.subr.bf16.mxu0 0
    %2268 = vmatpush1.bf16.msra.mxu0 %v1919
    %2269 = vmatprep.subr.bf16.mxu0 0
    %2270 = vmatpush1.bf16.msra.mxu0 %v1918
    %2271 = vmatprep.subr.bf16.mxu0 0
    %2272 = vmatpush1.bf16.msra.mxu0 %v1917
    %2273 = vmatprep.subr.bf16.mxu0 0
    %2274 = vmatpush1.bf16.msra.mxu0 %v1916
    %2275 = vmatprep.subr.bf16.mxu0 0
    %2276 = vmatpush1.bf16.msra.mxu0 %v1915
    %2277 = vmatprep.subr.bf16.mxu0 0
    %2278 = vmatpush1.bf16.msra.mxu0 %v1914
    %2279 = vmatprep.subr.bf16.mxu0 0
    %2280 = vmatpush1.bf16.msra.mxu0 %v1913
    %2281 = vmatprep.subr.bf16.mxu0 0
    %2282 = vmatpush2.bf16.msra.mxu0 %v1928
    %2283 = vmatprep.subr.bf16.mxu0 0
    %2284 = vmatpush2.bf16.msra.mxu0 %v1927
    %2285 = vmatprep.subr.bf16.mxu0 0
    %2286 = vmatpush2.bf16.msra.mxu0 %v1926
    %2287 = vmatprep.subr.bf16.mxu0 0
    %2288 = vmatpush2.bf16.msra.mxu0 %v1925
    %2289 = vmatprep.subr.bf16.mxu0 0
    %2290 = vmatpush2.bf16.msra.mxu0 %v1924
    %2291 = vmatprep.subr.bf16.mxu0 0
    %2292 = vmatpush2.bf16.msra.mxu0 %v1923
    %2293 = vmatprep.subr.bf16.mxu0 0
    %2294 = vmatpush2.bf16.msra.mxu0 %v1922
    %2295 = vmatprep.subr.bf16.mxu0 0
    %2296 = vmatpush2.bf16.msra.mxu0 %v1921
    %2297 = vmatprep.mubr.bf16.mxu0 %v705
    %2298 = vmatmul.mubr.bf16.gmra.mxu0 %v704
    %v2299 = vpop.f32.mrf.mxu0
    %v2300 = vadd.f32 %v2252, %v2299
    %v2301 = vpop.f32.mrf.mxu0
    %v2302 = vpop.f32.mrf.mxu0
    %v2303 = vadd.f32 %v2255, %v2302
    %v2304 = vpop.f32.mrf.mxu0
    %2305 = vmatprep.mubr.bf16.mxu0 %v1338
    %2306 = vmatmul.mubr.bf16.gmra.mxu0 %v1337
    %v2307 = vpop.f32.mrf.mxu0
    %v2308 = vadd.f32 %v2260, %v2307
    %v2309 = vpop.f32.mrf.mxu0
    %v2310 = vpop.f32.mrf.mxu0
    %v2311 = vpop.f32.mrf.mxu0
    %2312 = vdwg.mxu0
    %2313 = vmatprep.subr.bf16.mxu0 0
    %2314 = vmatpush1.bf16.msra.mxu0 %v1936
    %2315 = vmatprep.subr.bf16.mxu0 0
    %2316 = vmatpush1.bf16.msra.mxu0 %v1935
    %2317 = vmatprep.subr.bf16.mxu0 0
    %2318 = vmatpush1.bf16.msra.mxu0 %v1934
    %2319 = vmatprep.subr.bf16.mxu0 0
    %2320 = vmatpush1.bf16.msra.mxu0 %v1933
    %2321 = vmatprep.subr.bf16.mxu0 0
    %2322 = vmatpush1.bf16.msra.mxu0 %v1932
    %2323 = vmatprep.subr.bf16.mxu0 0
    %2324 = vmatpush1.bf16.msra.mxu0 %v1931
    %2325 = vmatprep.subr.bf16.mxu0 0
    %2326 = vmatpush1.bf16.msra.mxu0 %v1930
    %2327 = vmatprep.subr.bf16.mxu0 0
    %2328 = vmatpush1.bf16.msra.mxu0 %v1929
    %2329 = vmatprep.subr.bf16.mxu0 0
    %2330 = vmatpush2.bf16.msra.mxu0 %v1944
    %2331 = vmatprep.subr.bf16.mxu0 0
    %2332 = vmatpush2.bf16.msra.mxu0 %v1943
    %2333 = vmatprep.subr.bf16.mxu0 0
    %2334 = vmatpush2.bf16.msra.mxu0 %v1942
    %2335 = vmatprep.subr.bf16.mxu0 0
    %2336 = vmatpush2.bf16.msra.mxu0 %v1941
    %2337 = vmatprep.subr.bf16.mxu0 0
    %2338 = vmatpush2.bf16.msra.mxu0 %v1940
    %2339 = vmatprep.subr.bf16.mxu0 0
    %2340 = vmatpush2.bf16.msra.mxu0 %v1939
    %2341 = vmatprep.subr.bf16.mxu0 0
    %2342 = vmatpush2.bf16.msra.mxu0 %v1938
    %2343 = vmatprep.subr.bf16.mxu0 0
    %2344 = vmatpush2.bf16.msra.mxu0 %v1937
    %2345 = vmatprep.mubr.bf16.mxu0 %v1324
    %2346 = vmatmul.mubr.bf16.gmra.mxu0 %v1323
    %v2347 = vpop.f32.mrf.mxu0
    %v2348 = vadd.f32 %v2300, %v2347
    %v2349 = vpop.f32.mrf.mxu0
    %v2350 = vpop.f32.mrf.mxu0
    %v2351 = vadd.f32 %v2303, %v2350
    %v2352 = vpop.f32.mrf.mxu0
    %2353 = vmatprep.mubr.bf16.mxu0 %v1340
    %2354 = vmatmul.mubr.bf16.gmra.mxu0 %v1339
    %v2355 = vpop.f32.mrf.mxu0
    %v2356 = vadd.f32 %v2308, %v2355
    %v2357 = vpop.f32.mrf.mxu0
    %v2358 = vpop.f32.mrf.mxu0
    %v2359 = vpop.f32.mrf.mxu0
    %2360 = vdwg.mxu0
    %2361 = vmatprep.subr.bf16.mxu0 0
    %2362 = vmatpush1.bf16.msra.mxu0 %v1952
    %2363 = vmatprep.subr.bf16.mxu0 0
    %2364 = vmatpush1.bf16.msra.mxu0 %v1951
    %2365 = vmatprep.subr.bf16.mxu0 0
    %2366 = vmatpush1.bf16.msra.mxu0 %v1950
    %2367 = vmatprep.subr.bf16.mxu0 0
    %2368 = vmatpush1.bf16.msra.mxu0 %v1949
    %2369 = vmatprep.subr.bf16.mxu0 0
    %2370 = vmatpush1.bf16.msra.mxu0 %v1948
    %2371 = vmatprep.subr.bf16.mxu0 0
    %2372 = vmatpush1.bf16.msra.mxu0 %v1947
    %2373 = vmatprep.subr.bf16.mxu0 0
    %2374 = vmatpush1.bf16.msra.mxu0 %v1946
    %2375 = vmatprep.subr.bf16.mxu0 0
    %2376 = vmatpush1.bf16.msra.mxu0 %v1945
    %2377 = vmatprep.subr.bf16.mxu0 0
    %2378 = vmatpush2.bf16.msra.mxu0 %v1960
    %2379 = vmatprep.subr.bf16.mxu0 0
    %2380 = vmatpush2.bf16.msra.mxu0 %v1959
    %2381 = vmatprep.subr.bf16.mxu0 0
    %2382 = vmatpush2.bf16.msra.mxu0 %v1958
    %2383 = vmatprep.subr.bf16.mxu0 0
    %2384 = vmatpush2.bf16.msra.mxu0 %v1957
    %2385 = vmatprep.subr.bf16.mxu0 0
    %2386 = vmatpush2.bf16.msra.mxu0 %v1956
    %2387 = vmatprep.subr.bf16.mxu0 0
    %2388 = vmatpush2.bf16.msra.mxu0 %v1955
    %2389 = vmatprep.subr.bf16.mxu0 0
    %2390 = vmatpush2.bf16.msra.mxu0 %v1954
    %2391 = vmatprep.subr.bf16.mxu0 0
    %2392 = vmatpush2.bf16.msra.mxu0 %v1953
    %2393 = vmatprep.mubr.bf16.mxu0 %v1326
    %2394 = vmatmul.mubr.bf16.gmra.mxu0 %v1325
    %v2395 = vpop.f32.mrf.mxu0
    %v2396 = vadd.f32 %v2348, %v2395
    %v2397 = vpop.f32.mrf.mxu0
    %v2398 = vpop.f32.mrf.mxu0
    %v2399 = vadd.f32 %v2351, %v2398
    %v2400 = vpop.f32.mrf.mxu0
    %2401 = vmatprep.mubr.bf16.mxu0 %v1342
    %2402 = vmatmul.mubr.bf16.gmra.mxu0 %v1341
    %v2403 = vpop.f32.mrf.mxu0
    %v2404 = vadd.f32 %v2356, %v2403
    %v2405 = vpop.f32.mrf.mxu0
    %v2406 = vpop.f32.mrf.mxu0
    %v2407 = vpop.f32.mrf.mxu0
    %2408 = vdwg.mxu0
    %2409 = vmatprep.subr.bf16.mxu0 0
    %2410 = vmatpush1.bf16.msra.mxu0 %v1968
    %2411 = vmatprep.subr.bf16.mxu0 0
    %2412 = vmatpush1.bf16.msra.mxu0 %v1967
    %2413 = vmatprep.subr.bf16.mxu0 0
    %2414 = vmatpush1.bf16.msra.mxu0 %v1966
    %2415 = vmatprep.subr.bf16.mxu0 0
    %2416 = vmatpush1.bf16.msra.mxu0 %v1965
    %2417 = vmatprep.subr.bf16.mxu0 0
    %2418 = vmatpush1.bf16.msra.mxu0 %v1964
    %2419 = vmatprep.subr.bf16.mxu0 0
    %2420 = vmatpush1.bf16.msra.mxu0 %v1963
    %2421 = vmatprep.subr.bf16.mxu0 0
    %2422 = vmatpush1.bf16.msra.mxu0 %v1962
    %2423 = vmatprep.subr.bf16.mxu0 0
    %2424 = vmatpush1.bf16.msra.mxu0 %v1961
    %2425 = vmatprep.subr.bf16.mxu0 0
    %2426 = vmatpush2.bf16.msra.mxu0 %v1976
    %2427 = vmatprep.subr.bf16.mxu0 0
    %2428 = vmatpush2.bf16.msra.mxu0 %v1975
    %2429 = vmatprep.subr.bf16.mxu0 0
    %2430 = vmatpush2.bf16.msra.mxu0 %v1974
    %2431 = vmatprep.subr.bf16.mxu0 0
    %2432 = vmatpush2.bf16.msra.mxu0 %v1973
    %2433 = vmatprep.subr.bf16.mxu0 0
    %2434 = vmatpush2.bf16.msra.mxu0 %v1972
    %2435 = vmatprep.subr.bf16.mxu0 0
    %2436 = vmatpush2.bf16.msra.mxu0 %v1971
    %2437 = vmatprep.subr.bf16.mxu0 0
    %2438 = vmatpush2.bf16.msra.mxu0 %v1970
    %2439 = vmatprep.subr.bf16.mxu0 0
    %2440 = vmatpush2.bf16.msra.mxu0 %v1969
    %2441 = vmatprep.mubr.bf16.mxu0 %v1328
    %2442 = vmatmul.mubr.bf16.gmra.mxu0 %v1327
    %v2443 = vpop.f32.mrf.mxu0
    %v2444 = vadd.f32 %v2396, %v2443
    %v2445 = vpop.f32.mrf.mxu0
    %v2446 = vpop.f32.mrf.mxu0
    %v2447 = vadd.f32 %v2399, %v2446
    %v2448 = vpop.f32.mrf.mxu0
    %2449 = vmatprep.mubr.bf16.mxu0 %v1344
    %2450 = vmatmul.mubr.bf16.gmra.mxu0 %v1343
    %v2451 = vpop.f32.mrf.mxu0
    %v2452 = vadd.f32 %v2404, %v2451
    %v2453 = vpop.f32.mrf.mxu0
    %v2454 = vpop.f32.mrf.mxu0
    %v2455 = vpop.f32.mrf.mxu0
    %2456 = vdwg.mxu0
    %2457 = vmatprep.subr.bf16.mxu0 0
    %2458 = vmatpush1.bf16.msra.mxu0 %v1984
    %2459 = vmatprep.subr.bf16.mxu0 0
    %2460 = vmatpush1.bf16.msra.mxu0 %v1983
    %2461 = vmatprep.subr.bf16.mxu0 0
    %2462 = vmatpush1.bf16.msra.mxu0 %v1982
    %2463 = vmatprep.subr.bf16.mxu0 0
    %2464 = vmatpush1.bf16.msra.mxu0 %v1981
    %2465 = vmatprep.subr.bf16.mxu0 0
    %2466 = vmatpush1.bf16.msra.mxu0 %v1980
    %2467 = vmatprep.subr.bf16.mxu0 0
    %2468 = vmatpush1.bf16.msra.mxu0 %v1979
    %2469 = vmatprep.subr.bf16.mxu0 0
    %2470 = vmatpush1.bf16.msra.mxu0 %v1978
    %2471 = vmatprep.subr.bf16.mxu0 0
    %2472 = vmatpush1.bf16.msra.mxu0 %v1977
    %2473 = vmatprep.subr.bf16.mxu0 0
    %2474 = vmatpush2.bf16.msra.mxu0 %v1992
    %2475 = vmatprep.subr.bf16.mxu0 0
    %2476 = vmatpush2.bf16.msra.mxu0 %v1991
    %2477 = vmatprep.subr.bf16.mxu0 0
    %2478 = vmatpush2.bf16.msra.mxu0 %v1990
    %2479 = vmatprep.subr.bf16.mxu0 0
    %2480 = vmatpush2.bf16.msra.mxu0 %v1989
    %2481 = vmatprep.subr.bf16.mxu0 0
    %2482 = vmatpush2.bf16.msra.mxu0 %v1988
    %2483 = vmatprep.subr.bf16.mxu0 0
    %2484 = vmatpush2.bf16.msra.mxu0 %v1987
    %2485 = vmatprep.subr.bf16.mxu0 0
    %2486 = vmatpush2.bf16.msra.mxu0 %v1986
    %2487 = vmatprep.subr.bf16.mxu0 0
    %2488 = vmatpush2.bf16.msra.mxu0 %v1985
    %2489 = vmatprep.mubr.bf16.mxu0 %v1330
    %2490 = vmatmul.mubr.bf16.gmra.mxu0 %v1329
    %v2491 = vpop.f32.mrf.mxu0
    %v2492 = vadd.f32 %v2444, %v2491
    %v2493 = vpop.f32.mrf.mxu0
    %v2494 = vpop.f32.mrf.mxu0
    %v2495 = vadd.f32 %v2447, %v2494
    %v2496 = vpop.f32.mrf.mxu0
    %2497 = vmatprep.mubr.bf16.mxu0 %v1346
    %2498 = vmatmul.mubr.bf16.gmra.mxu0 %v1345
    %v2499 = vpop.f32.mrf.mxu0
    %v2500 = vadd.f32 %v2452, %v2499
    %v2501 = vpop.f32.mrf.mxu0
    %v2502 = vpop.f32.mrf.mxu0
    %v2503 = vpop.f32.mrf.mxu0
    %2504 = vdwg.mxu0
    %v2505 = vsel %vm1300, %v2492, -inf
    %v2506 = vsel %vm1300, %v2495, -inf
    %v2507 = vsel %vm1304, %v2500, -inf
    %v2508 = vmax.f32 %v2505, %v2506
    %v2509 = vmax.f32 %v2508, %v2507
    %v2510 = vrot.slane %v2509, 4
    %v2511 = vmax.f32 %v2509, %v2510
    %v2512 = vrot.slane %v2511, 2
    %v2513 = vmax.f32 %v2511, %v2512
    %v2514 = vrot.slane %v2513, 1
    %v2515 = vmax.f32 %v2513, %v2514
    %v2516 = vmax.f32 %v2515, 0.0
    %s2517 = scalar_lea.vmem %s0, 40
    %v2518 = vld [vmem:[%s2517] sm:$0xff]
    %v2519 = vld [vmem:[%s2517 + $0x8] sm:$0xff]
    %v2520 = vld [vmem:[%s2517 + $0x10] sm:$0xff]
    %v2521 = vld [vmem:[%s2517 + $0x18] sm:$0xff]
    %v2522 = vld [vmem:[%s2517 + $0x20] sm:$0x3]
    %2523 = vset.pattern.permute.xlu0 0
    %2524 = vperm.xlu0 %2523, %v2518
    %v2525 = vpop.permute.xlu0 %2524
    %2526 = vset.pattern.permute.xlu0 0
    %2527 = vperm.xlu0 %2526, %v2519
    %v2528 = vpop.permute.xlu0 %2527
    %2529 = vset.pattern.permute.xlu0 0
    %2530 = vperm.xlu0 %2529, %v2520
    %v2531 = vpop.permute.xlu0 %2530
    %2532 = vset.pattern.permute.xlu0 0
    %2533 = vperm.xlu0 %2532, %v2521
    %v2534 = vpop.permute.xlu0 %2533
    %2535 = vset.pattern.permute.xlu0 0
    %2536 = vperm.xlu0 %2535, %v2522
    %v2537 = vpop.permute.xlu0 %2536
    %v2538 = vrot.slane %v2525, 7
    %v2539 = vrot.slane %v2528, 7
    %v2540 = vsel %vm474, %v2538, %v2539
    %v2541 = vrot.slane %v2531, 7
    %v2542 = vsel %vm474, %v2539, %v2541
    %v2543 = vrot.slane %v2534, 7
    %v2544 = vsel %vm474, %v2541, %v2543
    %v2545 = vsel %vm449, %v2525, %v2538
    %v2546 = vsel %vm449, %v2528, %v2540
    %v2547 = vsel %vm449, %v2531, %v2542
    %v2548 = vsel %vm449, %v2534, %v2544
    %v2549 = vsel %vm449, %v2537, %v2543
    %v2550 = vrot.slane %v2545, 7
    %v2551 = vrot.slane %v2546, 7
    %v2552 = vsel %vm474, %v2550, %v2551
    %v2553 = vrot.slane %v2547, 7
    %v2554 = vsel %vm474, %v2551, %v2553
    %v2555 = vrot.slane %v2548, 7
    %v2556 = vsel %vm474, %v2553, %v2555
    %v2557 = vrot.slane %v2549, 7
    %v2558 = vsel %vm474, %v2555, %v2557
    %v2559 = vsel %vm450, %v2525, %v2550
    %v2560 = vsel %vm450, %v2528, %v2552
    %v2561 = vsel %vm450, %v2531, %v2554
    %v2562 = vsel %vm450, %v2534, %v2556
    %v2563 = vsel %vm450, %v2537, %v2558
    %vm2564 = vcmp.eq.s32.totalorder %v2559, %v453
    %vm2565 = vcmp.eq.s32.totalorder %v2560, %v453
    %vm2566 = vcmp.eq.s32.totalorder %v2561, %v453
    %vm2567 = vcmp.eq.s32.totalorder %v2562, %v453
    %vm2568 = vcmp.eq.s32.totalorder %v2563, %v453
    %v2569 = vsel %vm2564, 1.0, 0.0
    %v2570 = vsel %vm2565, 1.0, 0.0
    %v2571 = vsel %vm2566, 1.0, 0.0
    %v2572 = vsel %vm2567, 1.0, 0.0
    %v2573 = vsel %vm2568, 1.0, 0.0
    %v2574 = vpack.c.bf16 %v2570, %v2569
    %v2575 = vpack.c.bf16 %v2572, %v2571
    %v2576 = vpack.c.bf16 %v2573, %v2573
    %v2580 = vrot.slane %v2574, 1
    %v2581 = vrot.slane %v2575, 1
    %v2582 = vsel %vm523, %v2580, %v2581
    %v2583 = vrot.slane %v2576, 1
    %v2584 = vsel %vm523, %v2581, %v2583
    %v2586 = vsel %vm552, %v2582, 0
    %v2589 = vsel %vm552, %v2584, 0
    %2591 = vmatprep.subr.bf16.mxu0 0
    %2592 = vmatpush1.bf16.msra.mxu0 0
    %2593 = vmatprep.subr.bf16.mxu0 0
    %2594 = vmatpush1.bf16.msra.mxu0 0
    %2595 = vmatprep.subr.bf16.mxu0 0
    %2596 = vmatpush1.bf16.msra.mxu0 0
    %2597 = vmatprep.subr.bf16.mxu0 0
    %2598 = vmatpush1.bf16.msra.mxu0 0
    %2599 = vmatprep.subr.bf16.mxu0 0
    %2600 = vmatpush1.bf16.msra.mxu0 %v561
    %2601 = vmatprep.subr.bf16.mxu0 0
    %2602 = vmatpush1.bf16.msra.mxu0 %v547
    %2603 = vmatprep.subr.bf16.mxu0 0
    %2604 = vmatpush1.bf16.msra.mxu0 %v546
    %2605 = vmatprep.subr.bf16.mxu0 0
    %2606 = vmatpush1.bf16.msra.mxu0 %v545
    %2607 = vmatprep.subr.bf16.mxu0 0
    %2608 = vmatpush2.bf16.msra.mxu0 0
    %2609 = vmatprep.subr.bf16.mxu0 0
    %2610 = vmatpush2.bf16.msra.mxu0 0
    %2611 = vmatprep.subr.bf16.mxu0 0
    %2612 = vmatpush2.bf16.msra.mxu0 0
    %2613 = vmatprep.subr.bf16.mxu0 0
    %2614 = vmatpush2.bf16.msra.mxu0 0
    %2615 = vmatprep.subr.bf16.mxu0 0
    %2616 = vmatpush2.bf16.msra.mxu0 0
    %2617 = vmatprep.subr.bf16.mxu0 0
    %2618 = vmatpush2.bf16.msra.mxu0 0
    %2619 = vmatprep.subr.bf16.mxu0 0
    %2620 = vmatpush2.bf16.msra.mxu0 0
    %2621 = vmatprep.subr.bf16.mxu0 0
    %2622 = vmatpush2.bf16.msra.mxu0 0
    %2623 = vmatprep.mubr.bf16.mxu0 0
    %2624 = vmatmul.mubr.bf16.gmra.mxu0 %v2586
    %v2625 = vpop.f32.mrf.mxu0
    %v2626 = vadd.f32 %v518, %v2625
    %v2627 = vpop.f32.mrf.mxu0
    %v2628 = vpop.f32.mrf.mxu0
    %v2629 = vadd.f32 %v518, %v2628
    %v2630 = vpop.f32.mrf.mxu0
    %2631 = vmatprep.mubr.bf16.mxu0 0
    %2632 = vmatmul.mubr.bf16.gmra.mxu0 %v2589
    %v2633 = vpop.f32.mrf.mxu0
    %v2634 = vadd.f32 %v518, %v2633
    %v2635 = vpop.f32.mrf.mxu0
    %v2636 = vpop.f32.mrf.mxu0
    %v2637 = vadd.f32 %v518, %v2636
    %v2638 = vpop.f32.mrf.mxu0
    %2639 = vdwg.mxu0
    %v2644 = vrot.slane %v2626, 1
    %v2645 = vrot.slane %v2629, 1
    %v2646 = vsel %vm616, %v2644, %v2645
    %v2647 = vrot.slane %v2634, 1
    %v2648 = vsel %vm616, %v2645, %v2647
    %v2649 = vrot.slane %v2637, 1
    %v2650 = vsel %vm616, %v2647, %v2649
    %v2655 = vrot.slane %v2626, 2
    %v2656 = vrot.slane %v2629, 2
    %v2657 = vsel %vm559, %v2655, %v2656
    %v2658 = vrot.slane %v2634, 2
    %v2659 = vsel %vm559, %v2656, %v2658
    %v2660 = vrot.slane %v2637, 2
    %v2661 = vsel %vm559, %v2658, %v2660
    %v2666 = vrot.slane %v2626, 3
    %v2667 = vrot.slane %v2629, 3
    %v2668 = vsel %vm639, %v2666, %v2667
    %v2669 = vrot.slane %v2634, 3
    %v2670 = vsel %vm639, %v2667, %v2669
    %v2671 = vrot.slane %v2637, 3
    %v2672 = vsel %vm639, %v2669, %v2671
    %v2677 = vrot.slane %v2626, 4
    %v2678 = vrot.slane %v2629, 4
    %v2679 = vsel %vm651, %v2677, %v2678
    %v2680 = vrot.slane %v2634, 4
    %v2681 = vsel %vm651, %v2678, %v2680
    %v2682 = vrot.slane %v2637, 4
    %v2683 = vsel %vm651, %v2680, %v2682
    %v2688 = vrot.slane %v2626, 5
    %v2689 = vrot.slane %v2629, 5
    %v2690 = vsel %vm663, %v2688, %v2689
    %v2691 = vrot.slane %v2634, 5
    %v2692 = vsel %vm663, %v2689, %v2691
    %v2693 = vrot.slane %v2637, 5
    %v2694 = vsel %vm663, %v2691, %v2693
    %v2699 = vrot.slane %v2626, 6
    %v2700 = vrot.slane %v2629, 6
    %v2701 = vsel %vm675, %v2699, %v2700
    %v2702 = vrot.slane %v2634, 6
    %v2703 = vsel %vm675, %v2700, %v2702
    %v2704 = vrot.slane %v2637, 6
    %v2705 = vsel %vm675, %v2702, %v2704
    %v2710 = vrot.slane %v2626, 7
    %v2711 = vrot.slane %v2629, 7
    %v2712 = vsel %vm474, %v2710, %v2711
    %v2713 = vrot.slane %v2634, 7
    %v2714 = vsel %vm474, %v2711, %v2713
    %v2715 = vrot.slane %v2637, 7
    %v2716 = vsel %vm474, %v2713, %v2715
    %v2721 = vpack.c.bf16 %v2629, %v2626
    %v2722 = vpack.c.bf16 %v2648, %v2646
    %v2723 = vpack.c.bf16 %v2659, %v2657
    %v2724 = vpack.c.bf16 %v2670, %v2668
    %v2725 = vpack.c.bf16 %v2681, %v2679
    %v2726 = vpack.c.bf16 %v2692, %v2690
    %v2727 = vpack.c.bf16 %v2703, %v2701
    %v2728 = vpack.c.bf16 %v2714, %v2712
    %v2729 = vpack.c.bf16 %v2637, %v2634
    %v2730 = vpack.c.bf16 %v2649, %v2650
    %v2731 = vpack.c.bf16 %v2660, %v2661
    %v2732 = vpack.c.bf16 %v2671, %v2672
    %v2733 = vpack.c.bf16 %v2682, %v2683
    %v2734 = vpack.c.bf16 %v2693, %v2694
    %v2735 = vpack.c.bf16 %v2704, %v2705
    %v2736 = vpack.c.bf16 %v2715, %v2716
    %2737 = vmatprep.subr.bf16.mxu0 0
    %2738 = vmatpush1.bf16.msra.mxu0 %v983
    %2739 = vmatprep.subr.bf16.mxu0 0
    %2740 = vmatpush1.bf16.msra.mxu0 %v982
    %2741 = vmatprep.subr.bf16.mxu0 0
    %2742 = vmatpush1.bf16.msra.mxu0 %v981
    %2743 = vmatprep.subr.bf16.mxu0 0
    %2744 = vmatpush1.bf16.msra.mxu0 %v980
    %2745 = vmatprep.subr.bf16.mxu0 0
    %2746 = vmatpush1.bf16.msra.mxu0 %v979
    %2747 = vmatprep.subr.bf16.mxu0 0
    %2748 = vmatpush1.bf16.msra.mxu0 %v978
    %2749 = vmatprep.subr.bf16.mxu0 0
    %2750 = vmatpush1.bf16.msra.mxu0 %v977
    %2751 = vmatprep.subr.bf16.mxu0 0
    %2752 = vmatpush1.bf16.msra.mxu0 %v976
    %2753 = vmatprep.subr.bf16.mxu0 0
    %2754 = vmatpush2.bf16.msra.mxu0 %v991
    %2755 = vmatprep.subr.bf16.mxu0 0
    %2756 = vmatpush2.bf16.msra.mxu0 %v990
    %2757 = vmatprep.subr.bf16.mxu0 0
    %2758 = vmatpush2.bf16.msra.mxu0 %v989
    %2759 = vmatprep.subr.bf16.mxu0 0
    %2760 = vmatpush2.bf16.msra.mxu0 %v988
    %2761 = vmatprep.subr.bf16.mxu0 0
    %2762 = vmatpush2.bf16.msra.mxu0 %v987
    %2763 = vmatprep.subr.bf16.mxu0 0
    %2764 = vmatpush2.bf16.msra.mxu0 %v986
    %2765 = vmatprep.subr.bf16.mxu0 0
    %2766 = vmatpush2.bf16.msra.mxu0 %v985
    %2767 = vmatprep.subr.bf16.mxu0 0
    %2768 = vmatpush2.bf16.msra.mxu0 %v984
    %2769 = vmatprep.mubr.bf16.mxu0 %v2722
    %2770 = vmatmul.mubr.bf16.gmra.mxu0 %v2721
    %v2771 = vpop.f32.mrf.mxu0
    %v2772 = vadd.f32 %v718, %v2771
    %v2773 = vpop.f32.mrf.mxu0
    %v2774 = vpop.f32.mrf.mxu0
    %v2775 = vadd.f32 %v718, %v2774
    %v2776 = vpop.f32.mrf.mxu0
    %2777 = vmatprep.mubr.bf16.mxu0 %v2730
    %2778 = vmatmul.mubr.bf16.gmra.mxu0 %v2729
    %v2779 = vpop.f32.mrf.mxu0
    %v2780 = vadd.f32 %v718, %v2779
    %v2781 = vpop.f32.mrf.mxu0
    %v2782 = vpop.f32.mrf.mxu0
    %v2783 = vadd.f32 %v718, %v2782
    %v2784 = vpop.f32.mrf.mxu0
    %2785 = vdwg.mxu0
    %2786 = vmatprep.subr.bf16.mxu0 0
    %2787 = vmatpush1.bf16.msra.mxu0 %v999
    %2788 = vmatprep.subr.bf16.mxu0 0
    %2789 = vmatpush1.bf16.msra.mxu0 %v998
    %2790 = vmatprep.subr.bf16.mxu0 0
    %2791 = vmatpush1.bf16.msra.mxu0 %v997
    %2792 = vmatprep.subr.bf16.mxu0 0
    %2793 = vmatpush1.bf16.msra.mxu0 %v996
    %2794 = vmatprep.subr.bf16.mxu0 0
    %2795 = vmatpush1.bf16.msra.mxu0 %v995
    %2796 = vmatprep.subr.bf16.mxu0 0
    %2797 = vmatpush1.bf16.msra.mxu0 %v994
    %2798 = vmatprep.subr.bf16.mxu0 0
    %2799 = vmatpush1.bf16.msra.mxu0 %v993
    %2800 = vmatprep.subr.bf16.mxu0 0
    %2801 = vmatpush1.bf16.msra.mxu0 %v992
    %2802 = vmatprep.subr.bf16.mxu0 0
    %2803 = vmatpush2.bf16.msra.mxu0 %v1007
    %2804 = vmatprep.subr.bf16.mxu0 0
    %2805 = vmatpush2.bf16.msra.mxu0 %v1006
    %2806 = vmatprep.subr.bf16.mxu0 0
    %2807 = vmatpush2.bf16.msra.mxu0 %v1005
    %2808 = vmatprep.subr.bf16.mxu0 0
    %2809 = vmatpush2.bf16.msra.mxu0 %v1004
    %2810 = vmatprep.subr.bf16.mxu0 0
    %2811 = vmatpush2.bf16.msra.mxu0 %v1003
    %2812 = vmatprep.subr.bf16.mxu0 0
    %2813 = vmatpush2.bf16.msra.mxu0 %v1002
    %2814 = vmatprep.subr.bf16.mxu0 0
    %2815 = vmatpush2.bf16.msra.mxu0 %v1001
    %2816 = vmatprep.subr.bf16.mxu0 0
    %2817 = vmatpush2.bf16.msra.mxu0 %v1000
    %2818 = vmatprep.mubr.bf16.mxu0 %v2724
    %2819 = vmatmul.mubr.bf16.gmra.mxu0 %v2723
    %v2820 = vpop.f32.mrf.mxu0
    %v2821 = vadd.f32 %v2772, %v2820
    %v2822 = vpop.f32.mrf.mxu0
    %v2823 = vpop.f32.mrf.mxu0
    %v2824 = vadd.f32 %v2775, %v2823
    %v2825 = vpop.f32.mrf.mxu0
    %2826 = vmatprep.mubr.bf16.mxu0 %v2732
    %2827 = vmatmul.mubr.bf16.gmra.mxu0 %v2731
    %v2828 = vpop.f32.mrf.mxu0
    %v2829 = vadd.f32 %v2780, %v2828
    %v2830 = vpop.f32.mrf.mxu0
    %v2831 = vpop.f32.mrf.mxu0
    %v2832 = vadd.f32 %v2783, %v2831
    %v2833 = vpop.f32.mrf.mxu0
    %2834 = vdwg.mxu0
    %2835 = vmatprep.subr.bf16.mxu0 0
    %2836 = vmatpush1.bf16.msra.mxu0 %v1015
    %2837 = vmatprep.subr.bf16.mxu0 0
    %2838 = vmatpush1.bf16.msra.mxu0 %v1014
    %2839 = vmatprep.subr.bf16.mxu0 0
    %2840 = vmatpush1.bf16.msra.mxu0 %v1013
    %2841 = vmatprep.subr.bf16.mxu0 0
    %2842 = vmatpush1.bf16.msra.mxu0 %v1012
    %2843 = vmatprep.subr.bf16.mxu0 0
    %2844 = vmatpush1.bf16.msra.mxu0 %v1011
    %2845 = vmatprep.subr.bf16.mxu0 0
    %2846 = vmatpush1.bf16.msra.mxu0 %v1010
    %2847 = vmatprep.subr.bf16.mxu0 0
    %2848 = vmatpush1.bf16.msra.mxu0 %v1009
    %2849 = vmatprep.subr.bf16.mxu0 0
    %2850 = vmatpush1.bf16.msra.mxu0 %v1008
    %2851 = vmatprep.subr.bf16.mxu0 0
    %2852 = vmatpush2.bf16.msra.mxu0 %v1023
    %2853 = vmatprep.subr.bf16.mxu0 0
    %2854 = vmatpush2.bf16.msra.mxu0 %v1022
    %2855 = vmatprep.subr.bf16.mxu0 0
    %2856 = vmatpush2.bf16.msra.mxu0 %v1021
    %2857 = vmatprep.subr.bf16.mxu0 0
    %2858 = vmatpush2.bf16.msra.mxu0 %v1020
    %2859 = vmatprep.subr.bf16.mxu0 0
    %2860 = vmatpush2.bf16.msra.mxu0 %v1019
    %2861 = vmatprep.subr.bf16.mxu0 0
    %2862 = vmatpush2.bf16.msra.mxu0 %v1018
    %2863 = vmatprep.subr.bf16.mxu0 0
    %2864 = vmatpush2.bf16.msra.mxu0 %v1017
    %2865 = vmatprep.subr.bf16.mxu0 0
    %2866 = vmatpush2.bf16.msra.mxu0 %v1016
    %2867 = vmatprep.mubr.bf16.mxu0 %v2726
    %2868 = vmatmul.mubr.bf16.gmra.mxu0 %v2725
    %v2869 = vpop.f32.mrf.mxu0
    %v2870 = vadd.f32 %v2821, %v2869
    %v2871 = vpop.f32.mrf.mxu0
    %v2872 = vpop.f32.mrf.mxu0
    %v2873 = vadd.f32 %v2824, %v2872
    %v2874 = vpop.f32.mrf.mxu0
    %2875 = vmatprep.mubr.bf16.mxu0 %v2734
    %2876 = vmatmul.mubr.bf16.gmra.mxu0 %v2733
    %v2877 = vpop.f32.mrf.mxu0
    %v2878 = vadd.f32 %v2829, %v2877
    %v2879 = vpop.f32.mrf.mxu0
    %v2880 = vpop.f32.mrf.mxu0
    %v2881 = vadd.f32 %v2832, %v2880
    %v2882 = vpop.f32.mrf.mxu0
    %2883 = vdwg.mxu0
    %2884 = vmatprep.subr.bf16.mxu0 0
    %2885 = vmatpush1.bf16.msra.mxu0 %v1031
    %2886 = vmatprep.subr.bf16.mxu0 0
    %2887 = vmatpush1.bf16.msra.mxu0 %v1030
    %2888 = vmatprep.subr.bf16.mxu0 0
    %2889 = vmatpush1.bf16.msra.mxu0 %v1029
    %2890 = vmatprep.subr.bf16.mxu0 0
    %2891 = vmatpush1.bf16.msra.mxu0 %v1028
    %2892 = vmatprep.subr.bf16.mxu0 0
    %2893 = vmatpush1.bf16.msra.mxu0 %v1027
    %2894 = vmatprep.subr.bf16.mxu0 0
    %2895 = vmatpush1.bf16.msra.mxu0 %v1026
    %2896 = vmatprep.subr.bf16.mxu0 0
    %2897 = vmatpush1.bf16.msra.mxu0 %v1025
    %2898 = vmatprep.subr.bf16.mxu0 0
    %2899 = vmatpush1.bf16.msra.mxu0 %v1024
    %2900 = vmatprep.subr.bf16.mxu0 0
    %2901 = vmatpush2.bf16.msra.mxu0 %v1039
    %2902 = vmatprep.subr.bf16.mxu0 0
    %2903 = vmatpush2.bf16.msra.mxu0 %v1038
    %2904 = vmatprep.subr.bf16.mxu0 0
    %2905 = vmatpush2.bf16.msra.mxu0 %v1037
    %2906 = vmatprep.subr.bf16.mxu0 0
    %2907 = vmatpush2.bf16.msra.mxu0 %v1036
    %2908 = vmatprep.subr.bf16.mxu0 0
    %2909 = vmatpush2.bf16.msra.mxu0 %v1035
    %2910 = vmatprep.subr.bf16.mxu0 0
    %2911 = vmatpush2.bf16.msra.mxu0 %v1034
    %2912 = vmatprep.subr.bf16.mxu0 0
    %2913 = vmatpush2.bf16.msra.mxu0 %v1033
    %2914 = vmatprep.subr.bf16.mxu0 0
    %2915 = vmatpush2.bf16.msra.mxu0 %v1032
    %2916 = vmatprep.mubr.bf16.mxu0 %v2728
    %2917 = vmatmul.mubr.bf16.gmra.mxu0 %v2727
    %v2918 = vpop.f32.mrf.mxu0
    %v2919 = vadd.f32 %v2870, %v2918
    %v2920 = vpop.f32.mrf.mxu0
    %v2921 = vpop.f32.mrf.mxu0
    %v2922 = vadd.f32 %v2873, %v2921
    %v2923 = vpop.f32.mrf.mxu0
    %2924 = vmatprep.mubr.bf16.mxu0 %v2736
    %2925 = vmatmul.mubr.bf16.gmra.mxu0 %v2735
    %v2926 = vpop.f32.mrf.mxu0
    %v2927 = vadd.f32 %v2878, %v2926
    %v2928 = vpop.f32.mrf.mxu0
    %v2929 = vpop.f32.mrf.mxu0
    %v2930 = vadd.f32 %v2881, %v2929
    %v2931 = vpop.f32.mrf.mxu0
    %2932 = vdwg.mxu0
    %v2933 = vsel %vm1300, %v2919, -inf
    %v2934 = vsel %vm1300, %v2922, -inf
    %v2935 = vsel %vm1300, %v2927, -inf
    %v2936 = vsel %vm1304, %v2930, -inf
    %v2937 = vmax.f32 %v2933, %v2934
    %v2938 = vmax.f32 %v2935, %v2936
    %v2939 = vmax.f32 %v2937, %v2938
    %v2940 = vrot.slane %v2939, 4
    %v2941 = vmax.f32 %v2939, %v2940
    %v2942 = vrot.slane %v2941, 2
    %v2943 = vmax.f32 %v2941, %v2942
    %v2944 = vrot.slane %v2943, 1
    %v2945 = vmax.f32 %v2943, %v2944
    %v2946 = vmax.f32 %v2945, 0.0
    %v2954 = vpack.c.bf16 %v2634, %v2629
    %v2955 = vpack.c.bf16 %v2650, %v2648
    %v2956 = vpack.c.bf16 %v2661, %v2659
    %v2957 = vpack.c.bf16 %v2672, %v2670
    %v2958 = vpack.c.bf16 %v2683, %v2681
    %v2959 = vpack.c.bf16 %v2694, %v2692
    %v2960 = vpack.c.bf16 %v2705, %v2703
    %v2961 = vpack.c.bf16 %v2716, %v2714
    %v2962 = vpack.c.bf16 %v2634, %v2634
    %v2963 = vpack.c.bf16 %v2647, %v2647
    %v2964 = vpack.c.bf16 %v2658, %v2658
    %v2965 = vpack.c.bf16 %v2669, %v2669
    %v2966 = vpack.c.bf16 %v2680, %v2680
    %v2967 = vpack.c.bf16 %v2691, %v2691
    %v2968 = vpack.c.bf16 %v2702, %v2702
    %v2969 = vpack.c.bf16 %v2713, %v2713
    %v2970 = vpack.c.bf16 %v2637, %v2637
    %v2971 = vpack.c.bf16 %v2649, %v2649
    %v2972 = vpack.c.bf16 %v2660, %v2660
    %v2973 = vpack.c.bf16 %v2671, %v2671
    %v2974 = vpack.c.bf16 %v2682, %v2682
    %v2975 = vpack.c.bf16 %v2693, %v2693
    %v2976 = vpack.c.bf16 %v2704, %v2704
    %v2977 = vpack.c.bf16 %v2715, %v2715
    %2978 = vmatprep.subr.bf16.mxu0 0
    %2979 = vmatpush1.bf16.msra.mxu0 %v1872
    %2980 = vmatprep.subr.bf16.mxu0 0
    %2981 = vmatpush1.bf16.msra.mxu0 %v1871
    %2982 = vmatprep.subr.bf16.mxu0 0
    %2983 = vmatpush1.bf16.msra.mxu0 %v1870
    %2984 = vmatprep.subr.bf16.mxu0 0
    %2985 = vmatpush1.bf16.msra.mxu0 %v1869
    %2986 = vmatprep.subr.bf16.mxu0 0
    %2987 = vmatpush1.bf16.msra.mxu0 %v1868
    %2988 = vmatprep.subr.bf16.mxu0 0
    %2989 = vmatpush1.bf16.msra.mxu0 %v1867
    %2990 = vmatprep.subr.bf16.mxu0 0
    %2991 = vmatpush1.bf16.msra.mxu0 %v1866
    %2992 = vmatprep.subr.bf16.mxu0 0
    %2993 = vmatpush1.bf16.msra.mxu0 %v1865
    %2994 = vmatprep.subr.bf16.mxu0 0
    %2995 = vmatpush2.bf16.msra.mxu0 %v1880
    %2996 = vmatprep.subr.bf16.mxu0 0
    %2997 = vmatpush2.bf16.msra.mxu0 %v1879
    %2998 = vmatprep.subr.bf16.mxu0 0
    %2999 = vmatpush2.bf16.msra.mxu0 %v1878
    %3000 = vmatprep.subr.bf16.mxu0 0
    %3001 = vmatpush2.bf16.msra.mxu0 %v1877
    %3002 = vmatprep.subr.bf16.mxu0 0
    %3003 = vmatpush2.bf16.msra.mxu0 %v1876
    %3004 = vmatprep.subr.bf16.mxu0 0
    %3005 = vmatpush2.bf16.msra.mxu0 %v1875
    %3006 = vmatprep.subr.bf16.mxu0 0
    %3007 = vmatpush2.bf16.msra.mxu0 %v1874
    %3008 = vmatprep.subr.bf16.mxu0 0
    %3009 = vmatpush2.bf16.msra.mxu0 %v1873
    %3010 = vmatprep.mubr.bf16.mxu0 %v2722
    %3011 = vmatmul.mubr.bf16.gmra.mxu0 %v2721
    %v3012 = vpop.f32.mrf.mxu0
    %v3013 = vadd.f32 %v1351, %v3012
    %v3014 = vpop.f32.mrf.mxu0
    %v3015 = vpop.f32.mrf.mxu0
    %v3016 = vadd.f32 %v1351, %v3015
    %v3017 = vpop.f32.mrf.mxu0
    %3018 = vmatprep.mubr.bf16.mxu0 %v2963
    %3019 = vmatmul.mubr.bf16.gmra.mxu0 %v2962
    %v3020 = vpop.f32.mrf.mxu0
    %v3021 = vadd.f32 %v1351, %v3020
    %v3022 = vpop.f32.mrf.mxu0
    %v3023 = vpop.f32.mrf.mxu0
    %v3024 = vpop.f32.mrf.mxu0
    %3025 = vdwg.mxu0
    %3026 = vmatprep.subr.bf16.mxu0 0
    %3027 = vmatpush1.bf16.msra.mxu0 %v1888
    %3028 = vmatprep.subr.bf16.mxu0 0
    %3029 = vmatpush1.bf16.msra.mxu0 %v1887
    %3030 = vmatprep.subr.bf16.mxu0 0
    %3031 = vmatpush1.bf16.msra.mxu0 %v1886
    %3032 = vmatprep.subr.bf16.mxu0 0
    %3033 = vmatpush1.bf16.msra.mxu0 %v1885
    %3034 = vmatprep.subr.bf16.mxu0 0
    %3035 = vmatpush1.bf16.msra.mxu0 %v1884
    %3036 = vmatprep.subr.bf16.mxu0 0
    %3037 = vmatpush1.bf16.msra.mxu0 %v1883
    %3038 = vmatprep.subr.bf16.mxu0 0
    %3039 = vmatpush1.bf16.msra.mxu0 %v1882
    %3040 = vmatprep.subr.bf16.mxu0 0
    %3041 = vmatpush1.bf16.msra.mxu0 %v1881
    %3042 = vmatprep.subr.bf16.mxu0 0
    %3043 = vmatpush2.bf16.msra.mxu0 %v1896
    %3044 = vmatprep.subr.bf16.mxu0 0
    %3045 = vmatpush2.bf16.msra.mxu0 %v1895
    %3046 = vmatprep.subr.bf16.mxu0 0
    %3047 = vmatpush2.bf16.msra.mxu0 %v1894
    %3048 = vmatprep.subr.bf16.mxu0 0
    %3049 = vmatpush2.bf16.msra.mxu0 %v1893
    %3050 = vmatprep.subr.bf16.mxu0 0
    %3051 = vmatpush2.bf16.msra.mxu0 %v1892
    %3052 = vmatprep.subr.bf16.mxu0 0
    %3053 = vmatpush2.bf16.msra.mxu0 %v1891
    %3054 = vmatprep.subr.bf16.mxu0 0
    %3055 = vmatpush2.bf16.msra.mxu0 %v1890
    %3056 = vmatprep.subr.bf16.mxu0 0
    %3057 = vmatpush2.bf16.msra.mxu0 %v1889
    %3058 = vmatprep.mubr.bf16.mxu0 %v2724
    %3059 = vmatmul.mubr.bf16.gmra.mxu0 %v2723
    %v3060 = vpop.f32.mrf.mxu0
    %v3061 = vadd.f32 %v3013, %v3060
    %v3062 = vpop.f32.mrf.mxu0
    %v3063 = vpop.f32.mrf.mxu0
    %v3064 = vadd.f32 %v3016, %v3063
    %v3065 = vpop.f32.mrf.mxu0
    %3066 = vmatprep.mubr.bf16.mxu0 %v2965
    %3067 = vmatmul.mubr.bf16.gmra.mxu0 %v2964
    %v3068 = vpop.f32.mrf.mxu0
    %v3069 = vadd.f32 %v3021, %v3068
    %v3070 = vpop.f32.mrf.mxu0
    %v3071 = vpop.f32.mrf.mxu0
    %v3072 = vpop.f32.mrf.mxu0
    %3073 = vdwg.mxu0
    %3074 = vmatprep.subr.bf16.mxu0 0
    %3075 = vmatpush1.bf16.msra.mxu0 %v1904
    %3076 = vmatprep.subr.bf16.mxu0 0
    %3077 = vmatpush1.bf16.msra.mxu0 %v1903
    %3078 = vmatprep.subr.bf16.mxu0 0
    %3079 = vmatpush1.bf16.msra.mxu0 %v1902
    %3080 = vmatprep.subr.bf16.mxu0 0
    %3081 = vmatpush1.bf16.msra.mxu0 %v1901
    %3082 = vmatprep.subr.bf16.mxu0 0
    %3083 = vmatpush1.bf16.msra.mxu0 %v1900
    %3084 = vmatprep.subr.bf16.mxu0 0
    %3085 = vmatpush1.bf16.msra.mxu0 %v1899
    %3086 = vmatprep.subr.bf16.mxu0 0
    %3087 = vmatpush1.bf16.msra.mxu0 %v1898
    %3088 = vmatprep.subr.bf16.mxu0 0
    %3089 = vmatpush1.bf16.msra.mxu0 %v1897
    %3090 = vmatprep.subr.bf16.mxu0 0
    %3091 = vmatpush2.bf16.msra.mxu0 %v1912
    %3092 = vmatprep.subr.bf16.mxu0 0
    %3093 = vmatpush2.bf16.msra.mxu0 %v1911
    %3094 = vmatprep.subr.bf16.mxu0 0
    %3095 = vmatpush2.bf16.msra.mxu0 %v1910
    %3096 = vmatprep.subr.bf16.mxu0 0
    %3097 = vmatpush2.bf16.msra.mxu0 %v1909
    %3098 = vmatprep.subr.bf16.mxu0 0
    %3099 = vmatpush2.bf16.msra.mxu0 %v1908
    %3100 = vmatprep.subr.bf16.mxu0 0
    %3101 = vmatpush2.bf16.msra.mxu0 %v1907
    %3102 = vmatprep.subr.bf16.mxu0 0
    %3103 = vmatpush2.bf16.msra.mxu0 %v1906
    %3104 = vmatprep.subr.bf16.mxu0 0
    %3105 = vmatpush2.bf16.msra.mxu0 %v1905
    %3106 = vmatprep.mubr.bf16.mxu0 %v2726
    %3107 = vmatmul.mubr.bf16.gmra.mxu0 %v2725
    %v3108 = vpop.f32.mrf.mxu0
    %v3109 = vadd.f32 %v3061, %v3108
    %v3110 = vpop.f32.mrf.mxu0
    %v3111 = vpop.f32.mrf.mxu0
    %v3112 = vadd.f32 %v3064, %v3111
    %v3113 = vpop.f32.mrf.mxu0
    %3114 = vmatprep.mubr.bf16.mxu0 %v2967
    %3115 = vmatmul.mubr.bf16.gmra.mxu0 %v2966
    %v3116 = vpop.f32.mrf.mxu0
    %v3117 = vadd.f32 %v3069, %v3116
    %v3118 = vpop.f32.mrf.mxu0
    %v3119 = vpop.f32.mrf.mxu0
    %v3120 = vpop.f32.mrf.mxu0
    %3121 = vdwg.mxu0
    %3122 = vmatprep.subr.bf16.mxu0 0
    %3123 = vmatpush1.bf16.msra.mxu0 %v1920
    %3124 = vmatprep.subr.bf16.mxu0 0
    %3125 = vmatpush1.bf16.msra.mxu0 %v1919
    %3126 = vmatprep.subr.bf16.mxu0 0
    %3127 = vmatpush1.bf16.msra.mxu0 %v1918
    %3128 = vmatprep.subr.bf16.mxu0 0
    %3129 = vmatpush1.bf16.msra.mxu0 %v1917
    %3130 = vmatprep.subr.bf16.mxu0 0
    %3131 = vmatpush1.bf16.msra.mxu0 %v1916
    %3132 = vmatprep.subr.bf16.mxu0 0
    %3133 = vmatpush1.bf16.msra.mxu0 %v1915
    %3134 = vmatprep.subr.bf16.mxu0 0
    %3135 = vmatpush1.bf16.msra.mxu0 %v1914
    %3136 = vmatprep.subr.bf16.mxu0 0
    %3137 = vmatpush1.bf16.msra.mxu0 %v1913
    %3138 = vmatprep.subr.bf16.mxu0 0
    %3139 = vmatpush2.bf16.msra.mxu0 %v1928
    %3140 = vmatprep.subr.bf16.mxu0 0
    %3141 = vmatpush2.bf16.msra.mxu0 %v1927
    %3142 = vmatprep.subr.bf16.mxu0 0
    %3143 = vmatpush2.bf16.msra.mxu0 %v1926
    %3144 = vmatprep.subr.bf16.mxu0 0
    %3145 = vmatpush2.bf16.msra.mxu0 %v1925
    %3146 = vmatprep.subr.bf16.mxu0 0
    %3147 = vmatpush2.bf16.msra.mxu0 %v1924
    %3148 = vmatprep.subr.bf16.mxu0 0
    %3149 = vmatpush2.bf16.msra.mxu0 %v1923
    %3150 = vmatprep.subr.bf16.mxu0 0
    %3151 = vmatpush2.bf16.msra.mxu0 %v1922
    %3152 = vmatprep.subr.bf16.mxu0 0
    %3153 = vmatpush2.bf16.msra.mxu0 %v1921
    %3154 = vmatprep.mubr.bf16.mxu0 %v2728
    %3155 = vmatmul.mubr.bf16.gmra.mxu0 %v2727
    %v3156 = vpop.f32.mrf.mxu0
    %v3157 = vadd.f32 %v3109, %v3156
    %v3158 = vpop.f32.mrf.mxu0
    %v3159 = vpop.f32.mrf.mxu0
    %v3160 = vadd.f32 %v3112, %v3159
    %v3161 = vpop.f32.mrf.mxu0
    %3162 = vmatprep.mubr.bf16.mxu0 %v2969
    %3163 = vmatmul.mubr.bf16.gmra.mxu0 %v2968
    %v3164 = vpop.f32.mrf.mxu0
    %v3165 = vadd.f32 %v3117, %v3164
    %v3166 = vpop.f32.mrf.mxu0
    %v3167 = vpop.f32.mrf.mxu0
    %v3168 = vpop.f32.mrf.mxu0
    %3169 = vdwg.mxu0
    %3170 = vmatprep.subr.bf16.mxu0 0
    %3171 = vmatpush1.bf16.msra.mxu0 %v1936
    %3172 = vmatprep.subr.bf16.mxu0 0
    %3173 = vmatpush1.bf16.msra.mxu0 %v1935
    %3174 = vmatprep.subr.bf16.mxu0 0
    %3175 = vmatpush1.bf16.msra.mxu0 %v1934
    %3176 = vmatprep.subr.bf16.mxu0 0
    %3177 = vmatpush1.bf16.msra.mxu0 %v1933
    %3178 = vmatprep.subr.bf16.mxu0 0
    %3179 = vmatpush1.bf16.msra.mxu0 %v1932
    %3180 = vmatprep.subr.bf16.mxu0 0
    %3181 = vmatpush1.bf16.msra.mxu0 %v1931
    %3182 = vmatprep.subr.bf16.mxu0 0
    %3183 = vmatpush1.bf16.msra.mxu0 %v1930
    %3184 = vmatprep.subr.bf16.mxu0 0
    %3185 = vmatpush1.bf16.msra.mxu0 %v1929
    %3186 = vmatprep.subr.bf16.mxu0 0
    %3187 = vmatpush2.bf16.msra.mxu0 %v1944
    %3188 = vmatprep.subr.bf16.mxu0 0
    %3189 = vmatpush2.bf16.msra.mxu0 %v1943
    %3190 = vmatprep.subr.bf16.mxu0 0
    %3191 = vmatpush2.bf16.msra.mxu0 %v1942
    %3192 = vmatprep.subr.bf16.mxu0 0
    %3193 = vmatpush2.bf16.msra.mxu0 %v1941
    %3194 = vmatprep.subr.bf16.mxu0 0
    %3195 = vmatpush2.bf16.msra.mxu0 %v1940
    %3196 = vmatprep.subr.bf16.mxu0 0
    %3197 = vmatpush2.bf16.msra.mxu0 %v1939
    %3198 = vmatprep.subr.bf16.mxu0 0
    %3199 = vmatpush2.bf16.msra.mxu0 %v1938
    %3200 = vmatprep.subr.bf16.mxu0 0
    %3201 = vmatpush2.bf16.msra.mxu0 %v1937
    %3202 = vmatprep.mubr.bf16.mxu0 %v2955
    %3203 = vmatmul.mubr.bf16.gmra.mxu0 %v2954
    %v3204 = vpop.f32.mrf.mxu0
    %v3205 = vadd.f32 %v3157, %v3204
    %v3206 = vpop.f32.mrf.mxu0
    %v3207 = vpop.f32.mrf.mxu0
    %v3208 = vadd.f32 %v3160, %v3207
    %v3209 = vpop.f32.mrf.mxu0
    %3210 = vmatprep.mubr.bf16.mxu0 %v2971
    %3211 = vmatmul.mubr.bf16.gmra.mxu0 %v2970
    %v3212 = vpop.f32.mrf.mxu0
    %v3213 = vadd.f32 %v3165, %v3212
    %v3214 = vpop.f32.mrf.mxu0
    %v3215 = vpop.f32.mrf.mxu0
    %v3216 = vpop.f32.mrf.mxu0
    %3217 = vdwg.mxu0
    %3218 = vmatprep.subr.bf16.mxu0 0
    %3219 = vmatpush1.bf16.msra.mxu0 %v1952
    %3220 = vmatprep.subr.bf16.mxu0 0
    %3221 = vmatpush1.bf16.msra.mxu0 %v1951
    %3222 = vmatprep.subr.bf16.mxu0 0
    %3223 = vmatpush1.bf16.msra.mxu0 %v1950
    %3224 = vmatprep.subr.bf16.mxu0 0
    %3225 = vmatpush1.bf16.msra.mxu0 %v1949
    %3226 = vmatprep.subr.bf16.mxu0 0
    %3227 = vmatpush1.bf16.msra.mxu0 %v1948
    %3228 = vmatprep.subr.bf16.mxu0 0
    %3229 = vmatpush1.bf16.msra.mxu0 %v1947
    %3230 = vmatprep.subr.bf16.mxu0 0
    %3231 = vmatpush1.bf16.msra.mxu0 %v1946
    %3232 = vmatprep.subr.bf16.mxu0 0
    %3233 = vmatpush1.bf16.msra.mxu0 %v1945
    %3234 = vmatprep.subr.bf16.mxu0 0
    %3235 = vmatpush2.bf16.msra.mxu0 %v1960
    %3236 = vmatprep.subr.bf16.mxu0 0
    %3237 = vmatpush2.bf16.msra.mxu0 %v1959
    %3238 = vmatprep.subr.bf16.mxu0 0
    %3239 = vmatpush2.bf16.msra.mxu0 %v1958
    %3240 = vmatprep.subr.bf16.mxu0 0
    %3241 = vmatpush2.bf16.msra.mxu0 %v1957
    %3242 = vmatprep.subr.bf16.mxu0 0
    %3243 = vmatpush2.bf16.msra.mxu0 %v1956
    %3244 = vmatprep.subr.bf16.mxu0 0
    %3245 = vmatpush2.bf16.msra.mxu0 %v1955
    %3246 = vmatprep.subr.bf16.mxu0 0
    %3247 = vmatpush2.bf16.msra.mxu0 %v1954
    %3248 = vmatprep.subr.bf16.mxu0 0
    %3249 = vmatpush2.bf16.msra.mxu0 %v1953
    %3250 = vmatprep.mubr.bf16.mxu0 %v2957
    %3251 = vmatmul.mubr.bf16.gmra.mxu0 %v2956
    %v3252 = vpop.f32.mrf.mxu0
    %v3253 = vadd.f32 %v3205, %v3252
    %v3254 = vpop.f32.mrf.mxu0
    %v3255 = vpop.f32.mrf.mxu0
    %v3256 = vadd.f32 %v3208, %v3255
    %v3257 = vpop.f32.mrf.mxu0
    %3258 = vmatprep.mubr.bf16.mxu0 %v2973
    %3259 = vmatmul.mubr.bf16.gmra.mxu0 %v2972
    %v3260 = vpop.f32.mrf.mxu0
    %v3261 = vadd.f32 %v3213, %v3260
    %v3262 = vpop.f32.mrf.mxu0
    %v3263 = vpop.f32.mrf.mxu0
    %v3264 = vpop.f32.mrf.mxu0
    %3265 = vdwg.mxu0
    %3266 = vmatprep.subr.bf16.mxu0 0
    %3267 = vmatpush1.bf16.msra.mxu0 %v1968
    %3268 = vmatprep.subr.bf16.mxu0 0
    %3269 = vmatpush1.bf16.msra.mxu0 %v1967
    %3270 = vmatprep.subr.bf16.mxu0 0
    %3271 = vmatpush1.bf16.msra.mxu0 %v1966
    %3272 = vmatprep.subr.bf16.mxu0 0
    %3273 = vmatpush1.bf16.msra.mxu0 %v1965
    %3274 = vmatprep.subr.bf16.mxu0 0
    %3275 = vmatpush1.bf16.msra.mxu0 %v1964
    %3276 = vmatprep.subr.bf16.mxu0 0
    %3277 = vmatpush1.bf16.msra.mxu0 %v1963
    %3278 = vmatprep.subr.bf16.mxu0 0
    %3279 = vmatpush1.bf16.msra.mxu0 %v1962
    %3280 = vmatprep.subr.bf16.mxu0 0
    %3281 = vmatpush1.bf16.msra.mxu0 %v1961
    %3282 = vmatprep.subr.bf16.mxu0 0
    %3283 = vmatpush2.bf16.msra.mxu0 %v1976
    %3284 = vmatprep.subr.bf16.mxu0 0
    %3285 = vmatpush2.bf16.msra.mxu0 %v1975
    %3286 = vmatprep.subr.bf16.mxu0 0
    %3287 = vmatpush2.bf16.msra.mxu0 %v1974
    %3288 = vmatprep.subr.bf16.mxu0 0
    %3289 = vmatpush2.bf16.msra.mxu0 %v1973
    %3290 = vmatprep.subr.bf16.mxu0 0
    %3291 = vmatpush2.bf16.msra.mxu0 %v1972
    %3292 = vmatprep.subr.bf16.mxu0 0
    %3293 = vmatpush2.bf16.msra.mxu0 %v1971
    %3294 = vmatprep.subr.bf16.mxu0 0
    %3295 = vmatpush2.bf16.msra.mxu0 %v1970
    %3296 = vmatprep.subr.bf16.mxu0 0
    %3297 = vmatpush2.bf16.msra.mxu0 %v1969
    %3298 = vmatprep.mubr.bf16.mxu0 %v2959
    %3299 = vmatmul.mubr.bf16.gmra.mxu0 %v2958
    %v3300 = vpop.f32.mrf.mxu0
    %v3301 = vadd.f32 %v3253, %v3300
    %v3302 = vpop.f32.mrf.mxu0
    %v3303 = vpop.f32.mrf.mxu0
    %v3304 = vadd.f32 %v3256, %v3303
    %v3305 = vpop.f32.mrf.mxu0
    %3306 = vmatprep.mubr.bf16.mxu0 %v2975
    %3307 = vmatmul.mubr.bf16.gmra.mxu0 %v2974
    %v3308 = vpop.f32.mrf.mxu0
    %v3309 = vadd.f32 %v3261, %v3308
    %v3310 = vpop.f32.mrf.mxu0
    %v3311 = vpop.f32.mrf.mxu0
    %v3312 = vpop.f32.mrf.mxu0
    %3313 = vdwg.mxu0
    %3314 = vmatprep.subr.bf16.mxu0 0
    %3315 = vmatpush1.bf16.msra.mxu0 %v1984
    %3316 = vmatprep.subr.bf16.mxu0 0
    %3317 = vmatpush1.bf16.msra.mxu0 %v1983
    %3318 = vmatprep.subr.bf16.mxu0 0
    %3319 = vmatpush1.bf16.msra.mxu0 %v1982
    %3320 = vmatprep.subr.bf16.mxu0 0
    %3321 = vmatpush1.bf16.msra.mxu0 %v1981
    %3322 = vmatprep.subr.bf16.mxu0 0
    %3323 = vmatpush1.bf16.msra.mxu0 %v1980
    %3324 = vmatprep.subr.bf16.mxu0 0
    %3325 = vmatpush1.bf16.msra.mxu0 %v1979
    %3326 = vmatprep.subr.bf16.mxu0 0
    %3327 = vmatpush1.bf16.msra.mxu0 %v1978
    %3328 = vmatprep.subr.bf16.mxu0 0
    %3329 = vmatpush1.bf16.msra.mxu0 %v1977
    %3330 = vmatprep.subr.bf16.mxu0 0
    %3331 = vmatpush2.bf16.msra.mxu0 %v1992
    %3332 = vmatprep.subr.bf16.mxu0 0
    %3333 = vmatpush2.bf16.msra.mxu0 %v1991
    %3334 = vmatprep.subr.bf16.mxu0 0
    %3335 = vmatpush2.bf16.msra.mxu0 %v1990
    %3336 = vmatprep.subr.bf16.mxu0 0
    %3337 = vmatpush2.bf16.msra.mxu0 %v1989
    %3338 = vmatprep.subr.bf16.mxu0 0
    %3339 = vmatpush2.bf16.msra.mxu0 %v1988
    %3340 = vmatprep.subr.bf16.mxu0 0
    %3341 = vmatpush2.bf16.msra.mxu0 %v1987
    %3342 = vmatprep.subr.bf16.mxu0 0
    %3343 = vmatpush2.bf16.msra.mxu0 %v1986
    %3344 = vmatprep.subr.bf16.mxu0 0
    %3345 = vmatpush2.bf16.msra.mxu0 %v1985
    %3346 = vmatprep.mubr.bf16.mxu0 %v2961
    %3347 = vmatmul.mubr.bf16.gmra.mxu0 %v2960
    %v3348 = vpop.f32.mrf.mxu0
    %v3349 = vadd.f32 %v3301, %v3348
    %v3350 = vpop.f32.mrf.mxu0
    %v3351 = vpop.f32.mrf.mxu0
    %v3352 = vadd.f32 %v3304, %v3351
    %v3353 = vpop.f32.mrf.mxu0
    %3354 = vmatprep.mubr.bf16.mxu0 %v2977
    %3355 = vmatmul.mubr.bf16.gmra.mxu0 %v2976
    %v3356 = vpop.f32.mrf.mxu0
    %v3357 = vadd.f32 %v3309, %v3356
    %v3358 = vpop.f32.mrf.mxu0
    %v3359 = vpop.f32.mrf.mxu0
    %v3360 = vpop.f32.mrf.mxu0
    %3361 = vdwg.mxu0
    %v3362 = vsel %vm1300, %v3349, -inf
    %v3363 = vsel %vm1300, %v3352, -inf
    %v3364 = vsel %vm1304, %v3357, -inf
    %v3365 = vmax.f32 %v3362, %v3363
    %v3366 = vmax.f32 %v3365, %v3364
    %v3367 = vrot.slane %v3366, 4
    %v3368 = vmax.f32 %v3366, %v3367
    %v3369 = vrot.slane %v3368, 2
    %v3370 = vmax.f32 %v3368, %v3369
    %v3371 = vrot.slane %v3370, 1
    %v3372 = vmax.f32 %v3370, %v3371
    %v3373 = vmax.f32 %v3372, 0.0
    %v3374 = vsel %vm474, %v1315, %v2946
    %v3375 = vsel %vm474, %v2516, %v3373
    %v3376 = vld [vmem:[%s8] sm:$0x1]
    %v3377 = vpack.c.bf16 %v3374, %v3374
    %v3378 = vld [vmem:[%s7] sm:$0xf]
    %v3379 = vld [vmem:[%s7 + $0x4] sm:$0xf]
    %v3382 = vunpack.c.l.b16 %v3378
    %v3383 = vunpack.c.l.b16 %v3379
    %v3384 = vpack.c.b16 %v3383, %v3382
    %v3387 = vsel %vm1300, %v3377, 0
    %3389 = vmatprep.subr.bf16.mxu0 0
    %3390 = vmatpush1.bf16.msra.mxu0 0
    %3391 = vmatprep.subr.bf16.mxu0 0
    %3392 = vmatpush1.bf16.msra.mxu0 0
    %3393 = vmatprep.subr.bf16.mxu0 0
    %3394 = vmatpush1.bf16.msra.mxu0 0
    %3395 = vmatprep.subr.bf16.mxu0 0
    %3396 = vmatpush1.bf16.msra.mxu0 0
    %3397 = vmatprep.subr.bf16.mxu0 0
    %3398 = vmatpush1.bf16.msra.mxu0 0
    %3399 = vmatprep.subr.bf16.mxu0 0
    %3400 = vmatpush1.bf16.msra.mxu0 0
    %3401 = vmatprep.subr.bf16.mxu0 0
    %3402 = vmatpush1.bf16.msra.mxu0 0
    %3403 = vmatprep.subr.bf16.mxu0 0
    %3404 = vmatpush1.bf16.msra.mxu0 %v3384
    %3405 = vmatprep.subr.bf16.mxu0 0
    %3406 = vmatpush2.bf16.msra.mxu0 0
    %3407 = vmatprep.subr.bf16.mxu0 0
    %3408 = vmatpush2.bf16.msra.mxu0 0
    %3409 = vmatprep.subr.bf16.mxu0 0
    %3410 = vmatpush2.bf16.msra.mxu0 0
    %3411 = vmatprep.subr.bf16.mxu0 0
    %3412 = vmatpush2.bf16.msra.mxu0 0
    %3413 = vmatprep.subr.bf16.mxu0 0
    %3414 = vmatpush2.bf16.msra.mxu0 0
    %3415 = vmatprep.subr.bf16.mxu0 0
    %3416 = vmatpush2.bf16.msra.mxu0 0
    %3417 = vmatprep.subr.bf16.mxu0 0
    %3418 = vmatpush2.bf16.msra.mxu0 0
    %3419 = vmatprep.subr.bf16.mxu0 0
    %3420 = vmatpush2.bf16.msra.mxu0 0
    %3421 = vmatprep.mubr.bf16.mxu0 0
    %3422 = vmatmul.mubr.bf16.gmra.mxu0 %v3387
    %v3423 = vpop.f32.mrf.mxu0
    %v3424 = vadd.f32 0.0, %v3423
    %v3425 = vpop.f32.mrf.mxu0
    %v3426 = vpop.f32.mrf.mxu0
    %v3427 = vpop.f32.mrf.mxu0
    %3428 = vdwg.mxu0
    %v3430 = vlaneseq
    %v3431 = vshrl.u32 %v3430, 7
    %v3432 = vsub.s32 0, %v3431
    %v3433 = vrot.slane %v3376, %v3432
    %v3435 = vadd.f32 %v3433, %v3424
    %v3436 = vpack.c.bf16 %v3375, %v3375
    %v3437 = vld [vmem:[%s7 + $0x8] sm:$0xf]
    %v3438 = vld [vmem:[%s7 + $0xc] sm:$0xf]
    %v3441 = vunpack.c.l.b16 %v3437
    %v3442 = vunpack.c.l.b16 %v3438
    %v3443 = vpack.c.b16 %v3442, %v3441
    %v3446 = vsel %vm1300, %v3436, 0
    %3448 = vmatprep.subr.bf16.mxu0 0
    %3449 = vmatpush1.bf16.msra.mxu0 0
    %3450 = vmatprep.subr.bf16.mxu0 0
    %3451 = vmatpush1.bf16.msra.mxu0 0
    %3452 = vmatprep.subr.bf16.mxu0 0
    %3453 = vmatpush1.bf16.msra.mxu0 0
    %3454 = vmatprep.subr.bf16.mxu0 0
    %3455 = vmatpush1.bf16.msra.mxu0 0
    %3456 = vmatprep.subr.bf16.mxu0 0
    %3457 = vmatpush1.bf16.msra.mxu0 0
    %3458 = vmatprep.subr.bf16.mxu0 0
    %3459 = vmatpush1.bf16.msra.mxu0 0
    %3460 = vmatprep.subr.bf16.mxu0 0
    %3461 = vmatpush1.bf16.msra.mxu0 0
    %3462 = vmatprep.subr.bf16.mxu0 0
    %3463 = vmatpush1.bf16.msra.mxu0 %v3443
    %3464 = vmatprep.subr.bf16.mxu0 0
    %3465 = vmatpush2.bf16.msra.mxu0 0
    %3466 = vmatprep.subr.bf16.mxu0 0
    %3467 = vmatpush2.bf16.msra.mxu0 0
    %3468 = vmatprep.subr.bf16.mxu0 0
    %3469 = vmatpush2.bf16.msra.mxu0 0
    %3470 = vmatprep.subr.bf16.mxu0 0
    %3471 = vmatpush2.bf16.msra.mxu0 0
    %3472 = vmatprep.subr.bf16.mxu0 0
    %3473 = vmatpush2.bf16.msra.mxu0 0
    %3474 = vmatprep.subr.bf16.mxu0 0
    %3475 = vmatpush2.bf16.msra.mxu0 0
    %3476 = vmatprep.subr.bf16.mxu0 0
    %3477 = vmatpush2.bf16.msra.mxu0 0
    %3478 = vmatprep.subr.bf16.mxu0 0
    %3479 = vmatpush2.bf16.msra.mxu0 0
    %3480 = vmatprep.mubr.bf16.mxu0 0
    %3481 = vmatmul.mubr.bf16.gmra.mxu0 %v3446
    %v3482 = vpop.f32.mrf.mxu0
    %v3483 = vadd.f32 0.0, %v3482
    %v3484 = vpop.f32.mrf.mxu0
    %v3485 = vpop.f32.mrf.mxu0
    %v3486 = vpop.f32.mrf.mxu0
    %3487 = vdwg.mxu0
    %v3488 = vadd.f32 %v3435, %v3483
    %v3489 = vmax.f32 %v3488, 0.0
    %v3490 = vpack.c.bf16 %v3489, %v3489
    %v3491 = vld [vmem:[%s9] sm:$0xf]
    %v3492 = vld [vmem:[%s9 + $0x4] sm:$0xf]
    %v3493 = vld [vmem:[%s9 + $0x8] sm:$0xf]
    %v3494 = vld [vmem:[%s9 + $0xc] sm:$0xf]
    %v3495 = vld [vmem:[%s9 + $0x10] sm:$0xf]
    %v3496 = vld [vmem:[%s9 + $0x14] sm:$0xf]
    %v3497 = vld [vmem:[%s9 + $0x18] sm:$0xf]
    %v3498 = vld [vmem:[%s9 + $0x1c] sm:$0xf]
    %v3499 = vld [vmem:[%s10] sm:$0x1]
    %v3501 = vlaneseq
    %v3502 = vshrl.u32 %v3501, 7
    %v3503 = vsub.s32 0, %v3502
    %v3504 = vrot.slane %v3499, %v3503
    %v3514 = vunpack.c.l.b16 %v3491
    %v3515 = vunpack.c.l.b16 %v3492
    %v3516 = vunpack.c.l.b16 %v3493
    %v3517 = vunpack.c.l.b16 %v3494
    %v3518 = vunpack.c.l.b16 %v3495
    %v3519 = vunpack.c.l.b16 %v3496
    %v3520 = vunpack.c.l.b16 %v3497
    %v3521 = vunpack.c.l.b16 %v3498
    %v3522 = vpack.c.b16 %v3515, %v3514
    %v3523 = vpack.c.b16 %v3517, %v3516
    %v3524 = vpack.c.b16 %v3519, %v3518
    %v3525 = vpack.c.b16 %v3521, %v3520
    %vm3530 = vcmask 523264
    %v3532 = vsel %vm3530, %v3490, 0
    %3534 = vmatprep.subr.bf16.mxu0 0
    %3535 = vmatpush1.bf16.msra.mxu0 0
    %3536 = vmatprep.subr.bf16.mxu0 0
    %3537 = vmatpush1.bf16.msra.mxu0 0
    %3538 = vmatprep.subr.bf16.mxu0 0
    %3539 = vmatpush1.bf16.msra.mxu0 0
    %3540 = vmatprep.subr.bf16.mxu0 0
    %3541 = vmatpush1.bf16.msra.mxu0 0
    %3542 = vmatprep.subr.bf16.mxu0 0
    %3543 = vmatpush1.bf16.msra.mxu0 %v3525
    %3544 = vmatprep.subr.bf16.mxu0 0
    %3545 = vmatpush1.bf16.msra.mxu0 %v3524
    %3546 = vmatprep.subr.bf16.mxu0 0
    %3547 = vmatpush1.bf16.msra.mxu0 %v3523
    %3548 = vmatprep.subr.bf16.mxu0 0
    %3549 = vmatpush1.bf16.msra.mxu0 %v3522
    %3550 = vmatprep.subr.bf16.mxu0 0
    %3551 = vmatpush2.bf16.msra.mxu0 0
    %3552 = vmatprep.subr.bf16.mxu0 0
    %3553 = vmatpush2.bf16.msra.mxu0 0
    %3554 = vmatprep.subr.bf16.mxu0 0
    %3555 = vmatpush2.bf16.msra.mxu0 0
    %3556 = vmatprep.subr.bf16.mxu0 0
    %3557 = vmatpush2.bf16.msra.mxu0 0
    %3558 = vmatprep.subr.bf16.mxu0 0
    %3559 = vmatpush2.bf16.msra.mxu0 0
    %3560 = vmatprep.subr.bf16.mxu0 0
    %3561 = vmatpush2.bf16.msra.mxu0 0
    %3562 = vmatprep.subr.bf16.mxu0 0
    %3563 = vmatpush2.bf16.msra.mxu0 0
    %3564 = vmatprep.subr.bf16.mxu0 0
    %3565 = vmatpush2.bf16.msra.mxu0 0
    %3566 = vmatprep.mubr.bf16.mxu0 0
    %3567 = vmatmul.mubr.bf16.gmra.mxu0 %v3532
    %v3568 = vpop.f32.mrf.mxu0
    %v3569 = vadd.f32 %v3504, %v3568
    %v3570 = vpop.f32.mrf.mxu0
    %v3571 = vpop.f32.mrf.mxu0
    %v3572 = vpop.f32.mrf.mxu0
    %3573 = vdwg.mxu0
    %v3574 = vmax.f32 %v3569, 0.0
    %v3575 = vpack.c.bf16 %v3574, %v3574
    %v3576 = vld [vmem:[%s11] sm:$0xff]
    %v3577 = vld [vmem:[%s11 + $0x8] sm:$0xff]
    %v3578 = vld [vmem:[%s11 + $0x10] sm:$0xff]
    %v3579 = vld [vmem:[%s11 + $0x18] sm:$0xff]
    %v3580 = vld [vmem:[%s11 + $0x20] sm:$0xff]
    %v3581 = vld [vmem:[%s11 + $0x28] sm:$0xff]
    %v3582 = vld [vmem:[%s11 + $0x30] sm:$0xff]
    %v3583 = vld [vmem:[%s11 + $0x38] sm:$0xff]
    %v3584 = vld [vmem:[%s11 + $0x40] sm:$0xff]
    %v3585 = vld [vmem:[%s11 + $0x48] sm:$0xff]
    %v3586 = vld [vmem:[%s11 + $0x50] sm:$0xff]
    %v3587 = vld [vmem:[%s11 + $0x58] sm:$0xff]
    %v3588 = vld [vmem:[%s11 + $0x60] sm:$0xff]
    %v3589 = vld [vmem:[%s11 + $0x68] sm:$0xff]
    %v3590 = vld [vmem:[%s11 + $0x70] sm:$0xff]
    %v3591 = vld [vmem:[%s11 + $0x78] sm:$0xff]
    %v3592 = vld [vmem:[%s12] sm:$0xff]
    %v3594 = vlaneseq
    %v3595 = vshrl.u32 %v3594, 7
    %v3596 = vsub.s32 0, %v3595
    %v3597 = vrot.slane %v3592, %v3596
    %v3598 = vlaneseq
    %v3599 = vshrl.u32 %v3598, 7
    %v3600 = vsub.s32 1, %v3599
    %v3601 = vrot.slane %v3592, %v3600
    %v3602 = vlaneseq
    %v3603 = vshrl.u32 %v3602, 7
    %v3604 = vsub.s32 2, %v3603
    %v3605 = vrot.slane %v3592, %v3604
    %v3606 = vlaneseq
    %v3607 = vshrl.u32 %v3606, 7
    %v3608 = vsub.s32 3, %v3607
    %v3609 = vrot.slane %v3592, %v3608
    %v3610 = vlaneseq
    %v3611 = vshrl.u32 %v3610, 7
    %v3612 = vsub.s32 4, %v3611
    %v3613 = vrot.slane %v3592, %v3612
    %v3614 = vlaneseq
    %v3615 = vshrl.u32 %v3614, 7
    %v3616 = vsub.s32 5, %v3615
    %v3617 = vrot.slane %v3592, %v3616
    %v3618 = vlaneseq
    %v3619 = vshrl.u32 %v3618, 7
    %v3620 = vsub.s32 6, %v3619
    %v3621 = vrot.slane %v3592, %v3620
    %v3622 = vlaneseq
    %v3623 = vshrl.u32 %v3622, 7
    %v3624 = vsub.s32 7, %v3623
    %v3625 = vrot.slane %v3592, %v3624
    %v3650 = vunpack.c.l.b16 %v3576
    %v3651 = vunpack.c.h.b16 %v3576
    %v3652 = vunpack.c.l.b16 %v3577
    %v3653 = vunpack.c.h.b16 %v3577
    %v3654 = vunpack.c.l.b16 %v3578
    %v3655 = vunpack.c.h.b16 %v3578
    %v3656 = vunpack.c.l.b16 %v3579
    %v3657 = vunpack.c.h.b16 %v3579
    %v3658 = vunpack.c.l.b16 %v3580
    %v3659 = vunpack.c.h.b16 %v3580
    %v3660 = vunpack.c.l.b16 %v3581
    %v3661 = vunpack.c.h.b16 %v3581
    %v3662 = vunpack.c.l.b16 %v3582
    %v3663 = vunpack.c.h.b16 %v3582
    %v3664 = vunpack.c.l.b16 %v3583
    %v3665 = vunpack.c.h.b16 %v3583
    %v3666 = vunpack.c.l.b16 %v3584
    %v3667 = vunpack.c.h.b16 %v3584
    %v3668 = vunpack.c.l.b16 %v3585
    %v3669 = vunpack.c.h.b16 %v3585
    %v3670 = vunpack.c.l.b16 %v3586
    %v3671 = vunpack.c.h.b16 %v3586
    %v3672 = vunpack.c.l.b16 %v3587
    %v3673 = vunpack.c.h.b16 %v3587
    %v3674 = vunpack.c.l.b16 %v3588
    %v3675 = vunpack.c.h.b16 %v3588
    %v3676 = vunpack.c.l.b16 %v3589
    %v3677 = vunpack.c.h.b16 %v3589
    %v3678 = vunpack.c.l.b16 %v3590
    %v3679 = vunpack.c.h.b16 %v3590
    %v3680 = vunpack.c.l.b16 %v3591
    %v3681 = vunpack.c.h.b16 %v3591
    %v3682 = vpack.c.b16 %v3658, %v3650
    %v3683 = vpack.c.b16 %v3659, %v3651
    %v3684 = vpack.c.b16 %v3660, %v3652
    %v3685 = vpack.c.b16 %v3661, %v3653
    %v3686 = vpack.c.b16 %v3662, %v3654
    %v3687 = vpack.c.b16 %v3663, %v3655
    %v3688 = vpack.c.b16 %v3664, %v3656
    %v3689 = vpack.c.b16 %v3665, %v3657
    %v3690 = vpack.c.b16 %v3674, %v3666
    %v3691 = vpack.c.b16 %v3675, %v3667
    %v3692 = vpack.c.b16 %v3676, %v3668
    %v3693 = vpack.c.b16 %v3677, %v3669
    %v3694 = vpack.c.b16 %v3678, %v3670
    %v3695 = vpack.c.b16 %v3679, %v3671
    %v3696 = vpack.c.b16 %v3680, %v3672
    %v3697 = vpack.c.b16 %v3681, %v3673
    %vm3714 = vcmask 261120
    %v3716 = vsel %vm3714, %v3575, 0
    %3718 = vmatprep.subr.bf16.mxu0 0
    %3719 = vmatpush1.bf16.msra.mxu0 0
    %3720 = vmatprep.subr.bf16.mxu0 0
    %3721 = vmatpush1.bf16.msra.mxu0 0
    %3722 = vmatprep.subr.bf16.mxu0 0
    %3723 = vmatpush1.bf16.msra.mxu0 0
    %3724 = vmatprep.subr.bf16.mxu0 0
    %3725 = vmatpush1.bf16.msra.mxu0 0
    %3726 = vmatprep.subr.bf16.mxu0 0
    %3727 = vmatpush1.bf16.msra.mxu0 0
    %3728 = vmatprep.subr.bf16.mxu0 0
    %3729 = vmatpush1.bf16.msra.mxu0 0
    %3730 = vmatprep.subr.bf16.mxu0 %v3691
    %3731 = vmatpush1.bf16.msra.mxu0 %v3690
    %3732 = vmatprep.subr.bf16.mxu0 %v3683
    %3733 = vmatpush1.bf16.msra.mxu0 %v3682
    %3734 = vmatprep.subr.bf16.mxu0 0
    %3735 = vmatpush2.bf16.msra.mxu0 0
    %3736 = vmatprep.subr.bf16.mxu0 0
    %3737 = vmatpush2.bf16.msra.mxu0 0
    %3738 = vmatprep.subr.bf16.mxu0 0
    %3739 = vmatpush2.bf16.msra.mxu0 0
    %3740 = vmatprep.subr.bf16.mxu0 0
    %3741 = vmatpush2.bf16.msra.mxu0 0
    %3742 = vmatprep.subr.bf16.mxu0 0
    %3743 = vmatpush2.bf16.msra.mxu0 0
    %3744 = vmatprep.subr.bf16.mxu0 0
    %3745 = vmatpush2.bf16.msra.mxu0 0
    %3746 = vmatprep.subr.bf16.mxu0 0
    %3747 = vmatpush2.bf16.msra.mxu0 0
    %3748 = vmatprep.subr.bf16.mxu0 0
    %3749 = vmatpush2.bf16.msra.mxu0 0
    %3750 = vmatprep.mubr.bf16.mxu0 0
    %3751 = vmatmul.mubr.bf16.gmra.mxu0 %v3716
    %v3752 = vpop.f32.mrf.mxu0
    %v3753 = vadd.f32 %v3597, %v3752
    %v3754 = vpop.f32.mrf.mxu0
    %v3755 = vadd.f32 %v3601, %v3754
    %v3756 = vpop.f32.mrf.mxu0
    %v3757 = vpop.f32.mrf.mxu0
    %3758 = vdwg.mxu0
    %3759 = vmatprep.subr.bf16.mxu0 0
    %3760 = vmatpush1.bf16.msra.mxu0 0
    %3761 = vmatprep.subr.bf16.mxu0 0
    %3762 = vmatpush1.bf16.msra.mxu0 0
    %3763 = vmatprep.subr.bf16.mxu0 0
    %3764 = vmatpush1.bf16.msra.mxu0 0
    %3765 = vmatprep.subr.bf16.mxu0 0
    %3766 = vmatpush1.bf16.msra.mxu0 0
    %3767 = vmatprep.subr.bf16.mxu0 0
    %3768 = vmatpush1.bf16.msra.mxu0 0
    %3769 = vmatprep.subr.bf16.mxu0 0
    %3770 = vmatpush1.bf16.msra.mxu0 0
    %3771 = vmatprep.subr.bf16.mxu0 %v3693
    %3772 = vmatpush1.bf16.msra.mxu0 %v3692
    %3773 = vmatprep.subr.bf16.mxu0 %v3685
    %3774 = vmatpush1.bf16.msra.mxu0 %v3684
    %3775 = vmatprep.subr.bf16.mxu0 0
    %3776 = vmatpush2.bf16.msra.mxu0 0
    %3777 = vmatprep.subr.bf16.mxu0 0
    %3778 = vmatpush2.bf16.msra.mxu0 0
    %3779 = vmatprep.subr.bf16.mxu0 0
    %3780 = vmatpush2.bf16.msra.mxu0 0
    %3781 = vmatprep.subr.bf16.mxu0 0
    %3782 = vmatpush2.bf16.msra.mxu0 0
    %3783 = vmatprep.subr.bf16.mxu0 0
    %3784 = vmatpush2.bf16.msra.mxu0 0
    %3785 = vmatprep.subr.bf16.mxu0 0
    %3786 = vmatpush2.bf16.msra.mxu0 0
    %3787 = vmatprep.subr.bf16.mxu0 0
    %3788 = vmatpush2.bf16.msra.mxu0 0
    %3789 = vmatprep.subr.bf16.mxu0 0
    %3790 = vmatpush2.bf16.msra.mxu0 0
    %3791 = vmatprep.mubr.bf16.mxu0 0
    %3792 = vmatmul.mubr.bf16.gmra.mxu0 %v3716
    %v3793 = vpop.f32.mrf.mxu0
    %v3794 = vadd.f32 %v3605, %v3793
    %v3795 = vpop.f32.mrf.mxu0
    %v3796 = vadd.f32 %v3609, %v3795
    %v3797 = vpop.f32.mrf.mxu0
    %v3798 = vpop.f32.mrf.mxu0
    %3799 = vdwg.mxu0
    %3800 = vmatprep.subr.bf16.mxu0 0
    %3801 = vmatpush1.bf16.msra.mxu0 0
    %3802 = vmatprep.subr.bf16.mxu0 0
    %3803 = vmatpush1.bf16.msra.mxu0 0
    %3804 = vmatprep.subr.bf16.mxu0 0
    %3805 = vmatpush1.bf16.msra.mxu0 0
    %3806 = vmatprep.subr.bf16.mxu0 0
    %3807 = vmatpush1.bf16.msra.mxu0 0
    %3808 = vmatprep.subr.bf16.mxu0 0
    %3809 = vmatpush1.bf16.msra.mxu0 0
    %3810 = vmatprep.subr.bf16.mxu0 0
    %3811 = vmatpush1.bf16.msra.mxu0 0
    %3812 = vmatprep.subr.bf16.mxu0 %v3695
    %3813 = vmatpush1.bf16.msra.mxu0 %v3694
    %3814 = vmatprep.subr.bf16.mxu0 %v3687
    %3815 = vmatpush1.bf16.msra.mxu0 %v3686
    %3816 = vmatprep.subr.bf16.mxu0 0
    %3817 = vmatpush2.bf16.msra.mxu0 0
    %3818 = vmatprep.subr.bf16.mxu0 0
    %3819 = vmatpush2.bf16.msra.mxu0 0
    %3820 = vmatprep.subr.bf16.mxu0 0
    %3821 = vmatpush2.bf16.msra.mxu0 0
    %3822 = vmatprep.subr.bf16.mxu0 0
    %3823 = vmatpush2.bf16.msra.mxu0 0
    %3824 = vmatprep.subr.bf16.mxu0 0
    %3825 = vmatpush2.bf16.msra.mxu0 0
    %3826 = vmatprep.subr.bf16.mxu0 0
    %3827 = vmatpush2.bf16.msra.mxu0 0
    %3828 = vmatprep.subr.bf16.mxu0 0
    %3829 = vmatpush2.bf16.msra.mxu0 0
    %3830 = vmatprep.subr.bf16.mxu0 0
    %3831 = vmatpush2.bf16.msra.mxu0 0
    %3832 = vmatprep.mubr.bf16.mxu0 0
    %3833 = vmatmul.mubr.bf16.gmra.mxu0 %v3716
    %v3834 = vpop.f32.mrf.mxu0
    %v3835 = vadd.f32 %v3613, %v3834
    %v3836 = vpop.f32.mrf.mxu0
    %v3837 = vadd.f32 %v3617, %v3836
    %v3838 = vpop.f32.mrf.mxu0
    %v3839 = vpop.f32.mrf.mxu0
    %3840 = vdwg.mxu0
    %3841 = vmatprep.subr.bf16.mxu0 0
    %3842 = vmatpush1.bf16.msra.mxu0 0
    %3843 = vmatprep.subr.bf16.mxu0 0
    %3844 = vmatpush1.bf16.msra.mxu0 0
    %3845 = vmatprep.subr.bf16.mxu0 0
    %3846 = vmatpush1.bf16.msra.mxu0 0
    %3847 = vmatprep.subr.bf16.mxu0 0
    %3848 = vmatpush1.bf16.msra.mxu0 0
    %3849 = vmatprep.subr.bf16.mxu0 0
    %3850 = vmatpush1.bf16.msra.mxu0 0
    %3851 = vmatprep.subr.bf16.mxu0 0
    %3852 = vmatpush1.bf16.msra.mxu0 0
    %3853 = vmatprep.subr.bf16.mxu0 %v3697
    %3854 = vmatpush1.bf16.msra.mxu0 %v3696
    %3855 = vmatprep.subr.bf16.mxu0 %v3689
    %3856 = vmatpush1.bf16.msra.mxu0 %v3688
    %3857 = vmatprep.subr.bf16.mxu0 0
    %3858 = vmatpush2.bf16.msra.mxu0 0
    %3859 = vmatprep.subr.bf16.mxu0 0
    %3860 = vmatpush2.bf16.msra.mxu0 0
    %3861 = vmatprep.subr.bf16.mxu0 0
    %3862 = vmatpush2.bf16.msra.mxu0 0
    %3863 = vmatprep.subr.bf16.mxu0 0
    %3864 = vmatpush2.bf16.msra.mxu0 0
    %3865 = vmatprep.subr.bf16.mxu0 0
    %3866 = vmatpush2.bf16.msra.mxu0 0
    %3867 = vmatprep.subr.bf16.mxu0 0
    %3868 = vmatpush2.bf16.msra.mxu0 0
    %3869 = vmatprep.subr.bf16.mxu0 0
    %3870 = vmatpush2.bf16.msra.mxu0 0
    %3871 = vmatprep.subr.bf16.mxu0 0
    %3872 = vmatpush2.bf16.msra.mxu0 0
    %3873 = vmatprep.mubr.bf16.mxu0 0
    %3874 = vmatmul.mubr.bf16.gmra.mxu0 %v3716
    %v3875 = vpop.f32.mrf.mxu0
    %v3876 = vadd.f32 %v3621, %v3875
    %v3877 = vpop.f32.mrf.mxu0
    %v3878 = vadd.f32 %v3625, %v3877
    %v3879 = vpop.f32.mrf.mxu0
    %v3880 = vpop.f32.mrf.mxu0
    %3881 = vdwg.mxu0
    %v3882 = vmax.f32 %v3753, 0.0
    %v3883 = vmax.f32 %v3755, 0.0
    %v3884 = vmax.f32 %v3794, 0.0
    %v3885 = vmax.f32 %v3796, 0.0
    %v3886 = vmax.f32 %v3835, 0.0
    %v3887 = vmax.f32 %v3837, 0.0
    %v3888 = vmax.f32 %v3876, 0.0
    %v3889 = vmax.f32 %v3878, 0.0
    %v3890 = vpack.c.bf16 %v3882, %v3882
    %v3891 = vpack.c.bf16 %v3883, %v3883
    %v3892 = vpack.c.bf16 %v3884, %v3884
    %v3893 = vpack.c.bf16 %v3885, %v3885
    %v3894 = vpack.c.bf16 %v3886, %v3886
    %v3895 = vpack.c.bf16 %v3887, %v3887
    %v3896 = vpack.c.bf16 %v3888, %v3888
    %v3897 = vpack.c.bf16 %v3889, %v3889
    %v3898 = vld [vmem:[%s13] sm:$0xf]
    %v3899 = vld [vmem:[%s13 + $0x4] sm:$0xf]
    %v3900 = vld [vmem:[%s13 + $0x8] sm:$0xf]
    %v3901 = vld [vmem:[%s13 + $0xc] sm:$0xf]
    %v3902 = vld [vmem:[%s13 + $0x10] sm:$0xf]
    %v3903 = vld [vmem:[%s13 + $0x14] sm:$0xf]
    %v3904 = vld [vmem:[%s13 + $0x18] sm:$0xf]
    %v3905 = vld [vmem:[%s13 + $0x1c] sm:$0xf]
    %v3906 = vld [vmem:[%s13 + $0x20] sm:$0xf]
    %v3907 = vld [vmem:[%s13 + $0x24] sm:$0xf]
    %v3908 = vld [vmem:[%s13 + $0x28] sm:$0xf]
    %v3909 = vld [vmem:[%s13 + $0x2c] sm:$0xf]
    %v3910 = vld [vmem:[%s13 + $0x30] sm:$0xf]
    %v3911 = vld [vmem:[%s13 + $0x34] sm:$0xf]
    %v3912 = vld [vmem:[%s13 + $0x38] sm:$0xf]
    %v3913 = vld [vmem:[%s13 + $0x3c] sm:$0xf]
    %v3914 = vld [vmem:[%s13 + $0x40] sm:$0xf]
    %v3915 = vld [vmem:[%s13 + $0x44] sm:$0xf]
    %v3916 = vld [vmem:[%s13 + $0x48] sm:$0xf]
    %v3917 = vld [vmem:[%s13 + $0x4c] sm:$0xf]
    %v3918 = vld [vmem:[%s13 + $0x50] sm:$0xf]
    %v3919 = vld [vmem:[%s13 + $0x54] sm:$0xf]
    %v3920 = vld [vmem:[%s13 + $0x58] sm:$0xf]
    %v3921 = vld [vmem:[%s13 + $0x5c] sm:$0xf]
    %v3922 = vld [vmem:[%s13 + $0x60] sm:$0xf]
    %v3923 = vld [vmem:[%s13 + $0x64] sm:$0xf]
    %v3924 = vld [vmem:[%s13 + $0x68] sm:$0xf]
    %v3925 = vld [vmem:[%s13 + $0x6c] sm:$0xf]
    %v3926 = vld [vmem:[%s13 + $0x70] sm:$0xf]
    %v3927 = vld [vmem:[%s13 + $0x74] sm:$0xf]
    %v3928 = vld [vmem:[%s13 + $0x78] sm:$0xf]
    %v3929 = vld [vmem:[%s13 + $0x7c] sm:$0xf]
    %v3930 = vld [vmem:[%s13 + $0x80] sm:$0xf]
    %v3931 = vld [vmem:[%s13 + $0x84] sm:$0xf]
    %v3932 = vld [vmem:[%s13 + $0x88] sm:$0xf]
    %v3933 = vld [vmem:[%s13 + $0x8c] sm:$0xf]
    %v3934 = vld [vmem:[%s13 + $0x90] sm:$0xf]
    %v3935 = vld [vmem:[%s13 + $0x94] sm:$0xf]
    %v3936 = vld [vmem:[%s13 + $0x98] sm:$0xf]
    %v3937 = vld [vmem:[%s13 + $0x9c] sm:$0xf]
    %v3938 = vld [vmem:[%s13 + $0xa0] sm:$0xf]
    %v3939 = vld [vmem:[%s13 + $0xa4] sm:$0xf]
    %v3940 = vld [vmem:[%s13 + $0xa8] sm:$0xf]
    %v3941 = vld [vmem:[%s13 + $0xac] sm:$0xf]
    %v3942 = vld [vmem:[%s13 + $0xb0] sm:$0xf]
    %v3943 = vld [vmem:[%s13 + $0xb4] sm:$0xf]
    %v3944 = vld [vmem:[%s13 + $0xb8] sm:$0xf]
    %v3945 = vld [vmem:[%s13 + $0xbc] sm:$0xf]
    %v3946 = vld [vmem:[%s13 + $0xc0] sm:$0xf]
    %v3947 = vld [vmem:[%s13 + $0xc4] sm:$0xf]
    %v3948 = vld [vmem:[%s13 + $0xc8] sm:$0xf]
    %v3949 = vld [vmem:[%s13 + $0xcc] sm:$0xf]
    %v3950 = vld [vmem:[%s13 + $0xd0] sm:$0xf]
    %v3951 = vld [vmem:[%s13 + $0xd4] sm:$0xf]
    %v3952 = vld [vmem:[%s13 + $0xd8] sm:$0xf]
    %v3953 = vld [vmem:[%s13 + $0xdc] sm:$0xf]
    %v3954 = vld [vmem:[%s13 + $0xe0] sm:$0xf]
    %v3955 = vld [vmem:[%s13 + $0xe4] sm:$0xf]
    %v3956 = vld [vmem:[%s13 + $0xe8] sm:$0xf]
    %v3957 = vld [vmem:[%s13 + $0xec] sm:$0xf]
    %v3958 = vld [vmem:[%s13 + $0xf0] sm:$0xf]
    %v3959 = vld [vmem:[%s13 + $0xf4] sm:$0xf]
    %v3960 = vld [vmem:[%s13 + $0xf8] sm:$0xf]
    %v3961 = vld [vmem:[%s13 + $0xfc] sm:$0xf]
    %v3962 = vld [vmem:[%s13 + $0x100] sm:$0xf]
    %v3963 = vld [vmem:[%s13 + $0x104] sm:$0xf]
    %v3964 = vld [vmem:[%s13 + $0x108] sm:$0xf]
    %v3965 = vld [vmem:[%s13 + $0x10c] sm:$0xf]
    %v3966 = vld [vmem:[%s13 + $0x110] sm:$0xf]
    %v3967 = vld [vmem:[%s13 + $0x114] sm:$0xf]
    %v3968 = vld [vmem:[%s13 + $0x118] sm:$0xf]
    %v3969 = vld [vmem:[%s13 + $0x11c] sm:$0xf]
    %v3970 = vld [vmem:[%s13 + $0x120] sm:$0xf]
    %v3971 = vld [vmem:[%s13 + $0x124] sm:$0xf]
    %v3972 = vld [vmem:[%s13 + $0x128] sm:$0xf]
    %v3973 = vld [vmem:[%s13 + $0x12c] sm:$0xf]
    %v3974 = vld [vmem:[%s13 + $0x130] sm:$0xf]
    %v3975 = vld [vmem:[%s13 + $0x134] sm:$0xf]
    %v3976 = vld [vmem:[%s13 + $0x138] sm:$0xf]
    %v3977 = vld [vmem:[%s13 + $0x13c] sm:$0xf]
    %v3978 = vld [vmem:[%s13 + $0x140] sm:$0xf]
    %v3979 = vld [vmem:[%s13 + $0x144] sm:$0xf]
    %v3980 = vld [vmem:[%s13 + $0x148] sm:$0xf]
    %v3981 = vld [vmem:[%s13 + $0x14c] sm:$0xf]
    %v3982 = vld [vmem:[%s13 + $0x150] sm:$0xf]
    %v3983 = vld [vmem:[%s13 + $0x154] sm:$0xf]
    %v3984 = vld [vmem:[%s13 + $0x158] sm:$0xf]
    %v3985 = vld [vmem:[%s13 + $0x15c] sm:$0xf]
    %v3986 = vld [vmem:[%s13 + $0x160] sm:$0xf]
    %v3987 = vld [vmem:[%s13 + $0x164] sm:$0xf]
    %v3988 = vld [vmem:[%s13 + $0x168] sm:$0xf]
    %v3989 = vld [vmem:[%s13 + $0x16c] sm:$0xf]
    %v3990 = vld [vmem:[%s13 + $0x170] sm:$0xf]
    %v3991 = vld [vmem:[%s13 + $0x174] sm:$0xf]
    %v3992 = vld [vmem:[%s13 + $0x178] sm:$0xf]
    %v3993 = vld [vmem:[%s13 + $0x17c] sm:$0xf]
    %v3994 = vld [vmem:[%s13 + $0x180] sm:$0xf]
    %v3995 = vld [vmem:[%s13 + $0x184] sm:$0xf]
    %v3996 = vld [vmem:[%s13 + $0x188] sm:$0xf]
    %v3997 = vld [vmem:[%s13 + $0x18c] sm:$0xf]
    %v3998 = vld [vmem:[%s13 + $0x190] sm:$0xf]
    %v3999 = vld [vmem:[%s13 + $0x194] sm:$0xf]
    %v4000 = vld [vmem:[%s13 + $0x198] sm:$0xf]
    %v4001 = vld [vmem:[%s13 + $0x19c] sm:$0xf]
    %v4002 = vld [vmem:[%s13 + $0x1a0] sm:$0xf]
    %v4003 = vld [vmem:[%s13 + $0x1a4] sm:$0xf]
    %v4004 = vld [vmem:[%s13 + $0x1a8] sm:$0xf]
    %v4005 = vld [vmem:[%s13 + $0x1ac] sm:$0xf]
    %v4006 = vld [vmem:[%s13 + $0x1b0] sm:$0xf]
    %v4007 = vld [vmem:[%s13 + $0x1b4] sm:$0xf]
    %v4008 = vld [vmem:[%s13 + $0x1b8] sm:$0xf]
    %v4009 = vld [vmem:[%s13 + $0x1bc] sm:$0xf]
    %v4010 = vld [vmem:[%s13 + $0x1c0] sm:$0xf]
    %v4011 = vld [vmem:[%s13 + $0x1c4] sm:$0xf]
    %v4012 = vld [vmem:[%s13 + $0x1c8] sm:$0xf]
    %v4013 = vld [vmem:[%s13 + $0x1cc] sm:$0xf]
    %v4014 = vld [vmem:[%s13 + $0x1d0] sm:$0xf]
    %v4015 = vld [vmem:[%s13 + $0x1d4] sm:$0xf]
    %v4016 = vld [vmem:[%s13 + $0x1d8] sm:$0xf]
    %v4017 = vld [vmem:[%s13 + $0x1dc] sm:$0xf]
    %v4018 = vld [vmem:[%s13 + $0x1e0] sm:$0xf]
    %v4019 = vld [vmem:[%s13 + $0x1e4] sm:$0xf]
    %v4020 = vld [vmem:[%s13 + $0x1e8] sm:$0xf]
    %v4021 = vld [vmem:[%s13 + $0x1ec] sm:$0xf]
    %v4022 = vld [vmem:[%s13 + $0x1f0] sm:$0xf]
    %v4023 = vld [vmem:[%s13 + $0x1f4] sm:$0xf]
    %v4024 = vld [vmem:[%s13 + $0x1f8] sm:$0xf]
    %v4025 = vld [vmem:[%s13 + $0x1fc] sm:$0xf]
    %v4026 = vld [vmem:[%s14] sm:$0x1]
    %v4028 = vlaneseq
    %v4029 = vshrl.u32 %v4028, 7
    %v4030 = vsub.s32 0, %v4029
    %v4031 = vrot.slane %v4026, %v4030
    %v4161 = vunpack.c.l.b16 %v3898
    %v4162 = vunpack.c.l.b16 %v3899
    %v4163 = vunpack.c.l.b16 %v3900
    %v4164 = vunpack.c.l.b16 %v3901
    %v4165 = vunpack.c.l.b16 %v3902
    %v4166 = vunpack.c.l.b16 %v3903
    %v4167 = vunpack.c.l.b16 %v3904
    %v4168 = vunpack.c.l.b16 %v3905
    %v4169 = vunpack.c.l.b16 %v3906
    %v4170 = vunpack.c.l.b16 %v3907
    %v4171 = vunpack.c.l.b16 %v3908
    %v4172 = vunpack.c.l.b16 %v3909
    %v4173 = vunpack.c.l.b16 %v3910
    %v4174 = vunpack.c.l.b16 %v3911
    %v4175 = vunpack.c.l.b16 %v3912
    %v4176 = vunpack.c.l.b16 %v3913
    %v4177 = vunpack.c.l.b16 %v3914
    %v4178 = vunpack.c.l.b16 %v3915
    %v4179 = vunpack.c.l.b16 %v3916
    %v4180 = vunpack.c.l.b16 %v3917
    %v4181 = vunpack.c.l.b16 %v3918
    %v4182 = vunpack.c.l.b16 %v3919
    %v4183 = vunpack.c.l.b16 %v3920
    %v4184 = vunpack.c.l.b16 %v3921
    %v4185 = vunpack.c.l.b16 %v3922
    %v4186 = vunpack.c.l.b16 %v3923
    %v4187 = vunpack.c.l.b16 %v3924
    %v4188 = vunpack.c.l.b16 %v3925
    %v4189 = vunpack.c.l.b16 %v3926
    %v4190 = vunpack.c.l.b16 %v3927
    %v4191 = vunpack.c.l.b16 %v3928
    %v4192 = vunpack.c.l.b16 %v3929
    %v4193 = vunpack.c.l.b16 %v3930
    %v4194 = vunpack.c.l.b16 %v3931
    %v4195 = vunpack.c.l.b16 %v3932
    %v4196 = vunpack.c.l.b16 %v3933
    %v4197 = vunpack.c.l.b16 %v3934
    %v4198 = vunpack.c.l.b16 %v3935
    %v4199 = vunpack.c.l.b16 %v3936
    %v4200 = vunpack.c.l.b16 %v3937
    %v4201 = vunpack.c.l.b16 %v3938
    %v4202 = vunpack.c.l.b16 %v3939
    %v4203 = vunpack.c.l.b16 %v3940
    %v4204 = vunpack.c.l.b16 %v3941
    %v4205 = vunpack.c.l.b16 %v3942
    %v4206 = vunpack.c.l.b16 %v3943
    %v4207 = vunpack.c.l.b16 %v3944
    %v4208 = vunpack.c.l.b16 %v3945
    %v4209 = vunpack.c.l.b16 %v3946
    %v4210 = vunpack.c.l.b16 %v3947
    %v4211 = vunpack.c.l.b16 %v3948
    %v4212 = vunpack.c.l.b16 %v3949
    %v4213 = vunpack.c.l.b16 %v3950
    %v4214 = vunpack.c.l.b16 %v3951
    %v4215 = vunpack.c.l.b16 %v3952
    %v4216 = vunpack.c.l.b16 %v3953
    %v4217 = vunpack.c.l.b16 %v3954
    %v4218 = vunpack.c.l.b16 %v3955
    %v4219 = vunpack.c.l.b16 %v3956
    %v4220 = vunpack.c.l.b16 %v3957
    %v4221 = vunpack.c.l.b16 %v3958
    %v4222 = vunpack.c.l.b16 %v3959
    %v4223 = vunpack.c.l.b16 %v3960
    %v4224 = vunpack.c.l.b16 %v3961
    %v4225 = vunpack.c.l.b16 %v3962
    %v4226 = vunpack.c.l.b16 %v3963
    %v4227 = vunpack.c.l.b16 %v3964
    %v4228 = vunpack.c.l.b16 %v3965
    %v4229 = vunpack.c.l.b16 %v3966
    %v4230 = vunpack.c.l.b16 %v3967
    %v4231 = vunpack.c.l.b16 %v3968
    %v4232 = vunpack.c.l.b16 %v3969
    %v4233 = vunpack.c.l.b16 %v3970
    %v4234 = vunpack.c.l.b16 %v3971
    %v4235 = vunpack.c.l.b16 %v3972
    %v4236 = vunpack.c.l.b16 %v3973
    %v4237 = vunpack.c.l.b16 %v3974
    %v4238 = vunpack.c.l.b16 %v3975
    %v4239 = vunpack.c.l.b16 %v3976
    %v4240 = vunpack.c.l.b16 %v3977
    %v4241 = vunpack.c.l.b16 %v3978
    %v4242 = vunpack.c.l.b16 %v3979
    %v4243 = vunpack.c.l.b16 %v3980
    %v4244 = vunpack.c.l.b16 %v3981
    %v4245 = vunpack.c.l.b16 %v3982
    %v4246 = vunpack.c.l.b16 %v3983
    %v4247 = vunpack.c.l.b16 %v3984
    %v4248 = vunpack.c.l.b16 %v3985
    %v4249 = vunpack.c.l.b16 %v3986
    %v4250 = vunpack.c.l.b16 %v3987
    %v4251 = vunpack.c.l.b16 %v3988
    %v4252 = vunpack.c.l.b16 %v3989
    %v4253 = vunpack.c.l.b16 %v3990
    %v4254 = vunpack.c.l.b16 %v3991
    %v4255 = vunpack.c.l.b16 %v3992
    %v4256 = vunpack.c.l.b16 %v3993
    %v4257 = vunpack.c.l.b16 %v3994
    %v4258 = vunpack.c.l.b16 %v3995
    %v4259 = vunpack.c.l.b16 %v3996
    %v4260 = vunpack.c.l.b16 %v3997
    %v4261 = vunpack.c.l.b16 %v3998
    %v4262 = vunpack.c.l.b16 %v3999
    %v4263 = vunpack.c.l.b16 %v4000
    %v4264 = vunpack.c.l.b16 %v4001
    %v4265 = vunpack.c.l.b16 %v4002
    %v4266 = vunpack.c.l.b16 %v4003
    %v4267 = vunpack.c.l.b16 %v4004
    %v4268 = vunpack.c.l.b16 %v4005
    %v4269 = vunpack.c.l.b16 %v4006
    %v4270 = vunpack.c.l.b16 %v4007
    %v4271 = vunpack.c.l.b16 %v4008
    %v4272 = vunpack.c.l.b16 %v4009
    %v4273 = vunpack.c.l.b16 %v4010
    %v4274 = vunpack.c.l.b16 %v4011
    %v4275 = vunpack.c.l.b16 %v4012
    %v4276 = vunpack.c.l.b16 %v4013
    %v4277 = vunpack.c.l.b16 %v4014
    %v4278 = vunpack.c.l.b16 %v4015
    %v4279 = vunpack.c.l.b16 %v4016
    %v4280 = vunpack.c.l.b16 %v4017
    %v4281 = vunpack.c.l.b16 %v4018
    %v4282 = vunpack.c.l.b16 %v4019
    %v4283 = vunpack.c.l.b16 %v4020
    %v4284 = vunpack.c.l.b16 %v4021
    %v4285 = vunpack.c.l.b16 %v4022
    %v4286 = vunpack.c.l.b16 %v4023
    %v4287 = vunpack.c.l.b16 %v4024
    %v4288 = vunpack.c.l.b16 %v4025
    %v4289 = vpack.c.b16 %v4162, %v4161
    %v4290 = vpack.c.b16 %v4164, %v4163
    %v4291 = vpack.c.b16 %v4166, %v4165
    %v4292 = vpack.c.b16 %v4168, %v4167
    %v4293 = vpack.c.b16 %v4170, %v4169
    %v4294 = vpack.c.b16 %v4172, %v4171
    %v4295 = vpack.c.b16 %v4174, %v4173
    %v4296 = vpack.c.b16 %v4176, %v4175
    %v4297 = vpack.c.b16 %v4178, %v4177
    %v4298 = vpack.c.b16 %v4180, %v4179
    %v4299 = vpack.c.b16 %v4182, %v4181
    %v4300 = vpack.c.b16 %v4184, %v4183
    %v4301 = vpack.c.b16 %v4186, %v4185
    %v4302 = vpack.c.b16 %v4188, %v4187
    %v4303 = vpack.c.b16 %v4190, %v4189
    %v4304 = vpack.c.b16 %v4192, %v4191
    %v4305 = vpack.c.b16 %v4194, %v4193
    %v4306 = vpack.c.b16 %v4196, %v4195
    %v4307 = vpack.c.b16 %v4198, %v4197
    %v4308 = vpack.c.b16 %v4200, %v4199
    %v4309 = vpack.c.b16 %v4202, %v4201
    %v4310 = vpack.c.b16 %v4204, %v4203
    %v4311 = vpack.c.b16 %v4206, %v4205
    %v4312 = vpack.c.b16 %v4208, %v4207
    %v4313 = vpack.c.b16 %v4210, %v4209
    %v4314 = vpack.c.b16 %v4212, %v4211
    %v4315 = vpack.c.b16 %v4214, %v4213
    %v4316 = vpack.c.b16 %v4216, %v4215
    %v4317 = vpack.c.b16 %v4218, %v4217
    %v4318 = vpack.c.b16 %v4220, %v4219
    %v4319 = vpack.c.b16 %v4222, %v4221
    %v4320 = vpack.c.b16 %v4224, %v4223
    %v4321 = vpack.c.b16 %v4226, %v4225
    %v4322 = vpack.c.b16 %v4228, %v4227
    %v4323 = vpack.c.b16 %v4230, %v4229
    %v4324 = vpack.c.b16 %v4232, %v4231
    %v4325 = vpack.c.b16 %v4234, %v4233
    %v4326 = vpack.c.b16 %v4236, %v4235
    %v4327 = vpack.c.b16 %v4238, %v4237
    %v4328 = vpack.c.b16 %v4240, %v4239
    %v4329 = vpack.c.b16 %v4242, %v4241
    %v4330 = vpack.c.b16 %v4244, %v4243
    %v4331 = vpack.c.b16 %v4246, %v4245
    %v4332 = vpack.c.b16 %v4248, %v4247
    %v4333 = vpack.c.b16 %v4250, %v4249
    %v4334 = vpack.c.b16 %v4252, %v4251
    %v4335 = vpack.c.b16 %v4254, %v4253
    %v4336 = vpack.c.b16 %v4256, %v4255
    %v4337 = vpack.c.b16 %v4258, %v4257
    %v4338 = vpack.c.b16 %v4260, %v4259
    %v4339 = vpack.c.b16 %v4262, %v4261
    %v4340 = vpack.c.b16 %v4264, %v4263
    %v4341 = vpack.c.b16 %v4266, %v4265
    %v4342 = vpack.c.b16 %v4268, %v4267
    %v4343 = vpack.c.b16 %v4270, %v4269
    %v4344 = vpack.c.b16 %v4272, %v4271
    %v4345 = vpack.c.b16 %v4274, %v4273
    %v4346 = vpack.c.b16 %v4276, %v4275
    %v4347 = vpack.c.b16 %v4278, %v4277
    %v4348 = vpack.c.b16 %v4280, %v4279
    %v4349 = vpack.c.b16 %v4282, %v4281
    %v4350 = vpack.c.b16 %v4284, %v4283
    %v4351 = vpack.c.b16 %v4286, %v4285
    %v4352 = vpack.c.b16 %v4288, %v4287
    %4417 = vmatprep.subr.bf16.mxu0 0
    %4418 = vmatpush1.bf16.msra.mxu0 %v4296
    %4419 = vmatprep.subr.bf16.mxu0 0
    %4420 = vmatpush1.bf16.msra.mxu0 %v4295
    %4421 = vmatprep.subr.bf16.mxu0 0
    %4422 = vmatpush1.bf16.msra.mxu0 %v4294
    %4423 = vmatprep.subr.bf16.mxu0 0
    %4424 = vmatpush1.bf16.msra.mxu0 %v4293
    %4425 = vmatprep.subr.bf16.mxu0 0
    %4426 = vmatpush1.bf16.msra.mxu0 %v4292
    %4427 = vmatprep.subr.bf16.mxu0 0
    %4428 = vmatpush1.bf16.msra.mxu0 %v4291
    %4429 = vmatprep.subr.bf16.mxu0 0
    %4430 = vmatpush1.bf16.msra.mxu0 %v4290
    %4431 = vmatprep.subr.bf16.mxu0 0
    %4432 = vmatpush1.bf16.msra.mxu0 %v4289
    %4433 = vmatprep.subr.bf16.mxu0 0
    %4434 = vmatpush2.bf16.msra.mxu0 %v4304
    %4435 = vmatprep.subr.bf16.mxu0 0
    %4436 = vmatpush2.bf16.msra.mxu0 %v4303
    %4437 = vmatprep.subr.bf16.mxu0 0
    %4438 = vmatpush2.bf16.msra.mxu0 %v4302
    %4439 = vmatprep.subr.bf16.mxu0 0
    %4440 = vmatpush2.bf16.msra.mxu0 %v4301
    %4441 = vmatprep.subr.bf16.mxu0 0
    %4442 = vmatpush2.bf16.msra.mxu0 %v4300
    %4443 = vmatprep.subr.bf16.mxu0 0
    %4444 = vmatpush2.bf16.msra.mxu0 %v4299
    %4445 = vmatprep.subr.bf16.mxu0 0
    %4446 = vmatpush2.bf16.msra.mxu0 %v4298
    %4447 = vmatprep.subr.bf16.mxu0 0
    %4448 = vmatpush2.bf16.msra.mxu0 %v4297
    %4449 = vmatprep.mubr.bf16.mxu0 %v3891
    %4450 = vmatmul.mubr.bf16.gmra.mxu0 %v3890
    %v4451 = vpop.f32.mrf.mxu0
    %v4452 = vadd.f32 %v4031, %v4451
    %v4453 = vpop.f32.mrf.mxu0
    %v4454 = vpop.f32.mrf.mxu0
    %v4455 = vpop.f32.mrf.mxu0
    %4456 = vdwg.mxu0
    %4457 = vmatprep.subr.bf16.mxu0 0
    %4458 = vmatpush1.bf16.msra.mxu0 %v4312
    %4459 = vmatprep.subr.bf16.mxu0 0
    %4460 = vmatpush1.bf16.msra.mxu0 %v4311
    %4461 = vmatprep.subr.bf16.mxu0 0
    %4462 = vmatpush1.bf16.msra.mxu0 %v4310
    %4463 = vmatprep.subr.bf16.mxu0 0
    %4464 = vmatpush1.bf16.msra.mxu0 %v4309
    %4465 = vmatprep.subr.bf16.mxu0 0
    %4466 = vmatpush1.bf16.msra.mxu0 %v4308
    %4467 = vmatprep.subr.bf16.mxu0 0
    %4468 = vmatpush1.bf16.msra.mxu0 %v4307
    %4469 = vmatprep.subr.bf16.mxu0 0
    %4470 = vmatpush1.bf16.msra.mxu0 %v4306
    %4471 = vmatprep.subr.bf16.mxu0 0
    %4472 = vmatpush1.bf16.msra.mxu0 %v4305
    %4473 = vmatprep.subr.bf16.mxu0 0
    %4474 = vmatpush2.bf16.msra.mxu0 %v4320
    %4475 = vmatprep.subr.bf16.mxu0 0
    %4476 = vmatpush2.bf16.msra.mxu0 %v4319
    %4477 = vmatprep.subr.bf16.mxu0 0
    %4478 = vmatpush2.bf16.msra.mxu0 %v4318
    %4479 = vmatprep.subr.bf16.mxu0 0
    %4480 = vmatpush2.bf16.msra.mxu0 %v4317
    %4481 = vmatprep.subr.bf16.mxu0 0
    %4482 = vmatpush2.bf16.msra.mxu0 %v4316
    %4483 = vmatprep.subr.bf16.mxu0 0
    %4484 = vmatpush2.bf16.msra.mxu0 %v4315
    %4485 = vmatprep.subr.bf16.mxu0 0
    %4486 = vmatpush2.bf16.msra.mxu0 %v4314
    %4487 = vmatprep.subr.bf16.mxu0 0
    %4488 = vmatpush2.bf16.msra.mxu0 %v4313
    %4489 = vmatprep.mubr.bf16.mxu0 %v3893
    %4490 = vmatmul.mubr.bf16.gmra.mxu0 %v3892
    %v4491 = vpop.f32.mrf.mxu0
    %v4492 = vadd.f32 %v4452, %v4491
    %v4493 = vpop.f32.mrf.mxu0
    %v4494 = vpop.f32.mrf.mxu0
    %v4495 = vpop.f32.mrf.mxu0
    %4496 = vdwg.mxu0
    %4497 = vmatprep.subr.bf16.mxu0 0
    %4498 = vmatpush1.bf16.msra.mxu0 %v4328
    %4499 = vmatprep.subr.bf16.mxu0 0
    %4500 = vmatpush1.bf16.msra.mxu0 %v4327
    %4501 = vmatprep.subr.bf16.mxu0 0
    %4502 = vmatpush1.bf16.msra.mxu0 %v4326
    %4503 = vmatprep.subr.bf16.mxu0 0
    %4504 = vmatpush1.bf16.msra.mxu0 %v4325
    %4505 = vmatprep.subr.bf16.mxu0 0
    %4506 = vmatpush1.bf16.msra.mxu0 %v4324
    %4507 = vmatprep.subr.bf16.mxu0 0
    %4508 = vmatpush1.bf16.msra.mxu0 %v4323
    %4509 = vmatprep.subr.bf16.mxu0 0
    %4510 = vmatpush1.bf16.msra.mxu0 %v4322
    %4511 = vmatprep.subr.bf16.mxu0 0
    %4512 = vmatpush1.bf16.msra.mxu0 %v4321
    %4513 = vmatprep.subr.bf16.mxu0 0
    %4514 = vmatpush2.bf16.msra.mxu0 %v4336
    %4515 = vmatprep.subr.bf16.mxu0 0
    %4516 = vmatpush2.bf16.msra.mxu0 %v4335
    %4517 = vmatprep.subr.bf16.mxu0 0
    %4518 = vmatpush2.bf16.msra.mxu0 %v4334
    %4519 = vmatprep.subr.bf16.mxu0 0
    %4520 = vmatpush2.bf16.msra.mxu0 %v4333
    %4521 = vmatprep.subr.bf16.mxu0 0
    %4522 = vmatpush2.bf16.msra.mxu0 %v4332
    %4523 = vmatprep.subr.bf16.mxu0 0
    %4524 = vmatpush2.bf16.msra.mxu0 %v4331
    %4525 = vmatprep.subr.bf16.mxu0 0
    %4526 = vmatpush2.bf16.msra.mxu0 %v4330
    %4527 = vmatprep.subr.bf16.mxu0 0
    %4528 = vmatpush2.bf16.msra.mxu0 %v4329
    %4529 = vmatprep.mubr.bf16.mxu0 %v3895
    %4530 = vmatmul.mubr.bf16.gmra.mxu0 %v3894
    %v4531 = vpop.f32.mrf.mxu0
    %v4532 = vadd.f32 %v4492, %v4531
    %v4533 = vpop.f32.mrf.mxu0
    %v4534 = vpop.f32.mrf.mxu0
    %v4535 = vpop.f32.mrf.mxu0
    %4536 = vdwg.mxu0
    %4537 = vmatprep.subr.bf16.mxu0 0
    %4538 = vmatpush1.bf16.msra.mxu0 %v4344
    %4539 = vmatprep.subr.bf16.mxu0 0
    %4540 = vmatpush1.bf16.msra.mxu0 %v4343
    %4541 = vmatprep.subr.bf16.mxu0 0
    %4542 = vmatpush1.bf16.msra.mxu0 %v4342
    %4543 = vmatprep.subr.bf16.mxu0 0
    %4544 = vmatpush1.bf16.msra.mxu0 %v4341
    %4545 = vmatprep.subr.bf16.mxu0 0
    %4546 = vmatpush1.bf16.msra.mxu0 %v4340
    %4547 = vmatprep.subr.bf16.mxu0 0
    %4548 = vmatpush1.bf16.msra.mxu0 %v4339
    %4549 = vmatprep.subr.bf16.mxu0 0
    %4550 = vmatpush1.bf16.msra.mxu0 %v4338
    %4551 = vmatprep.subr.bf16.mxu0 0
    %4552 = vmatpush1.bf16.msra.mxu0 %v4337
    %4553 = vmatprep.subr.bf16.mxu0 0
    %4554 = vmatpush2.bf16.msra.mxu0 %v4352
    %4555 = vmatprep.subr.bf16.mxu0 0
    %4556 = vmatpush2.bf16.msra.mxu0 %v4351
    %4557 = vmatprep.subr.bf16.mxu0 0
    %4558 = vmatpush2.bf16.msra.mxu0 %v4350
    %4559 = vmatprep.subr.bf16.mxu0 0
    %4560 = vmatpush2.bf16.msra.mxu0 %v4349
    %4561 = vmatprep.subr.bf16.mxu0 0
    %4562 = vmatpush2.bf16.msra.mxu0 %v4348
    %4563 = vmatprep.subr.bf16.mxu0 0
    %4564 = vmatpush2.bf16.msra.mxu0 %v4347
    %4565 = vmatprep.subr.bf16.mxu0 0
    %4566 = vmatpush2.bf16.msra.mxu0 %v4346
    %4567 = vmatprep.subr.bf16.mxu0 0
    %4568 = vmatpush2.bf16.msra.mxu0 %v4345
    %4569 = vmatprep.mubr.bf16.mxu0 %v3897
    %4570 = vmatmul.mubr.bf16.gmra.mxu0 %v3896
    %v4571 = vpop.f32.mrf.mxu0
    %v4572 = vadd.f32 %v4532, %v4571
    %v4573 = vpop.f32.mrf.mxu0
    %v4574 = vpop.f32.mrf.mxu0
    %v4575 = vpop.f32.mrf.mxu0
    %4576 = vdwg.mxu0
    %vm4577 = vcmask 74752
    %4578 = vst.msk [vmem:[#allocation2] sm:$0x3] %vm4577, %v4572
    // Predicated region
    $region62: #{dpg_conv_seq_forward.1} parent=1 // pred_check
      _
    $region63: #{dpg_conv_seq_forward.1} parent=1 // pred_check_branch
      %4580 = sbr.rel (0) target = $region65
    $region64: #{dpg_conv_seq_forward.1} parent=1 // pred_region
      %s4582 = ssub.s32 32, 32
      %4583 = vsyncadd [#allocation3], %s4582
      %s4585 = sshll.u32 [#allocation2], 4
      %s4586 = int_to_ptr.vmem [resolvable:$true] %s4585
      %4588 = dma.vmem_to_hbm [thread:$0]  %s4586, 32, %s15, [#allocation3]
    $region65: #{dpg_conv_seq_forward.1} parent=1 // pred_fallthru
      _
    // Predicated region
    $region66: #{dpg_conv_seq_forward.1} parent=1 // pred_check
      _
    $region67: #{dpg_conv_seq_forward.1} parent=1 // pred_check_branch
      %4590 = sbr.rel (0) target = $region69
    $region68: #{dpg_conv_seq_forward.1} parent=1 // pred_region
      %4591 = dma.done [#allocation3], 32
    $region69: #{dpg_conv_seq_forward.1} parent=1 // pred_fallthru
      _
    %4592 = vsyncpa [#allocation3], 1

</llo_original>
